<compile_context>
chip_gen: v5e
topology: v5e:2x2
jax: 0.10.0
libtpu: 0.0.40
codegen_flags: <defaults>
</compile_context>

<pallas_src>
import functools

import jax
import jax.numpy as jnp
from jax import lax
from jax.experimental import pallas as pl
from jax.experimental.pallas import tpu as pltpu

DILATIONS = (6, 12, 18)
MAX_PAD = max(DILATIONS)


def _round_up(x, m):
    return (x + m - 1) // m * m


# --------------------------- pass 1 kernel ---------------------------------
# grid = (batch, num_row_tiles).  Per step: one sample, `tile_rows` output rows.
def _branches_kernel(xpad_ref, wx_ref, w6_ref, w12_ref, w18_ref, brow_ref,
                     bres_ref, fused_ref, res_ref, s1_ref, s2_ref,
                     *, tile_rows, width, pad):
    t = pl.program_id(1)
    th, w, p = tile_rows, width, pad
    c = fused_ref.shape[-1]
    cin = xpad_ref.shape[-1]
    r0 = pl.multiple_of(t * th, th)                      # first output row of tile

    def mxu(a, b):
        return jnp.dot(a, b, preferred_element_type=jnp.float32)

    def tap(oy, ox):
        # (th, w, cin) shifted window of the padded image -> (th*w, cin).
        v = xpad_ref[0, pl.ds(r0 + oy, th), pl.ds(ox, w), :]
        return v.reshape(th * w, cin)

    # Merged matmul: [folded 1x1 branch | residual 1x1] on the center tap.
    xw = mxu(tap(p, p), wx_ref[...])                     # (th*w, 2c) f32
    m = xw[:, :c]                                        # bias-free fused accum
    res = xw[:, c:] + bres_ref[...]                      # residual branch

    # Dilated 3x3 branches, weights pre-folded with the fusion conv.
    for d, w_ref in zip(DILATIONS, (w6_ref, w12_ref, w18_ref)):
        for k in range(9):
            ky, kx = divmod(k, 3)
            m = m + mxu(tap(p - d + ky * d, p - d + kx * d), w_ref[k])

    # GroupNorm statistics of the bias-free part, accumulated across row tiles.
    @pl.when(t == 0)
    def _init():
        s1_ref[...] = jnp.zeros_like(s1_ref)
        s2_ref[...] = jnp.zeros_like(s2_ref)

    s1_ref[0] += jnp.sum(m, axis=0, keepdims=True)
    s2_ref[0] += jnp.sum(m * m, axis=0, keepdims=True)

    fused_ref[0] = m + brow_ref[0]                       # + per-sample constant row
    res_ref[0] = res


# --------------------------- pass 2 kernel ---------------------------------
# y = relu(fused * scale + shift) + residual        (pure element-wise, f32)
def _gn_relu_add_kernel(fused_ref, res_ref, scale_ref, shift_ref, o_ref):
    y = fused_ref[0] * scale_ref[0] + shift_ref[0]
    o_ref[0] = jnp.maximum(y, 0.0) + res_ref[0]


# ------------------------------ wrapper -------------------------------------
def hrfsaspp_pallas(x_nchw, params, *, num_groups=32, tile_rows=None,
                    matmul_dtype=jnp.bfloat16, eps=1e-5):
    f32 = jnp.float32
    hi = lax.Precision.HIGHEST
    n, cin, h, w = x_nchw.shape
    c = params["b1"].shape[0]
    if c % num_groups != 0:
        raise ValueError("out_channels must be divisible by num_groups")
    if w % 8 != 0:
        raise NotImplementedError("width must be a multiple of 8 (sublane tiling)")
    hw = h * w
    p = MAX_PAD

    # Row tiling: biggest divisor of H giving <= ~1024 output rows per tile.
    if tile_rows is None:
        tile_rows = 1
        for th in range(h, 0, -1):
            if h % th == 0 and th * w <= 1024:
                tile_rows = th
                break
    if h % tile_rows != 0:
        raise ValueError("tile_rows must divide H")
    num_tiles = h // tile_rows
    tq = tile_rows * w

    # ---- activations: single zero-padded, lane-dense NHWC copy of x ----
    cin_p = _round_up(cin, 128)
    x_f32 = x_nchw.astype(f32)
    x_nhwc = jnp.transpose(x_f32, (0, 2, 3, 1))
    xpad = jnp.pad(x_nhwc, ((0, 0), (p, p), (p, p), (0, cin_p - cin)))
    xpad = xpad.astype(matmul_dtype)
    hp, wp = h + 2 * p, w + 2 * p

    # ---- fold the 1x1 fusion conv into the branch weights (host, f32) ----
    wf = jnp.transpose(params["wf"][:, :, 0, 0].astype(f32), (1, 0))     # (5c, c)
    wf_blk = [wf[i * c:(i + 1) * c] for i in range(5)]

    def w1x1(name):
        return jnp.transpose(params[name][:, :, 0, 0].astype(f32), (1, 0))

    wx = jnp.concatenate(
        [jnp.matmul(w1x1("w1"), wf_blk[0], precision=hi), w1x1("wres")], axis=1)
    wx = jnp.pad(wx, ((0, cin_p - cin), (0, 0))).astype(matmul_dtype)    # (cin_p, 2c)

    def fold_3x3(name, blk):
        taps = jnp.transpose(params[name].astype(f32), (2, 3, 1, 0)).reshape(9, cin, c)
        folded = jnp.einsum("kic,co->kio", taps, blk, precision=hi)      # (9, cin, c)
        return jnp.pad(folded, ((0, 0), (0, cin_p - cin), (0, 0))).astype(matmul_dtype)

    w6 = fold_3x3("w2", wf_blk[1])
    w12 = fold_3x3("w3", wf_blk[2])
    w18 = fold_3x3("w4", wf_blk[3])

    b_eff = (params["bf"].astype(f32)
             + jnp.matmul(params["b1"].astype(f32), wf_blk[0], precision=hi)
             + jnp.matmul(params["b2"].astype(f32), wf_blk[1], precision=hi)
             + jnp.matmul(params["b3"].astype(f32), wf_blk[2], precision=hi)
             + jnp.matmul(params["b4"].astype(f32), wf_blk[3], precision=hi))

    # Global-pool branch folded into a per-sample constant row (exact:
    # bilinear upsample of a 1x1 map is a broadcast).
    xmean = jnp.mean(x_f32, axis=(2, 3))                                  # (n, cin)
    gp = jax.nn.relu(jnp.matmul(xmean, w1x1("wgp"), precision=hi)
                     + params["bgp"].astype(f32))                         # (n, c)
    brow = (jnp.matmul(gp, wf_blk[4], precision=hi)
            + b_eff[None, :]).reshape(n, 1, c).astype(f32)                # (n, 1, c)
    bres_row = params["bres"].astype(f32).reshape(1, c)

    # ----------------------------- pass 1 -----------------------------------
    kernel1 = functools.partial(_branches_kernel, tile_rows=tile_rows,
                                width=w, pad=p)
    flops1 = 2 * n * hw * cin_p * c * (9 * len(DILATIONS) + 2)
    bytes1 = (xpad.size * xpad.dtype.itemsize
              + (wx.size + w6.size + w12.size + w18.size) * wx.dtype.itemsize
              + 2 * n * hw * c * 4)

    fused, resid, s1, s2 = pl.pallas_call(
        kernel1,
        out_shape=[
            jax.ShapeDtypeStruct((n, hw, c), f32),    # pre-GN fused activation
            jax.ShapeDtypeStruct((n, hw, c), f32),    # residual branch
            jax.ShapeDtypeStruct((n, 1, c), f32),     # sum   of bias-free fused
            jax.ShapeDtypeStruct((n, 1, c), f32),     # sumsq of bias-free fused
        ],
        grid_spec=pltpu.PrefetchScalarGridSpec(
            num_scalar_prefetch=0,
            grid=(n, num_tiles),
            in_specs=[
                pl.BlockSpec((1, hp, wp, cin_p), lambda i, t: (i, 0, 0, 0)),
                pl.BlockSpec((cin_p, 2 * c), lambda i, t: (0, 0)),
                pl.BlockSpec((9, cin_p, c), lambda i, t: (0, 0, 0)),
                pl.BlockSpec((9, cin_p, c), lambda i, t: (0, 0, 0)),
                pl.BlockSpec((9, cin_p, c), lambda i, t: (0, 0, 0)),
                pl.BlockSpec((1, 1, c), lambda i, t: (i, 0, 0)),
                pl.BlockSpec((1, c), lambda i, t: (0, 0)),
            ],
            out_specs=[
                pl.BlockSpec((1, tq, c), lambda i, t: (i, t, 0)),
                pl.BlockSpec((1, tq, c), lambda i, t: (i, t, 0)),
                pl.BlockSpec((1, 1, c), lambda i, t: (i, 0, 0)),
                pl.BlockSpec((1, 1, c), lambda i, t: (i, 0, 0)),
            ],
        ),
        compiler_params=pltpu.CompilerParams(
            dimension_semantics=("parallel", "arbitrary"),
            vmem_limit_bytes=32 * 1024 * 1024,
        ),
        cost_estimate=pl.CostEstimate(flops=int(flops1), transcendentals=0,
                                      bytes_accessed=int(bytes1)),
    )(xpad, wx, w6, w12, w18, brow, bres_row)

    # ---- finalize GroupNorm stats (tiny per-sample (N, C) math, f32) --------
    # fused = m + b  (b = per-sample constant row).  Using sums of m:
    #   mu_g  = (sum(S1) + HW*sum(b)) / (Cpg*HW)
    #   var_g = sum(S2 + 2*(b-mu)*S1 + HW*(b-mu)^2) / (Cpg*HW)      (exact)
    cpg = c // num_groups
    s1g = s1.reshape(n, num_groups, cpg)
    s2g = s2.reshape(n, num_groups, cpg)
    bg = brow.reshape(n, num_groups, cpg)
    cnt = float(cpg * hw)
    mu_g = (jnp.sum(s1g, axis=-1) + hw * jnp.sum(bg, axis=-1)) / cnt
    dlt = bg - mu_g[:, :, None]
    var_g = jnp.sum(s2g + 2.0 * dlt * s1g + hw * dlt * dlt, axis=-1) / cnt
    inv_g = lax.rsqrt(var_g + eps)

    gamma = params["gamma"].astype(f32).reshape(1, num_groups, cpg)
    beta = params["beta"].astype(f32).reshape(1, num_groups, cpg)
    scale = (inv_g[:, :, None] * gamma).reshape(n, 1, c)
    shift = (beta - (mu_g * inv_g)[:, :, None] * gamma).reshape(n, 1, c)

    # ----------------------------- pass 2 -----------------------------------
    tq2 = hw if hw * c * 4 * 6 <= (8 << 20) else tq      # bigger tiles, mem-bound
    grid2 = (n, hw // tq2)

    out = pl.pallas_call(
        _gn_relu_add_kernel,
        out_shape=jax.ShapeDtypeStruct((n, hw, c), f32),
        grid_spec=pltpu.PrefetchScalarGridSpec(
            num_scalar_prefetch=0,
            grid=grid2,
            in_specs=[
                pl.BlockSpec((1, tq2, c), lambda i, t: (i, t, 0)),
                pl.BlockSpec((1, tq2, c), lambda i, t: (i, t, 0)),
                pl.BlockSpec((1, 1, c), lambda i, t: (i, 0, 0)),
                pl.BlockSpec((1, 1, c), lambda i, t: (i, 0, 0)),
            ],
            out_specs=pl.BlockSpec((1, tq2, c), lambda i, t: (i, t, 0)),
        ),
        compiler_params=pltpu.CompilerParams(
            dimension_semantics=("parallel", "parallel"),
            vmem_limit_bytes=32 * 1024 * 1024,
        ),
        cost_estimate=pl.CostEstimate(flops=int(3 * n * hw * c), transcendentals=0,
                                      bytes_accessed=int(3 * n * hw * c * 4)),
    )(fused, resid, scale, shift)

    return jnp.transpose(out.reshape(n, h, w, c), (0, 3, 1, 2))


# ----------------------- pure-JAX reference (for checking) -----------------------
def conv2d_ref(x, w, b, padding=0, dilation=1):
    out = lax.conv_general_dilated(
        x, w, window_strides=(1, 1),
        padding=((padding, padding), (padding, padding)),
        rhs_dilation=(dilation, dilation),
        dimension_numbers=("NCHW", "OIHW", "NCHW"))
    return out + b[None, :, None, None]


def group_norm_ref(x, gamma, beta, num_groups, eps=1e-5):
    n, c, h, w = x.shape
    xg = x.reshape(n, num_groups, c // num_groups, h, w)
    mu = jnp.mean(xg, axis=(2, 3, 4), keepdims=True)
    var = jnp.mean((xg - mu) ** 2, axis=(2, 3, 4), keepdims=True)
    xn = ((xg - mu) / jnp.sqrt(var + eps)).reshape(n, c, h, w)
    return xn * gamma[None, :, None, None] + beta[None, :, None, None]


def hrfsaspp_ref(x, p):
    n, cin, h, w = x.shape
    out1 = conv2d_ref(x, p["w1"], p["b1"])
    out2 = conv2d_ref(x, p["w2"], p["b2"], padding=6, dilation=6)
    out3 = conv2d_ref(x, p["w3"], p["b3"], padding=12, dilation=12)
    out4 = conv2d_ref(x, p["w4"], p["b4"], padding=18, dilation=18)
    gp = jnp.mean(x, axis=(2, 3), keepdims=True)
    gp = jax.nn.relu(conv2d_ref(gp, p["wgp"], p["bgp"]))
    out5 = jnp.broadcast_to(gp, (n, gp.shape[1], h, w))   # bilinear of 1x1 == broadcast
    res = conv2d_ref(x, p["wres"], p["bres"])
    concat = jnp.concatenate([out1, out2, out3, out4, out5], axis=1)
    fused = conv2d_ref(concat, p["wf"], p["bf"])
    fused = jax.nn.relu(group_norm_ref(fused, p["gamma"], p["beta"], 32))
    return fused + res


if __name__ == "__main__":
    n, cin, cout, h, w = 2, 16, 32, 16, 16      # cout % 32 == 0 (GroupNorm groups)

    keys = jax.random.split(jax.random.PRNGKey(0), 17)

    def rnd(k, shape, scale=0.1):
        return scale * jax.random.normal(k, shape, dtype=jnp.float32)

    params = {
        "w1": rnd(keys[0], (cout, cin, 1, 1)),   "b1": rnd(keys[1], (cout,)),
        "w2": rnd(keys[2], (cout, cin, 3, 3)),   "b2": rnd(keys[3], (cout,)),
        "w3": rnd(keys[4], (cout, cin, 3, 3)),   "b3": rnd(keys[5], (cout,)),
        "w4": rnd(keys[6], (cout, cin, 3, 3)),   "b4": rnd(keys[7], (cout,)),
        "wgp": rnd(keys[8], (cout, cin, 1, 1)),  "bgp": rnd(keys[9], (cout,)),
        "wres": rnd(keys[10], (cout, cin, 1, 1)), "bres": rnd(keys[11], (cout,)),
        "wf": rnd(keys[12], (cout, 5 * cout, 1, 1)), "bf": rnd(keys[13], (cout,)),
        "gamma": 1.0 + rnd(keys[14], (cout,)),
        "beta": rnd(keys[15], (cout,)),
    }
    x = jax.random.normal(keys[16], (n, cin, h, w), dtype=jnp.float32)

    ref = jax.block_until_ready(hrfsaspp_ref(x, params))

    # f32 matmul path: weight folding / in-kernel taps / two-pass GN are exact.
    out_f32 = jax.block_until_ready(
        hrfsaspp_pallas(x, params, tile_rows=8, matmul_dtype=jnp.float32))
    assert out_f32.shape == ref.shape == (n, cout, h, w)
    if not bool(jnp.allclose(out_f32, ref, rtol=2e-3, atol=2e-3)):
        raise AssertionError(
            f"f32 mismatch: max abs err {float(jnp.max(jnp.abs(out_f32 - ref)))}")

    # Default (performance) path: bf16 matmul inputs, f32 accumulation.
    # Looser tolerance purely reflects the intentional bf16 cast of
    # activations/weights vs. the f32 reference.
    out_bf16 = jax.block_until_ready(hrfsaspp_pallas(x, params, tile_rows=8))
    if not bool(jnp.allclose(out_bf16, ref, rtol=5e-2, atol=5e-2)):
        raise AssertionError(
            f"bf16 mismatch: max abs err {float(jnp.max(jnp.abs(out_bf16 - ref)))}")

    print("KERNEL_OK")
</pallas_src>

<mosaic_0001>
module attributes {stable_mosaic.version = 11 : i64} {
  func.func @_branches_kernel(%arg0: i32, %arg1: i32, %arg2: memref<1x52x52x128xf32, #tpu.memory_space<vmem>>, %arg3: memref<128x64xf32, #tpu.memory_space<vmem>>, %arg4: memref<9x128x32xf32, #tpu.memory_space<vmem>>, %arg5: memref<9x128x32xf32, #tpu.memory_space<vmem>>, %arg6: memref<9x128x32xf32, #tpu.memory_space<vmem>>, %arg7: memref<1x1x32xf32, #tpu.memory_space<vmem>>, %arg8: memref<1x32xf32, #tpu.memory_space<vmem>>, %arg9: memref<1x128x32xf32, #tpu.memory_space<vmem>>, %arg10: memref<1x128x32xf32, #tpu.memory_space<vmem>>, %arg11: memref<1x1x32xf32, #tpu.memory_space<vmem>>, %arg12: memref<1x1x32xf32, #tpu.memory_space<vmem>>) attributes {dimension_semantics = [#tpu.dimension_semantics<parallel>, #tpu.dimension_semantics<arbitrary>], iteration_bounds = array<i64: 2, 2>, scalar_prefetch = 0 : i64, scratch_operands = 0 : i64, tpu.core_type = #tpu.core_type<tc>, window_params = [{transform_indices = @transform_0, window_bounds = array<i64: 1, 52, 52, 128>}, {pipeline_mode = #tpu.pipeline_mode<synchronous>, transform_indices = @transform_1, window_bounds = array<i64: 128, 64>}, {pipeline_mode = #tpu.pipeline_mode<synchronous>, transform_indices = @transform_2, window_bounds = array<i64: 9, 128, 32>}, {pipeline_mode = #tpu.pipeline_mode<synchronous>, transform_indices = @transform_3, window_bounds = array<i64: 9, 128, 32>}, {pipeline_mode = #tpu.pipeline_mode<synchronous>, transform_indices = @transform_4, window_bounds = array<i64: 9, 128, 32>}, {transform_indices = @transform_5, window_bounds = array<i64: 1, 1, 32>}, {pipeline_mode = #tpu.pipeline_mode<synchronous>, transform_indices = @transform_6, window_bounds = array<i64: 1, 32>}, {transform_indices = @transform_7, window_bounds = array<i64: 1, 128, 32>}, {transform_indices = @transform_8, window_bounds = array<i64: 1, 128, 32>}, {transform_indices = @transform_9, window_bounds = array<i64: 1, 1, 32>}, {transform_indices = @transform_10, window_bounds = array<i64: 1, 1, 32>}]} {
    %c8_i32 = arith.constant 8 : i32
    %0 = arith.muli %arg1, %c8_i32 : i32
    %1 = tpu.assume_multiple %0, 8 : i32
    %c18_i32 = arith.constant 18 : i32
    %2 = arith.addi %1, %c18_i32 : i32
    %c0 = arith.constant 0 : index
    %3 = arith.index_cast %2 : i32 to index
    %c18 = arith.constant 18 : index
    %c0_0 = arith.constant 0 : index
    %4 = vector.load %arg2[%c0, %3, %c18, %c0_0] : memref<1x52x52x128xf32, #tpu.memory_space<vmem>>, vector<1x8x16x128xf32>
    %5 = vector.shape_cast %4 : vector<1x8x16x128xf32> to vector<8x16x128xf32>
    %6 = vector.shape_cast %5 : vector<8x16x128xf32> to vector<128x128xf32>
    %c0_1 = arith.constant 0 : index
    %c0_2 = arith.constant 0 : index
    %7 = vector.load %arg3[%c0_1, %c0_2] : memref<128x64xf32, #tpu.memory_space<vmem>>, vector<128x64xf32>
    %cst = arith.constant dense<0.000000e+00> : vector<128x64xf32>
    %8 = tpu.matmul %6, %7, %cst {dimension_numbers = #tpu.dot_dimension_numbers<[1], [0], [0], [1], [0, 0, 1, 1], [], []>} : vector<128x128xf32>, vector<128x64xf32>, vector<128x64xf32> -> vector<128x64xf32>
    %9 = vector.extract_strided_slice %8 {offsets = [0, 0], sizes = [128, 32], strides = [1, 1]} : vector<128x64xf32> to vector<128x32xf32>
    %10 = vector.extract_strided_slice %8 {offsets = [0, 32], sizes = [128, 32], strides = [1, 1]} : vector<128x64xf32> to vector<128x32xf32>
    %c0_3 = arith.constant 0 : index
    %c0_4 = arith.constant 0 : index
    %11 = vector.load %arg8[%c0_3, %c0_4] : memref<1x32xf32, #tpu.memory_space<vmem>>, vector<1x32xf32>
    %12 = vector.broadcast %11 : vector<1x32xf32> to vector<128x32xf32>
    %13 = arith.addf %10, %12 : vector<128x32xf32>
    %c12_i32 = arith.constant 12 : i32
    %14 = arith.addi %1, %c12_i32 : i32
    %c0_5 = arith.constant 0 : index
    %15 = arith.index_cast %14 : i32 to index
    %c12 = arith.constant 12 : index
    %c0_6 = arith.constant 0 : index
    %16 = vector.load %arg2[%c0_5, %15, %c12, %c0_6] : memref<1x52x52x128xf32, #tpu.memory_space<vmem>>, vector<1x8x16x128xf32>
    %17 = vector.shape_cast %16 : vector<1x8x16x128xf32> to vector<8x16x128xf32>
    %18 = vector.shape_cast %17 : vector<8x16x128xf32> to vector<128x128xf32>
    %c0_7 = arith.constant 0 : index
    %c0_8 = arith.constant 0 : index
    %c0_9 = arith.constant 0 : index
    %19 = vector.load %arg4[%c0_7, %c0_8, %c0_9] : memref<9x128x32xf32, #tpu.memory_space<vmem>>, vector<1x128x32xf32>
    %20 = vector.shape_cast %19 : vector<1x128x32xf32> to vector<128x32xf32>
    %cst_10 = arith.constant dense<0.000000e+00> : vector<128x32xf32>
    %21 = tpu.matmul %18, %20, %cst_10 {dimension_numbers = #tpu.dot_dimension_numbers<[1], [0], [0], [1], [0, 0, 1, 1], [], []>} : vector<128x128xf32>, vector<128x32xf32>, vector<128x32xf32> -> vector<128x32xf32>
    %22 = arith.addf %9, %21 : vector<128x32xf32>
    %c12_i32_11 = arith.constant 12 : i32
    %23 = arith.addi %1, %c12_i32_11 : i32
    %c0_12 = arith.constant 0 : index
    %24 = arith.index_cast %23 : i32 to index
    %c18_13 = arith.constant 18 : index
    %c0_14 = arith.constant 0 : index
    %25 = vector.load %arg2[%c0_12, %24, %c18_13, %c0_14] : memref<1x52x52x128xf32, #tpu.memory_space<vmem>>, vector<1x8x16x128xf32>
    %26 = vector.shape_cast %25 : vector<1x8x16x128xf32> to vector<8x16x128xf32>
    %27 = vector.shape_cast %26 : vector<8x16x128xf32> to vector<128x128xf32>
    %c1 = arith.constant 1 : index
    %c0_15 = arith.constant 0 : index
    %c0_16 = arith.constant 0 : index
    %28 = vector.load %arg4[%c1, %c0_15, %c0_16] : memref<9x128x32xf32, #tpu.memory_space<vmem>>, vector<1x128x32xf32>
    %29 = vector.shape_cast %28 : vector<1x128x32xf32> to vector<128x32xf32>
    %cst_17 = arith.constant dense<0.000000e+00> : vector<128x32xf32>
    %30 = tpu.matmul %27, %29, %cst_17 {dimension_numbers = #tpu.dot_dimension_numbers<[1], [0], [0], [1], [0, 0, 1, 1], [], []>} : vector<128x128xf32>, vector<128x32xf32>, vector<128x32xf32> -> vector<128x32xf32>
    %31 = arith.addf %22, %30 : vector<128x32xf32>
    %c12_i32_18 = arith.constant 12 : i32
    %32 = arith.addi %1, %c12_i32_18 : i32
    %c0_19 = arith.constant 0 : index
    %33 = arith.index_cast %32 : i32 to index
    %c24 = arith.constant 24 : index
    %c0_20 = arith.constant 0 : index
    %34 = vector.load %arg2[%c0_19, %33, %c24, %c0_20] : memref<1x52x52x128xf32, #tpu.memory_space<vmem>>, vector<1x8x16x128xf32>
    %35 = vector.shape_cast %34 : vector<1x8x16x128xf32> to vector<8x16x128xf32>
    %36 = vector.shape_cast %35 : vector<8x16x128xf32> to vector<128x128xf32>
    %c2 = arith.constant 2 : index
    %c0_21 = arith.constant 0 : index
    %c0_22 = arith.constant 0 : index
    %37 = vector.load %arg4[%c2, %c0_21, %c0_22] : memref<9x128x32xf32, #tpu.memory_space<vmem>>, vector<1x128x32xf32>
    %38 = vector.shape_cast %37 : vector<1x128x32xf32> to vector<128x32xf32>
    %cst_23 = arith.constant dense<0.000000e+00> : vector<128x32xf32>
    %39 = tpu.matmul %36, %38, %cst_23 {dimension_numbers = #tpu.dot_dimension_numbers<[1], [0], [0], [1], [0, 0, 1, 1], [], []>} : vector<128x128xf32>, vector<128x32xf32>, vector<128x32xf32> -> vector<128x32xf32>
    %40 = arith.addf %31, %39 : vector<128x32xf32>
    %c18_i32_24 = arith.constant 18 : i32
    %41 = arith.addi %1, %c18_i32_24 : i32
    %c0_25 = arith.constant 0 : index
    %42 = arith.index_cast %41 : i32 to index
    %c12_26 = arith.constant 12 : index
    %c0_27 = arith.constant 0 : index
    %43 = vector.load %arg2[%c0_25, %42, %c12_26, %c0_27] : memref<1x52x52x128xf32, #tpu.memory_space<vmem>>, vector<1x8x16x128xf32>
    %44 = vector.shape_cast %43 : vector<1x8x16x128xf32> to vector<8x16x128xf32>
    %45 = vector.shape_cast %44 : vector<8x16x128xf32> to vector<128x128xf32>
    %c3 = arith.constant 3 : index
    %c0_28 = arith.constant 0 : index
    %c0_29 = arith.constant 0 : index
    %46 = vector.load %arg4[%c3, %c0_28, %c0_29] : memref<9x128x32xf32, #tpu.memory_space<vmem>>, vector<1x128x32xf32>
    %47 = vector.shape_cast %46 : vector<1x128x32xf32> to vector<128x32xf32>
    %cst_30 = arith.constant dense<0.000000e+00> : vector<128x32xf32>
    %48 = tpu.matmul %45, %47, %cst_30 {dimension_numbers = #tpu.dot_dimension_numbers<[1], [0], [0], [1], [0, 0, 1, 1], [], []>} : vector<128x128xf32>, vector<128x32xf32>, vector<128x32xf32> -> vector<128x32xf32>
    %49 = arith.addf %40, %48 : vector<128x32xf32>
    %c18_i32_31 = arith.constant 18 : i32
    %50 = arith.addi %1, %c18_i32_31 : i32
    %c0_32 = arith.constant 0 : index
    %51 = arith.index_cast %50 : i32 to index
    %c18_33 = arith.constant 18 : index
    %c0_34 = arith.constant 0 : index
    %52 = vector.load %arg2[%c0_32, %51, %c18_33, %c0_34] : memref<1x52x52x128xf32, #tpu.memory_space<vmem>>, vector<1x8x16x128xf32>
    %53 = vector.shape_cast %52 : vector<1x8x16x128xf32> to vector<8x16x128xf32>
    %54 = vector.shape_cast %53 : vector<8x16x128xf32> to vector<128x128xf32>
    %c4 = arith.constant 4 : index
    %c0_35 = arith.constant 0 : index
    %c0_36 = arith.constant 0 : index
    %55 = vector.load %arg4[%c4, %c0_35, %c0_36] : memref<9x128x32xf32, #tpu.memory_space<vmem>>, vector<1x128x32xf32>
    %56 = vector.shape_cast %55 : vector<1x128x32xf32> to vector<128x32xf32>
    %cst_37 = arith.constant dense<0.000000e+00> : vector<128x32xf32>
    %57 = tpu.matmul %54, %56, %cst_37 {dimension_numbers = #tpu.dot_dimension_numbers<[1], [0], [0], [1], [0, 0, 1, 1], [], []>} : vector<128x128xf32>, vector<128x32xf32>, vector<128x32xf32> -> vector<128x32xf32>
    %58 = arith.addf %49, %57 : vector<128x32xf32>
    %c18_i32_38 = arith.constant 18 : i32
    %59 = arith.addi %1, %c18_i32_38 : i32
    %c0_39 = arith.constant 0 : index
    %60 = arith.index_cast %59 : i32 to index
    %c24_40 = arith.constant 24 : index
    %c0_41 = arith.constant 0 : index
    %61 = vector.load %arg2[%c0_39, %60, %c24_40, %c0_41] : memref<1x52x52x128xf32, #tpu.memory_space<vmem>>, vector<1x8x16x128xf32>
    %62 = vector.shape_cast %61 : vector<1x8x16x128xf32> to vector<8x16x128xf32>
    %63 = vector.shape_cast %62 : vector<8x16x128xf32> to vector<128x128xf32>
    %c5 = arith.constant 5 : index
    %c0_42 = arith.constant 0 : index
    %c0_43 = arith.constant 0 : index
    %64 = vector.load %arg4[%c5, %c0_42, %c0_43] : memref<9x128x32xf32, #tpu.memory_space<vmem>>, vector<1x128x32xf32>
    %65 = vector.shape_cast %64 : vector<1x128x32xf32> to vector<128x32xf32>
    %cst_44 = arith.constant dense<0.000000e+00> : vector<128x32xf32>
    %66 = tpu.matmul %63, %65, %cst_44 {dimension_numbers = #tpu.dot_dimension_numbers<[1], [0], [0], [1], [0, 0, 1, 1], [], []>} : vector<128x128xf32>, vector<128x32xf32>, vector<128x32xf32> -> vector<128x32xf32>
    %67 = arith.addf %58, %66 : vector<128x32xf32>
    %c24_i32 = arith.constant 24 : i32
    %68 = arith.addi %1, %c24_i32 : i32
    %c0_45 = arith.constant 0 : index
    %69 = arith.index_cast %68 : i32 to index
    %c12_46 = arith.constant 12 : index
    %c0_47 = arith.constant 0 : index
    %70 = vector.load %arg2[%c0_45, %69, %c12_46, %c0_47] : memref<1x52x52x128xf32, #tpu.memory_space<vmem>>, vector<1x8x16x128xf32>
    %71 = vector.shape_cast %70 : vector<1x8x16x128xf32> to vector<8x16x128xf32>
    %72 = vector.shape_cast %71 : vector<8x16x128xf32> to vector<128x128xf32>
    %c6 = arith.constant 6 : index
    %c0_48 = arith.constant 0 : index
    %c0_49 = arith.constant 0 : index
    %73 = vector.load %arg4[%c6, %c0_48, %c0_49] : memref<9x128x32xf32, #tpu.memory_space<vmem>>, vector<1x128x32xf32>
    %74 = vector.shape_cast %73 : vector<1x128x32xf32> to vector<128x32xf32>
    %cst_50 = arith.constant dense<0.000000e+00> : vector<128x32xf32>
    %75 = tpu.matmul %72, %74, %cst_50 {dimension_numbers = #tpu.dot_dimension_numbers<[1], [0], [0], [1], [0, 0, 1, 1], [], []>} : vector<128x128xf32>, vector<128x32xf32>, vector<128x32xf32> -> vector<128x32xf32>
    %76 = arith.addf %67, %75 : vector<128x32xf32>
    %c24_i32_51 = arith.constant 24 : i32
    %77 = arith.addi %1, %c24_i32_51 : i32
    %c0_52 = arith.constant 0 : index
    %78 = arith.index_cast %77 : i32 to index
    %c18_53 = arith.constant 18 : index
    %c0_54 = arith.constant 0 : index
    %79 = vector.load %arg2[%c0_52, %78, %c18_53, %c0_54] : memref<1x52x52x128xf32, #tpu.memory_space<vmem>>, vector<1x8x16x128xf32>
    %80 = vector.shape_cast %79 : vector<1x8x16x128xf32> to vector<8x16x128xf32>
    %81 = vector.shape_cast %80 : vector<8x16x128xf32> to vector<128x128xf32>
    %c7 = arith.constant 7 : index
    %c0_55 = arith.constant 0 : index
    %c0_56 = arith.constant 0 : index
    %82 = vector.load %arg4[%c7, %c0_55, %c0_56] : memref<9x128x32xf32, #tpu.memory_space<vmem>>, vector<1x128x32xf32>
    %83 = vector.shape_cast %82 : vector<1x128x32xf32> to vector<128x32xf32>
    %cst_57 = arith.constant dense<0.000000e+00> : vector<128x32xf32>
    %84 = tpu.matmul %81, %83, %cst_57 {dimension_numbers = #tpu.dot_dimension_numbers<[1], [0], [0], [1], [0, 0, 1, 1], [], []>} : vector<128x128xf32>, vector<128x32xf32>, vector<128x32xf32> -> vector<128x32xf32>
    %85 = arith.addf %76, %84 : vector<128x32xf32>
    %c24_i32_58 = arith.constant 24 : i32
    %86 = arith.addi %1, %c24_i32_58 : i32
    %c0_59 = arith.constant 0 : index
    %87 = arith.index_cast %86 : i32 to index
    %c24_60 = arith.constant 24 : index
    %c0_61 = arith.constant 0 : index
    %88 = vector.load %arg2[%c0_59, %87, %c24_60, %c0_61] : memref<1x52x52x128xf32, #tpu.memory_space<vmem>>, vector<1x8x16x128xf32>
    %89 = vector.shape_cast %88 : vector<1x8x16x128xf32> to vector<8x16x128xf32>
    %90 = vector.shape_cast %89 : vector<8x16x128xf32> to vector<128x128xf32>
    %c8 = arith.constant 8 : index
    %c0_62 = arith.constant 0 : index
    %c0_63 = arith.constant 0 : index
    %91 = vector.load %arg4[%c8, %c0_62, %c0_63] : memref<9x128x32xf32, #tpu.memory_space<vmem>>, vector<1x128x32xf32>
    %92 = vector.shape_cast %91 : vector<1x128x32xf32> to vector<128x32xf32>
    %cst_64 = arith.constant dense<0.000000e+00> : vector<128x32xf32>
    %93 = tpu.matmul %90, %92, %cst_64 {dimension_numbers = #tpu.dot_dimension_numbers<[1], [0], [0], [1], [0, 0, 1, 1], [], []>} : vector<128x128xf32>, vector<128x32xf32>, vector<128x32xf32> -> vector<128x32xf32>
    %94 = arith.addf %85, %93 : vector<128x32xf32>
    %c6_i32 = arith.constant 6 : i32
    %95 = arith.addi %1, %c6_i32 : i32
    %c0_65 = arith.constant 0 : index
    %96 = arith.index_cast %95 : i32 to index
    %c6_66 = arith.constant 6 : index
    %c0_67 = arith.constant 0 : index
    %97 = vector.load %arg2[%c0_65, %96, %c6_66, %c0_67] : memref<1x52x52x128xf32, #tpu.memory_space<vmem>>, vector<1x8x16x128xf32>
    %98 = vector.shape_cast %97 : vector<1x8x16x128xf32> to vector<8x16x128xf32>
    %99 = vector.shape_cast %98 : vector<8x16x128xf32> to vector<128x128xf32>
    %c0_68 = arith.constant 0 : index
    %c0_69 = arith.constant 0 : index
    %c0_70 = arith.constant 0 : index
    %100 = vector.load %arg5[%c0_68, %c0_69, %c0_70] : memref<9x128x32xf32, #tpu.memory_space<vmem>>, vector<1x128x32xf32>
    %101 = vector.shape_cast %100 : vector<1x128x32xf32> to vector<128x32xf32>
    %cst_71 = arith.constant dense<0.000000e+00> : vector<128x32xf32>
    %102 = tpu.matmul %99, %101, %cst_71 {dimension_numbers = #tpu.dot_dimension_numbers<[1], [0], [0], [1], [0, 0, 1, 1], [], []>} : vector<128x128xf32>, vector<128x32xf32>, vector<128x32xf32> -> vector<128x32xf32>
    %103 = arith.addf %94, %102 : vector<128x32xf32>
    %c6_i32_72 = arith.constant 6 : i32
    %104 = arith.addi %1, %c6_i32_72 : i32
    %c0_73 = arith.constant 0 : index
    %105 = arith.index_cast %104 : i32 to index
    %c18_74 = arith.constant 18 : index
    %c0_75 = arith.constant 0 : index
    %106 = vector.load %arg2[%c0_73, %105, %c18_74, %c0_75] : memref<1x52x52x128xf32, #tpu.memory_space<vmem>>, vector<1x8x16x128xf32>
    %107 = vector.shape_cast %106 : vector<1x8x16x128xf32> to vector<8x16x128xf32>
    %108 = vector.shape_cast %107 : vector<8x16x128xf32> to vector<128x128xf32>
    %c1_76 = arith.constant 1 : index
    %c0_77 = arith.constant 0 : index
    %c0_78 = arith.constant 0 : index
    %109 = vector.load %arg5[%c1_76, %c0_77, %c0_78] : memref<9x128x32xf32, #tpu.memory_space<vmem>>, vector<1x128x32xf32>
    %110 = vector.shape_cast %109 : vector<1x128x32xf32> to vector<128x32xf32>
    %cst_79 = arith.constant dense<0.000000e+00> : vector<128x32xf32>
    %111 = tpu.matmul %108, %110, %cst_79 {dimension_numbers = #tpu.dot_dimension_numbers<[1], [0], [0], [1], [0, 0, 1, 1], [], []>} : vector<128x128xf32>, vector<128x32xf32>, vector<128x32xf32> -> vector<128x32xf32>
    %112 = arith.addf %103, %111 : vector<128x32xf32>
    %c6_i32_80 = arith.constant 6 : i32
    %113 = arith.addi %1, %c6_i32_80 : i32
    %c0_81 = arith.constant 0 : index
    %114 = arith.index_cast %113 : i32 to index
    %c30 = arith.constant 30 : index
    %c0_82 = arith.constant 0 : index
    %115 = vector.load %arg2[%c0_81, %114, %c30, %c0_82] : memref<1x52x52x128xf32, #tpu.memory_space<vmem>>, vector<1x8x16x128xf32>
    %116 = vector.shape_cast %115 : vector<1x8x16x128xf32> to vector<8x16x128xf32>
    %117 = vector.shape_cast %116 : vector<8x16x128xf32> to vector<128x128xf32>
    %c2_83 = arith.constant 2 : index
    %c0_84 = arith.constant 0 : index
    %c0_85 = arith.constant 0 : index
    %118 = vector.load %arg5[%c2_83, %c0_84, %c0_85] : memref<9x128x32xf32, #tpu.memory_space<vmem>>, vector<1x128x32xf32>
    %119 = vector.shape_cast %118 : vector<1x128x32xf32> to vector<128x32xf32>
    %cst_86 = arith.constant dense<0.000000e+00> : vector<128x32xf32>
    %120 = tpu.matmul %117, %119, %cst_86 {dimension_numbers = #tpu.dot_dimension_numbers<[1], [0], [0], [1], [0, 0, 1, 1], [], []>} : vector<128x128xf32>, vector<128x32xf32>, vector<128x32xf32> -> vector<128x32xf32>
    %121 = arith.addf %112, %120 : vector<128x32xf32>
    %c18_i32_87 = arith.constant 18 : i32
    %122 = arith.addi %1, %c18_i32_87 : i32
    %c0_88 = arith.constant 0 : index
    %123 = arith.index_cast %122 : i32 to index
    %c6_89 = arith.constant 6 : index
    %c0_90 = arith.constant 0 : index
    %124 = vector.load %arg2[%c0_88, %123, %c6_89, %c0_90] : memref<1x52x52x128xf32, #tpu.memory_space<vmem>>, vector<1x8x16x128xf32>
    %125 = vector.shape_cast %124 : vector<1x8x16x128xf32> to vector<8x16x128xf32>
    %126 = vector.shape_cast %125 : vector<8x16x128xf32> to vector<128x128xf32>
    %c3_91 = arith.constant 3 : index
    %c0_92 = arith.constant 0 : index
    %c0_93 = arith.constant 0 : index
    %127 = vector.load %arg5[%c3_91, %c0_92, %c0_93] : memref<9x128x32xf32, #tpu.memory_space<vmem>>, vector<1x128x32xf32>
    %128 = vector.shape_cast %127 : vector<1x128x32xf32> to vector<128x32xf32>
    %cst_94 = arith.constant dense<0.000000e+00> : vector<128x32xf32>
    %129 = tpu.matmul %126, %128, %cst_94 {dimension_numbers = #tpu.dot_dimension_numbers<[1], [0], [0], [1], [0, 0, 1, 1], [], []>} : vector<128x128xf32>, vector<128x32xf32>, vector<128x32xf32> -> vector<128x32xf32>
    %130 = arith.addf %121, %129 : vector<128x32xf32>
    %c18_i32_95 = arith.constant 18 : i32
    %131 = arith.addi %1, %c18_i32_95 : i32
    %c0_96 = arith.constant 0 : index
    %132 = arith.index_cast %131 : i32 to index
    %c18_97 = arith.constant 18 : index
    %c0_98 = arith.constant 0 : index
    %133 = vector.load %arg2[%c0_96, %132, %c18_97, %c0_98] : memref<1x52x52x128xf32, #tpu.memory_space<vmem>>, vector<1x8x16x128xf32>
    %134 = vector.shape_cast %133 : vector<1x8x16x128xf32> to vector<8x16x128xf32>
    %135 = vector.shape_cast %134 : vector<8x16x128xf32> to vector<128x128xf32>
    %c4_99 = arith.constant 4 : index
    %c0_100 = arith.constant 0 : index
    %c0_101 = arith.constant 0 : index
    %136 = vector.load %arg5[%c4_99, %c0_100, %c0_101] : memref<9x128x32xf32, #tpu.memory_space<vmem>>, vector<1x128x32xf32>
    %137 = vector.shape_cast %136 : vector<1x128x32xf32> to vector<128x32xf32>
    %cst_102 = arith.constant dense<0.000000e+00> : vector<128x32xf32>
    %138 = tpu.matmul %135, %137, %cst_102 {dimension_numbers = #tpu.dot_dimension_numbers<[1], [0], [0], [1], [0, 0, 1, 1], [], []>} : vector<128x128xf32>, vector<128x32xf32>, vector<128x32xf32> -> vector<128x32xf32>
    %139 = arith.addf %130, %138 : vector<128x32xf32>
    %c18_i32_103 = arith.constant 18 : i32
    %140 = arith.addi %1, %c18_i32_103 : i32
    %c0_104 = arith.constant 0 : index
    %141 = arith.index_cast %140 : i32 to index
    %c30_105 = arith.constant 30 : index
    %c0_106 = arith.constant 0 : index
    %142 = vector.load %arg2[%c0_104, %141, %c30_105, %c0_106] : memref<1x52x52x128xf32, #tpu.memory_space<vmem>>, vector<1x8x16x128xf32>
    %143 = vector.shape_cast %142 : vector<1x8x16x128xf32> to vector<8x16x128xf32>
    %144 = vector.shape_cast %143 : vector<8x16x128xf32> to vector<128x128xf32>
    %c5_107 = arith.constant 5 : index
    %c0_108 = arith.constant 0 : index
    %c0_109 = arith.constant 0 : index
    %145 = vector.load %arg5[%c5_107, %c0_108, %c0_109] : memref<9x128x32xf32, #tpu.memory_space<vmem>>, vector<1x128x32xf32>
    %146 = vector.shape_cast %145 : vector<1x128x32xf32> to vector<128x32xf32>
    %cst_110 = arith.constant dense<0.000000e+00> : vector<128x32xf32>
    %147 = tpu.matmul %144, %146, %cst_110 {dimension_numbers = #tpu.dot_dimension_numbers<[1], [0], [0], [1], [0, 0, 1, 1], [], []>} : vector<128x128xf32>, vector<128x32xf32>, vector<128x32xf32> -> vector<128x32xf32>
    %148 = arith.addf %139, %147 : vector<128x32xf32>
    %c30_i32 = arith.constant 30 : i32
    %149 = arith.addi %1, %c30_i32 : i32
    %c0_111 = arith.constant 0 : index
    %150 = arith.index_cast %149 : i32 to index
    %c6_112 = arith.constant 6 : index
    %c0_113 = arith.constant 0 : index
    %151 = vector.load %arg2[%c0_111, %150, %c6_112, %c0_113] : memref<1x52x52x128xf32, #tpu.memory_space<vmem>>, vector<1x8x16x128xf32>
    %152 = vector.shape_cast %151 : vector<1x8x16x128xf32> to vector<8x16x128xf32>
    %153 = vector.shape_cast %152 : vector<8x16x128xf32> to vector<128x128xf32>
    %c6_114 = arith.constant 6 : index
    %c0_115 = arith.constant 0 : index
    %c0_116 = arith.constant 0 : index
    %154 = vector.load %arg5[%c6_114, %c0_115, %c0_116] : memref<9x128x32xf32, #tpu.memory_space<vmem>>, vector<1x128x32xf32>
    %155 = vector.shape_cast %154 : vector<1x128x32xf32> to vector<128x32xf32>
    %cst_117 = arith.constant dense<0.000000e+00> : vector<128x32xf32>
    %156 = tpu.matmul %153, %155, %cst_117 {dimension_numbers = #tpu.dot_dimension_numbers<[1], [0], [0], [1], [0, 0, 1, 1], [], []>} : vector<128x128xf32>, vector<128x32xf32>, vector<128x32xf32> -> vector<128x32xf32>
    %157 = arith.addf %148, %156 : vector<128x32xf32>
    %c30_i32_118 = arith.constant 30 : i32
    %158 = arith.addi %1, %c30_i32_118 : i32
    %c0_119 = arith.constant 0 : index
    %159 = arith.index_cast %158 : i32 to index
    %c18_120 = arith.constant 18 : index
    %c0_121 = arith.constant 0 : index
    %160 = vector.load %arg2[%c0_119, %159, %c18_120, %c0_121] : memref<1x52x52x128xf32, #tpu.memory_space<vmem>>, vector<1x8x16x128xf32>
    %161 = vector.shape_cast %160 : vector<1x8x16x128xf32> to vector<8x16x128xf32>
    %162 = vector.shape_cast %161 : vector<8x16x128xf32> to vector<128x128xf32>
    %c7_122 = arith.constant 7 : index
    %c0_123 = arith.constant 0 : index
    %c0_124 = arith.constant 0 : index
    %163 = vector.load %arg5[%c7_122, %c0_123, %c0_124] : memref<9x128x32xf32, #tpu.memory_space<vmem>>, vector<1x128x32xf32>
    %164 = vector.shape_cast %163 : vector<1x128x32xf32> to vector<128x32xf32>
    %cst_125 = arith.constant dense<0.000000e+00> : vector<128x32xf32>
    %165 = tpu.matmul %162, %164, %cst_125 {dimension_numbers = #tpu.dot_dimension_numbers<[1], [0], [0], [1], [0, 0, 1, 1], [], []>} : vector<128x128xf32>, vector<128x32xf32>, vector<128x32xf32> -> vector<128x32xf32>
    %166 = arith.addf %157, %165 : vector<128x32xf32>
    %c30_i32_126 = arith.constant 30 : i32
    %167 = arith.addi %1, %c30_i32_126 : i32
    %c0_127 = arith.constant 0 : index
    %168 = arith.index_cast %167 : i32 to index
    %c30_128 = arith.constant 30 : index
    %c0_129 = arith.constant 0 : index
    %169 = vector.load %arg2[%c0_127, %168, %c30_128, %c0_129] : memref<1x52x52x128xf32, #tpu.memory_space<vmem>>, vector<1x8x16x128xf32>
    %170 = vector.shape_cast %169 : vector<1x8x16x128xf32> to vector<8x16x128xf32>
    %171 = vector.shape_cast %170 : vector<8x16x128xf32> to vector<128x128xf32>
    %c8_130 = arith.constant 8 : index
    %c0_131 = arith.constant 0 : index
    %c0_132 = arith.constant 0 : index
    %172 = vector.load %arg5[%c8_130, %c0_131, %c0_132] : memref<9x128x32xf32, #tpu.memory_space<vmem>>, vector<1x128x32xf32>
    %173 = vector.shape_cast %172 : vector<1x128x32xf32> to vector<128x32xf32>
    %cst_133 = arith.constant dense<0.000000e+00> : vector<128x32xf32>
    %174 = tpu.matmul %171, %173, %cst_133 {dimension_numbers = #tpu.dot_dimension_numbers<[1], [0], [0], [1], [0, 0, 1, 1], [], []>} : vector<128x128xf32>, vector<128x32xf32>, vector<128x32xf32> -> vector<128x32xf32>
    %175 = arith.addf %166, %174 : vector<128x32xf32>
    %c0_i32 = arith.constant 0 : i32
    %176 = arith.addi %1, %c0_i32 : i32
    %c0_134 = arith.constant 0 : index
    %177 = arith.index_cast %176 : i32 to index
    %c0_135 = arith.constant 0 : index
    %c0_136 = arith.constant 0 : index
    %178 = vector.load %arg2[%c0_134, %177, %c0_135, %c0_136] : memref<1x52x52x128xf32, #tpu.memory_space<vmem>>, vector<1x8x16x128xf32>
    %179 = vector.shape_cast %178 : vector<1x8x16x128xf32> to vector<8x16x128xf32>
    %180 = vector.shape_cast %179 : vector<8x16x128xf32> to vector<128x128xf32>
    %c0_137 = arith.constant 0 : index
    %c0_138 = arith.constant 0 : index
    %c0_139 = arith.constant 0 : index
    %181 = vector.load %arg6[%c0_137, %c0_138, %c0_139] : memref<9x128x32xf32, #tpu.memory_space<vmem>>, vector<1x128x32xf32>
    %182 = vector.shape_cast %181 : vector<1x128x32xf32> to vector<128x32xf32>
    %cst_140 = arith.constant dense<0.000000e+00> : vector<128x32xf32>
    %183 = tpu.matmul %180, %182, %cst_140 {dimension_numbers = #tpu.dot_dimension_numbers<[1], [0], [0], [1], [0, 0, 1, 1], [], []>} : vector<128x128xf32>, vector<128x32xf32>, vector<128x32xf32> -> vector<128x32xf32>
    %184 = arith.addf %175, %183 : vector<128x32xf32>
    %c0_i32_141 = arith.constant 0 : i32
    %185 = arith.addi %1, %c0_i32_141 : i32
    %c0_142 = arith.constant 0 : index
    %186 = arith.index_cast %185 : i32 to index
    %c18_143 = arith.constant 18 : index
    %c0_144 = arith.constant 0 : index
    %187 = vector.load %arg2[%c0_142, %186, %c18_143, %c0_144] : memref<1x52x52x128xf32, #tpu.memory_space<vmem>>, vector<1x8x16x128xf32>
    %188 = vector.shape_cast %187 : vector<1x8x16x128xf32> to vector<8x16x128xf32>
    %189 = vector.shape_cast %188 : vector<8x16x128xf32> to vector<128x128xf32>
    %c1_145 = arith.constant 1 : index
    %c0_146 = arith.constant 0 : index
    %c0_147 = arith.constant 0 : index
    %190 = vector.load %arg6[%c1_145, %c0_146, %c0_147] : memref<9x128x32xf32, #tpu.memory_space<vmem>>, vector<1x128x32xf32>
    %191 = vector.shape_cast %190 : vector<1x128x32xf32> to vector<128x32xf32>
    %cst_148 = arith.constant dense<0.000000e+00> : vector<128x32xf32>
    %192 = tpu.matmul %189, %191, %cst_148 {dimension_numbers = #tpu.dot_dimension_numbers<[1], [0], [0], [1], [0, 0, 1, 1], [], []>} : vector<128x128xf32>, vector<128x32xf32>, vector<128x32xf32> -> vector<128x32xf32>
    %193 = arith.addf %184, %192 : vector<128x32xf32>
    %c0_i32_149 = arith.constant 0 : i32
    %194 = arith.addi %1, %c0_i32_149 : i32
    %c0_150 = arith.constant 0 : index
    %195 = arith.index_cast %194 : i32 to index
    %c36 = arith.constant 36 : index
    %c0_151 = arith.constant 0 : index
    %196 = vector.load %arg2[%c0_150, %195, %c36, %c0_151] : memref<1x52x52x128xf32, #tpu.memory_space<vmem>>, vector<1x8x16x128xf32>
    %197 = vector.shape_cast %196 : vector<1x8x16x128xf32> to vector<8x16x128xf32>
    %198 = vector.shape_cast %197 : vector<8x16x128xf32> to vector<128x128xf32>
    %c2_152 = arith.constant 2 : index
    %c0_153 = arith.constant 0 : index
    %c0_154 = arith.constant 0 : index
    %199 = vector.load %arg6[%c2_152, %c0_153, %c0_154] : memref<9x128x32xf32, #tpu.memory_space<vmem>>, vector<1x128x32xf32>
    %200 = vector.shape_cast %199 : vector<1x128x32xf32> to vector<128x32xf32>
    %cst_155 = arith.constant dense<0.000000e+00> : vector<128x32xf32>
    %201 = tpu.matmul %198, %200, %cst_155 {dimension_numbers = #tpu.dot_dimension_numbers<[1], [0], [0], [1], [0, 0, 1, 1], [], []>} : vector<128x128xf32>, vector<128x32xf32>, vector<128x32xf32> -> vector<128x32xf32>
    %202 = arith.addf %193, %201 : vector<128x32xf32>
    %c18_i32_156 = arith.constant 18 : i32
    %203 = arith.addi %1, %c18_i32_156 : i32
    %c0_157 = arith.constant 0 : index
    %204 = arith.index_cast %203 : i32 to index
    %c0_158 = arith.constant 0 : index
    %c0_159 = arith.constant 0 : index
    %205 = vector.load %arg2[%c0_157, %204, %c0_158, %c0_159] : memref<1x52x52x128xf32, #tpu.memory_space<vmem>>, vector<1x8x16x128xf32>
    %206 = vector.shape_cast %205 : vector<1x8x16x128xf32> to vector<8x16x128xf32>
    %207 = vector.shape_cast %206 : vector<8x16x128xf32> to vector<128x128xf32>
    %c3_160 = arith.constant 3 : index
    %c0_161 = arith.constant 0 : index
    %c0_162 = arith.constant 0 : index
    %208 = vector.load %arg6[%c3_160, %c0_161, %c0_162] : memref<9x128x32xf32, #tpu.memory_space<vmem>>, vector<1x128x32xf32>
    %209 = vector.shape_cast %208 : vector<1x128x32xf32> to vector<128x32xf32>
    %cst_163 = arith.constant dense<0.000000e+00> : vector<128x32xf32>
    %210 = tpu.matmul %207, %209, %cst_163 {dimension_numbers = #tpu.dot_dimension_numbers<[1], [0], [0], [1], [0, 0, 1, 1], [], []>} : vector<128x128xf32>, vector<128x32xf32>, vector<128x32xf32> -> vector<128x32xf32>
    %211 = arith.addf %202, %210 : vector<128x32xf32>
    %c18_i32_164 = arith.constant 18 : i32
    %212 = arith.addi %1, %c18_i32_164 : i32
    %c0_165 = arith.constant 0 : index
    %213 = arith.index_cast %212 : i32 to index
    %c18_166 = arith.constant 18 : index
    %c0_167 = arith.constant 0 : index
    %214 = vector.load %arg2[%c0_165, %213, %c18_166, %c0_167] : memref<1x52x52x128xf32, #tpu.memory_space<vmem>>, vector<1x8x16x128xf32>
    %215 = vector.shape_cast %214 : vector<1x8x16x128xf32> to vector<8x16x128xf32>
    %216 = vector.shape_cast %215 : vector<8x16x128xf32> to vector<128x128xf32>
    %c4_168 = arith.constant 4 : index
    %c0_169 = arith.constant 0 : index
    %c0_170 = arith.constant 0 : index
    %217 = vector.load %arg6[%c4_168, %c0_169, %c0_170] : memref<9x128x32xf32, #tpu.memory_space<vmem>>, vector<1x128x32xf32>
    %218 = vector.shape_cast %217 : vector<1x128x32xf32> to vector<128x32xf32>
    %cst_171 = arith.constant dense<0.000000e+00> : vector<128x32xf32>
    %219 = tpu.matmul %216, %218, %cst_171 {dimension_numbers = #tpu.dot_dimension_numbers<[1], [0], [0], [1], [0, 0, 1, 1], [], []>} : vector<128x128xf32>, vector<128x32xf32>, vector<128x32xf32> -> vector<128x32xf32>
    %220 = arith.addf %211, %219 : vector<128x32xf32>
    %c18_i32_172 = arith.constant 18 : i32
    %221 = arith.addi %1, %c18_i32_172 : i32
    %c0_173 = arith.constant 0 : index
    %222 = arith.index_cast %221 : i32 to index
    %c36_174 = arith.constant 36 : index
    %c0_175 = arith.constant 0 : index
    %223 = vector.load %arg2[%c0_173, %222, %c36_174, %c0_175] : memref<1x52x52x128xf32, #tpu.memory_space<vmem>>, vector<1x8x16x128xf32>
    %224 = vector.shape_cast %223 : vector<1x8x16x128xf32> to vector<8x16x128xf32>
    %225 = vector.shape_cast %224 : vector<8x16x128xf32> to vector<128x128xf32>
    %c5_176 = arith.constant 5 : index
    %c0_177 = arith.constant 0 : index
    %c0_178 = arith.constant 0 : index
    %226 = vector.load %arg6[%c5_176, %c0_177, %c0_178] : memref<9x128x32xf32, #tpu.memory_space<vmem>>, vector<1x128x32xf32>
    %227 = vector.shape_cast %226 : vector<1x128x32xf32> to vector<128x32xf32>
    %cst_179 = arith.constant dense<0.000000e+00> : vector<128x32xf32>
    %228 = tpu.matmul %225, %227, %cst_179 {dimension_numbers = #tpu.dot_dimension_numbers<[1], [0], [0], [1], [0, 0, 1, 1], [], []>} : vector<128x128xf32>, vector<128x32xf32>, vector<128x32xf32> -> vector<128x32xf32>
    %229 = arith.addf %220, %228 : vector<128x32xf32>
    %c36_i32 = arith.constant 36 : i32
    %230 = arith.addi %1, %c36_i32 : i32
    %c0_180 = arith.constant 0 : index
    %231 = arith.index_cast %230 : i32 to index
    %c0_181 = arith.constant 0 : index
    %c0_182 = arith.constant 0 : index
    %232 = vector.load %arg2[%c0_180, %231, %c0_181, %c0_182] : memref<1x52x52x128xf32, #tpu.memory_space<vmem>>, vector<1x8x16x128xf32>
    %233 = vector.shape_cast %232 : vector<1x8x16x128xf32> to vector<8x16x128xf32>
    %234 = vector.shape_cast %233 : vector<8x16x128xf32> to vector<128x128xf32>
    %c6_183 = arith.constant 6 : index
    %c0_184 = arith.constant 0 : index
    %c0_185 = arith.constant 0 : index
    %235 = vector.load %arg6[%c6_183, %c0_184, %c0_185] : memref<9x128x32xf32, #tpu.memory_space<vmem>>, vector<1x128x32xf32>
    %236 = vector.shape_cast %235 : vector<1x128x32xf32> to vector<128x32xf32>
    %cst_186 = arith.constant dense<0.000000e+00> : vector<128x32xf32>
    %237 = tpu.matmul %234, %236, %cst_186 {dimension_numbers = #tpu.dot_dimension_numbers<[1], [0], [0], [1], [0, 0, 1, 1], [], []>} : vector<128x128xf32>, vector<128x32xf32>, vector<128x32xf32> -> vector<128x32xf32>
    %238 = arith.addf %229, %237 : vector<128x32xf32>
    %c36_i32_187 = arith.constant 36 : i32
    %239 = arith.addi %1, %c36_i32_187 : i32
    %c0_188 = arith.constant 0 : index
    %240 = arith.index_cast %239 : i32 to index
    %c18_189 = arith.constant 18 : index
    %c0_190 = arith.constant 0 : index
    %241 = vector.load %arg2[%c0_188, %240, %c18_189, %c0_190] : memref<1x52x52x128xf32, #tpu.memory_space<vmem>>, vector<1x8x16x128xf32>
    %242 = vector.shape_cast %241 : vector<1x8x16x128xf32> to vector<8x16x128xf32>
    %243 = vector.shape_cast %242 : vector<8x16x128xf32> to vector<128x128xf32>
    %c7_191 = arith.constant 7 : index
    %c0_192 = arith.constant 0 : index
    %c0_193 = arith.constant 0 : index
    %244 = vector.load %arg6[%c7_191, %c0_192, %c0_193] : memref<9x128x32xf32, #tpu.memory_space<vmem>>, vector<1x128x32xf32>
    %245 = vector.shape_cast %244 : vector<1x128x32xf32> to vector<128x32xf32>
    %cst_194 = arith.constant dense<0.000000e+00> : vector<128x32xf32>
    %246 = tpu.matmul %243, %245, %cst_194 {dimension_numbers = #tpu.dot_dimension_numbers<[1], [0], [0], [1], [0, 0, 1, 1], [], []>} : vector<128x128xf32>, vector<128x32xf32>, vector<128x32xf32> -> vector<128x32xf32>
    %247 = arith.addf %238, %246 : vector<128x32xf32>
    %c36_i32_195 = arith.constant 36 : i32
    %248 = arith.addi %1, %c36_i32_195 : i32
    %c0_196 = arith.constant 0 : index
    %249 = arith.index_cast %248 : i32 to index
    %c36_197 = arith.constant 36 : index
    %c0_198 = arith.constant 0 : index
    %250 = vector.load %arg2[%c0_196, %249, %c36_197, %c0_198] : memref<1x52x52x128xf32, #tpu.memory_space<vmem>>, vector<1x8x16x128xf32>
    %251 = vector.shape_cast %250 : vector<1x8x16x128xf32> to vector<8x16x128xf32>
    %252 = vector.shape_cast %251 : vector<8x16x128xf32> to vector<128x128xf32>
    %c8_199 = arith.constant 8 : index
    %c0_200 = arith.constant 0 : index
    %c0_201 = arith.constant 0 : index
    %253 = vector.load %arg6[%c8_199, %c0_200, %c0_201] : memref<9x128x32xf32, #tpu.memory_space<vmem>>, vector<1x128x32xf32>
    %254 = vector.shape_cast %253 : vector<1x128x32xf32> to vector<128x32xf32>
    %cst_202 = arith.constant dense<0.000000e+00> : vector<128x32xf32>
    %255 = tpu.matmul %252, %254, %cst_202 {dimension_numbers = #tpu.dot_dimension_numbers<[1], [0], [0], [1], [0, 0, 1, 1], [], []>} : vector<128x128xf32>, vector<128x32xf32>, vector<128x32xf32> -> vector<128x32xf32>
    %256 = arith.addf %247, %255 : vector<128x32xf32>
    %c0_i32_203 = arith.constant 0 : i32
    %257 = arith.cmpi eq, %arg1, %c0_i32_203 : i32
    %258 = arith.extui %257 : i1 to i32
    %c0_i32_204 = arith.constant 0 : i32
    %259 = arith.cmpi ne, %258, %c0_i32_204 : i32
    scf.if %259 {
      %cst_228 = arith.constant 0.000000e+00 : f32
      %287 = vector.broadcast %cst_228 : f32 to vector<1x1x32xf32>
      %c0_229 = arith.constant 0 : index
      %c0_230 = arith.constant 0 : index
      %c0_231 = arith.constant 0 : index
      %288 = vector.load %arg11[%c0_229, %c0_230, %c0_231] : memref<1x1x32xf32, #tpu.memory_space<vmem>>, vector<1x1x32xf32>
      tpu.vector_store %arg11[%c0_229, %c0_230, %c0_231], %287 {strides = array<i32>} : memref<1x1x32xf32, #tpu.memory_space<vmem>>, vector<1x1x32xf32>,
      %cst_232 = arith.constant 0.000000e+00 : f32
      %289 = vector.broadcast %cst_232 : f32 to vector<1x1x32xf32>
      %c0_233 = arith.constant 0 : index
      %c0_234 = arith.constant 0 : index
      %c0_235 = arith.constant 0 : index
      %290 = vector.load %arg12[%c0_233, %c0_234, %c0_235] : memref<1x1x32xf32, #tpu.memory_space<vmem>>, vector<1x1x32xf32>
      tpu.vector_store %arg12[%c0_233, %c0_234, %c0_235], %289 {strides = array<i32>} : memref<1x1x32xf32, #tpu.memory_space<vmem>>, vector<1x1x32xf32>,
    } else {
    }
    %c0_205 = arith.constant 0 : index
    %c0_206 = arith.constant 0 : index
    %c0_207 = arith.constant 0 : index
    %260 = vector.load %arg11[%c0_205, %c0_206, %c0_207] : memref<1x1x32xf32, #tpu.memory_space<vmem>>, vector<1x1x32xf32>
    %261 = vector.shape_cast %260 : vector<1x1x32xf32> to vector<1x32xf32>
    %cst_208 = arith.constant dense<0.000000e+00> : vector<32xf32>
    %262 = vector.multi_reduction <add>, %256, %cst_208 [0] : vector<128x32xf32> to vector<32xf32>
    %263 = vector.shape_cast %262 : vector<32xf32> to vector<1x32xf32>
    %264 = arith.addf %261, %263 : vector<1x32xf32>
    %c0_209 = arith.constant 0 : index
    %c0_210 = arith.constant 0 : index
    %c0_211 = arith.constant 0 : index
    %265 = vector.load %arg11[%c0_209, %c0_210, %c0_211] : memref<1x1x32xf32, #tpu.memory_space<vmem>>, vector<1x1x32xf32>
    %266 = vector.shape_cast %265 : vector<1x1x32xf32> to vector<1x32xf32>
    %267 = vector.shape_cast %264 : vector<1x32xf32> to vector<1x1x32xf32>
    tpu.vector_store %arg11[%c0_209, %c0_210, %c0_211], %267 {strides = array<i32>} : memref<1x1x32xf32, #tpu.memory_space<vmem>>, vector<1x1x32xf32>,
    %c0_212 = arith.constant 0 : index
    %c0_213 = arith.constant 0 : index
    %c0_214 = arith.constant 0 : index
    %268 = vector.load %arg12[%c0_212, %c0_213, %c0_214] : memref<1x1x32xf32, #tpu.memory_space<vmem>>, vector<1x1x32xf32>
    %269 = vector.shape_cast %268 : vector<1x1x32xf32> to vector<1x32xf32>
    %270 = arith.mulf %256, %256 : vector<128x32xf32>
    %cst_215 = arith.constant dense<0.000000e+00> : vector<32xf32>
    %271 = vector.multi_reduction <add>, %270, %cst_215 [0] : vector<128x32xf32> to vector<32xf32>
    %272 = vector.shape_cast %271 : vector<32xf32> to vector<1x32xf32>
    %273 = arith.addf %269, %272 : vector<1x32xf32>
    %c0_216 = arith.constant 0 : index
    %c0_217 = arith.constant 0 : index
    %c0_218 = arith.constant 0 : index
    %274 = vector.load %arg12[%c0_216, %c0_217, %c0_218] : memref<1x1x32xf32, #tpu.memory_space<vmem>>, vector<1x1x32xf32>
    %275 = vector.shape_cast %274 : vector<1x1x32xf32> to vector<1x32xf32>
    %276 = vector.shape_cast %273 : vector<1x32xf32> to vector<1x1x32xf32>
    tpu.vector_store %arg12[%c0_216, %c0_217, %c0_218], %276 {strides = array<i32>} : memref<1x1x32xf32, #tpu.memory_space<vmem>>, vector<1x1x32xf32>,
    %c0_219 = arith.constant 0 : index
    %c0_220 = arith.constant 0 : index
    %c0_221 = arith.constant 0 : index
    %277 = vector.load %arg7[%c0_219, %c0_220, %c0_221] : memref<1x1x32xf32, #tpu.memory_space<vmem>>, vector<1x1x32xf32>
    %278 = vector.shape_cast %277 : vector<1x1x32xf32> to vector<1x32xf32>
    %279 = vector.broadcast %278 : vector<1x32xf32> to vector<128x32xf32>
    %280 = arith.addf %256, %279 : vector<128x32xf32>
    %c0_222 = arith.constant 0 : index
    %c0_223 = arith.constant 0 : index
    %c0_224 = arith.constant 0 : index
    %281 = vector.load %arg9[%c0_222, %c0_223, %c0_224] : memref<1x128x32xf32, #tpu.memory_space<vmem>>, vector<1x128x32xf32>
    %282 = vector.shape_cast %281 : vector<1x128x32xf32> to vector<128x32xf32>
    %283 = vector.shape_cast %280 : vector<128x32xf32> to vector<1x128x32xf32>
    tpu.vector_store %arg9[%c0_222, %c0_223, %c0_224], %283 {strides = array<i32>} : memref<1x128x32xf32, #tpu.memory_space<vmem>>, vector<1x128x32xf32>,
    %c0_225 = arith.constant 0 : index
    %c0_226 = arith.constant 0 : index
    %c0_227 = arith.constant 0 : index
    %284 = vector.load %arg10[%c0_225, %c0_226, %c0_227] : memref<1x128x32xf32, #tpu.memory_space<vmem>>, vector<1x128x32xf32>
    %285 = vector.shape_cast %284 : vector<1x128x32xf32> to vector<128x32xf32>
    %286 = vector.shape_cast %13 : vector<128x32xf32> to vector<1x128x32xf32>
    tpu.vector_store %arg10[%c0_225, %c0_226, %c0_227], %286 {strides = array<i32>} : memref<1x128x32xf32, #tpu.memory_space<vmem>>, vector<1x128x32xf32>,
    return
  }
  func.func @transform_0(%arg0: i32, %arg1: i32) -> (i32, i32, i32, i32) {
    %c0_i32 = arith.constant 0 : i32
    %c0_i32_0 = arith.constant 0 : i32
    %c0_i32_1 = arith.constant 0 : i32
    %c0_i32_2 = arith.constant 0 : i32
    return %arg0, %c0_i32, %c0_i32_0, %c0_i32_1 : i32, i32, i32, i32
  }
  func.func @transform_1(%arg0: i32, %arg1: i32) -> (i32, i32) {
    %c0_i32 = arith.constant 0 : i32
    %c0_i32_0 = arith.constant 0 : i32
    %c0_i32_1 = arith.constant 0 : i32
    return %c0_i32, %c0_i32_0 : i32, i32
  }
  func.func @transform_2(%arg0: i32, %arg1: i32) -> (i32, i32, i32) {
    %c0_i32 = arith.constant 0 : i32
    %c0_i32_0 = arith.constant 0 : i32
    %c0_i32_1 = arith.constant 0 : i32
    %c0_i32_2 = arith.constant 0 : i32
    return %c0_i32, %c0_i32_0, %c0_i32_1 : i32, i32, i32
  }
  func.func @transform_3(%arg0: i32, %arg1: i32) -> (i32, i32, i32) {
    %c0_i32 = arith.constant 0 : i32
    %c0_i32_0 = arith.constant 0 : i32
    %c0_i32_1 = arith.constant 0 : i32
    %c0_i32_2 = arith.constant 0 : i32
    return %c0_i32, %c0_i32_0, %c0_i32_1 : i32, i32, i32
  }
  func.func @transform_4(%arg0: i32, %arg1: i32) -> (i32, i32, i32) {
    %c0_i32 = arith.constant 0 : i32
    %c0_i32_0 = arith.constant 0 : i32
    %c0_i32_1 = arith.constant 0 : i32
    %c0_i32_2 = arith.constant 0 : i32
    return %c0_i32, %c0_i32_0, %c0_i32_1 : i32, i32, i32
  }
  func.func @transform_5(%arg0: i32, %arg1: i32) -> (i32, i32, i32) {
    %c0_i32 = arith.constant 0 : i32
    %c0_i32_0 = arith.constant 0 : i32
    %c0_i32_1 = arith.constant 0 : i32
    return %arg0, %c0_i32, %c0_i32_0 : i32, i32, i32
  }
  func.func @transform_6(%arg0: i32, %arg1: i32) -> (i32, i32) {
    %c0_i32 = arith.constant 0 : i32
    %c0_i32_0 = arith.constant 0 : i32
    %c0_i32_1 = arith.constant 0 : i32
    return %c0_i32, %c0_i32_0 : i32, i32
  }
  func.func @transform_7(%arg0: i32, %arg1: i32) -> (i32, i32, i32) {
    %c0_i32 = arith.constant 0 : i32
    %c0_i32_0 = arith.constant 0 : i32
    return %arg0, %arg1, %c0_i32 : i32, i32, i32
  }
  func.func @transform_8(%arg0: i32, %arg1: i32) -> (i32, i32, i32) {
    %c0_i32 = arith.constant 0 : i32
    %c0_i32_0 = arith.constant 0 : i32
    return %arg0, %arg1, %c0_i32 : i32, i32, i32
  }
  func.func @transform_9(%arg0: i32, %arg1: i32) -> (i32, i32, i32) {
    %c0_i32 = arith.constant 0 : i32
    %c0_i32_0 = arith.constant 0 : i32
    %c0_i32_1 = arith.constant 0 : i32
    return %arg0, %c0_i32, %c0_i32_0 : i32, i32, i32
  }
  func.func @transform_10(%arg0: i32, %arg1: i32) -> (i32, i32, i32) {
    %c0_i32 = arith.constant 0 : i32
    %c0_i32_0 = arith.constant 0 : i32
    %c0_i32_1 = arith.constant 0 : i32
    return %arg0, %c0_i32, %c0_i32_0 : i32, i32, i32
  }
}

</mosaic_0001>

<llo_original>
// kernel: tpu_custom_call.1
$region0: #{tpu_custom_call.1}
  #allocation0 [shape = 'u32[]', space=smem, size = 0x4, offset = 0x4, fixed_abs, tag = 'smem constant byte address 0x4 - core index']
  #allocation1 [shape = 'u32[72,128]{1,0:T(1,128)}', space=vmem, size = 0x9000, scoped, tag = 'internal scratch']
  %s0 = inlined_call_operand.vmem [shape: f32[2,52,52,128], index: 0, kind: input, shape index: {}]
  %s1 = inlined_call_operand.vmem [shape: f32[128,64], index: 1, kind: input, shape index: {}]
  %s2 = inlined_call_operand.vmem [shape: f32[9,128,32], index: 2, kind: input, shape index: {}]
  %s3 = inlined_call_operand.vmem [shape: f32[9,128,32], index: 3, kind: input, shape index: {}]
  %s4 = inlined_call_operand.vmem [shape: f32[9,128,32], index: 4, kind: input, shape index: {}]
  %s5 = inlined_call_operand.vmem [shape: f32[2,1,32], index: 5, kind: input, shape index: {}]
  %s6 = inlined_call_operand.vmem [shape: f32[1,32], index: 6, kind: input, shape index: {}]
  %s7 = inlined_call_operand.vmem [shape: f32[2,256,32], index: 7, kind: output, shape index: {0}]
  %s8 = inlined_call_operand.vmem [shape: f32[2,256,32], index: 8, kind: output, shape index: {1}]
  %s9 = inlined_call_operand.hbm [shape: f32[2,1,32], index: 9, kind: output, shape index: {2}]
  %s10 = inlined_call_operand.hbm [shape: f32[2,1,32], index: 10, kind: output, shape index: {3}]
  %11 = xla_tuple %s7, %s8, %s9, %s10
  %s12 = sld [smem:[#allocation0]]
  $region89: #{tpu_custom_call.1} parent=0
    _
  %s14 = ssub.s32 1, %s12
  %s15 = scalar_select 0, %s14, %s12
  $region1: #{tpu_custom_call.1} parent=0
    #allocation2 [shape = 'u8[1024]{0}', space=vmem, size = 0x400, scoped, tag = 'output window, operand 2']
    #allocation3 [shape = 's32[2]{0}', space=sflag, size = 0x8, scoped, tag = 'scoped memory for tpu_custom_call.1']
    #allocation4 [shape = 'u8[1024]{0}', space=vmem, size = 0x400, scoped, tag = 'output window, operand 3']
    #allocation5 [shape = 's32[2]{0}', space=sflag, size = 0x8, scoped, tag = 'scoped memory for tpu_custom_call.1']
    %16 = vsyncpa [#allocation3], 0
    %s17 = scalar_lea.sflag [#allocation3], 1
    %18 = vsyncpa %s17, 0
    %19 = vsyncpa [#allocation5], 0
    %s20 = scalar_lea.sflag [#allocation5], 1
    %21 = vsyncpa %s20, 0
    loop: start=0, step=1, limit=6
    $region2: #{tpu_custom_call.1} parent=1 // loop_pre_header
      _
    $region3: #{tpu_custom_call.1} parent=1 // loop_header
      %s23 = sphi 0, %s27
      %p24 = scmp.ge.s32.totalorder %s23, 6
      %s30 = sphi 0, %s42
      %s31 = sphi 0, %s38
      %s32 = sphi 0, %s30
      %s33 = sphi 0, %s31
      %s34 = sphi 0, %s32
      %s35 = sphi 0, %s33
      %s45 = sphi 0, %s47
      %s48 = sphi 0, %s45
      %s49 = sphi 0, %s48
      %s65 = sphi 0, %s49
      %s69 = sphi 0, %s69
      %s71 = sphi 0, %s69
      %s72 = sphi 0, %s71
      %s86 = sphi 0, %s72
      %s90 = sphi 0, %s90
      %s92 = sphi 0, %s90
      %s93 = sphi 0, %s92
      %s107 = sphi 0, %s93
      %s111 = sphi 0, %s111
      %s113 = sphi 0, %s111
      %s114 = sphi 0, %s113
      %s128 = sphi 0, %s114
      %s132 = sphi 0, %s132
      %s134 = sphi 0, %s132
      %s135 = sphi 0, %s134
      %s149 = sphi 0, %s135
      %s155 = sphi 0, %s157
      %s158 = sphi 0, %s155
      %s159 = sphi 0, %s158
      %s175 = sphi 0, %s159
      %s179 = sphi 0, %s179
      %s181 = sphi 0, %s179
      %s182 = sphi 0, %s181
      %s196 = sphi 0, %s182
      %s204 = sphi 0, %s206
      %s207 = sphi 0, %s204
      %s208 = sphi 0, %s207
      %s224 = sphi 0, %s208
      %s232 = sphi 0, %s234
      %s235 = sphi 0, %s232
      %s236 = sphi 0, %s235
      %s252 = sphi 0, %s236
      %s258 = sphi 0, %s260
      %s261 = sphi 0, %s258
      %s262 = sphi 0, %s261
      %s278 = sphi 0, %s262
      %s284 = sphi 0, %s286
      %s287 = sphi 0, %s284
      %s288 = sphi 0, %s287
      %s304 = sphi 0, %s288
    $region4: #{tpu_custom_call.1} parent=1 // loop_header_branch
      %26 = sbr.rel (%p24) target = $region8
    $region5: #{tpu_custom_call.1} parent=1 // loop_body
      %s28 = ssub.s32 %s23, 1
      %s29 = ssub.s32 %s23, 2
      %s36 = sadd.s32 1, %s31
      %p37 = scmp.ge.s32.totalorder %s36, 2
      %s38 = scalar_select %p37, 0, %s36
      %s39 = sadd.s32 1, %s30
      %s40 = scalar_select %p37, %s39, %s30
      %p41 = scmp.ge.s32.totalorder %s40, 2
      %s42 = scalar_select %p41, 0, %s40
      %s43 = ssub.s32 %s30, %s42
      %p44 = scmp.eq.s32.totalorder %s43, 0
      %s46 = sadd.s32 %s45, 1
      %s47 = scalar_select %p44, %s45, %s46
      %p50 = pneg %p44
      %p51 = scmp.eq.s32.totalorder %s23, 3
      %p52 = por %p50, %p51
      %p53 = scmp.ne.s32.totalorder %s45, %s48
      %p54 = scmp.eq.s32.totalorder %s23, 0
      %p55 = por %p53, %p54
      %p56 = scmp.ne.s32.totalorder %s45, %s48
      %p57 = scmp.eq.s32.totalorder %s28, 3
      %p58 = por %p56, %p57
      %p59 = scmp.ne.s32.totalorder %s48, %s49
      %p60 = scmp.eq.s32.totalorder %s28, 0
      %p61 = por %p59, %p60
      %p62 = scmp.ne.s32.totalorder %s48, %s49
      %p63 = scmp.eq.s32.totalorder %s29, 3
      %p64 = por %p62, %p63
      %p66 = scmp.ne.s32.totalorder %s49, %s65
      %p67 = scmp.eq.s32.totalorder %s29, 0
      %p68 = por %p66, %p67
      %s70 = sadd.s32 %s69, 1
      %p73 = scmp.eq.s32.totalorder %s23, 3
      %p74 = scmp.ne.s32.totalorder %s69, %s71
      %p75 = scmp.eq.s32.totalorder %s23, 0
      %p76 = por %p74, %p75
      %p77 = scmp.ne.s32.totalorder %s69, %s71
      %p78 = scmp.eq.s32.totalorder %s28, 3
      %p79 = por %p77, %p78
      %p80 = scmp.ne.s32.totalorder %s71, %s72
      %p81 = scmp.eq.s32.totalorder %s28, 0
      %p82 = por %p80, %p81
      %p83 = scmp.ne.s32.totalorder %s71, %s72
      %p84 = scmp.eq.s32.totalorder %s29, 3
      %p85 = por %p83, %p84
      %p87 = scmp.ne.s32.totalorder %s72, %s86
      %p88 = scmp.eq.s32.totalorder %s29, 0
      %p89 = por %p87, %p88
      %s91 = sadd.s32 %s90, 1
      %p94 = scmp.eq.s32.totalorder %s23, 3
      %p95 = scmp.ne.s32.totalorder %s90, %s92
      %p96 = scmp.eq.s32.totalorder %s23, 0
      %p97 = por %p95, %p96
      %p98 = scmp.ne.s32.totalorder %s90, %s92
      %p99 = scmp.eq.s32.totalorder %s28, 3
      %p100 = por %p98, %p99
      %p101 = scmp.ne.s32.totalorder %s92, %s93
      %p102 = scmp.eq.s32.totalorder %s28, 0
      %p103 = por %p101, %p102
      %p104 = scmp.ne.s32.totalorder %s92, %s93
      %p105 = scmp.eq.s32.totalorder %s29, 3
      %p106 = por %p104, %p105
      %p108 = scmp.ne.s32.totalorder %s93, %s107
      %p109 = scmp.eq.s32.totalorder %s29, 0
      %p110 = por %p108, %p109
      %s112 = sadd.s32 %s111, 1
      %p115 = scmp.eq.s32.totalorder %s23, 3
      %p116 = scmp.ne.s32.totalorder %s111, %s113
      %p117 = scmp.eq.s32.totalorder %s23, 0
      %p118 = por %p116, %p117
      %p119 = scmp.ne.s32.totalorder %s111, %s113
      %p120 = scmp.eq.s32.totalorder %s28, 3
      %p121 = por %p119, %p120
      %p122 = scmp.ne.s32.totalorder %s113, %s114
      %p123 = scmp.eq.s32.totalorder %s28, 0
      %p124 = por %p122, %p123
      %p125 = scmp.ne.s32.totalorder %s113, %s114
      %p126 = scmp.eq.s32.totalorder %s29, 3
      %p127 = por %p125, %p126
      %p129 = scmp.ne.s32.totalorder %s114, %s128
      %p130 = scmp.eq.s32.totalorder %s29, 0
      %p131 = por %p129, %p130
      %s133 = sadd.s32 %s132, 1
      %p136 = scmp.eq.s32.totalorder %s23, 3
      %p137 = scmp.ne.s32.totalorder %s132, %s134
      %p138 = scmp.eq.s32.totalorder %s23, 0
      %p139 = por %p137, %p138
      %p140 = scmp.ne.s32.totalorder %s132, %s134
      %p141 = scmp.eq.s32.totalorder %s28, 3
      %p142 = por %p140, %p141
      %p143 = scmp.ne.s32.totalorder %s134, %s135
      %p144 = scmp.eq.s32.totalorder %s28, 0
      %p145 = por %p143, %p144
      %p146 = scmp.ne.s32.totalorder %s134, %s135
      %p147 = scmp.eq.s32.totalorder %s29, 3
      %p148 = por %p146, %p147
      %p150 = scmp.ne.s32.totalorder %s135, %s149
      %p151 = scmp.eq.s32.totalorder %s29, 0
      %p152 = por %p150, %p151
      %s153 = ssub.s32 %s30, %s42
      %p154 = scmp.eq.s32.totalorder %s153, 0
      %s156 = sadd.s32 %s155, 1
      %s157 = scalar_select %p154, %s155, %s156
      %p160 = pneg %p154
      %p161 = scmp.eq.s32.totalorder %s23, 3
      %p162 = por %p160, %p161
      %p163 = scmp.ne.s32.totalorder %s155, %s158
      %p164 = scmp.eq.s32.totalorder %s23, 0
      %p165 = por %p163, %p164
      %p166 = scmp.ne.s32.totalorder %s155, %s158
      %p167 = scmp.eq.s32.totalorder %s28, 3
      %p168 = por %p166, %p167
      %p169 = scmp.ne.s32.totalorder %s158, %s159
      %p170 = scmp.eq.s32.totalorder %s28, 0
      %p171 = por %p169, %p170
      %p172 = scmp.ne.s32.totalorder %s158, %s159
      %p173 = scmp.eq.s32.totalorder %s29, 3
      %p174 = por %p172, %p173
      %p176 = scmp.ne.s32.totalorder %s159, %s175
      %p177 = scmp.eq.s32.totalorder %s29, 0
      %p178 = por %p176, %p177
      %s180 = sadd.s32 %s179, 1
      %p183 = scmp.eq.s32.totalorder %s23, 3
      %p184 = scmp.ne.s32.totalorder %s179, %s181
      %p185 = scmp.eq.s32.totalorder %s23, 0
      %p186 = por %p184, %p185
      %p187 = scmp.ne.s32.totalorder %s179, %s181
      %p188 = scmp.eq.s32.totalorder %s28, 3
      %p189 = por %p187, %p188
      %p190 = scmp.ne.s32.totalorder %s181, %s182
      %p191 = scmp.eq.s32.totalorder %s28, 0
      %p192 = por %p190, %p191
      %p193 = scmp.ne.s32.totalorder %s181, %s182
      %p194 = scmp.eq.s32.totalorder %s29, 3
      %p195 = por %p193, %p194
      %p197 = scmp.ne.s32.totalorder %s182, %s196
      %p198 = scmp.eq.s32.totalorder %s29, 0
      %p199 = por %p197, %p198
      %s200 = ssub.s32 %s30, %s42
      %s201 = ssub.s32 %s31, %s38
      %s202 = sor.u32 %s200, %s201
      %p203 = scmp.eq.s32.totalorder %s202, 0
      %s205 = sadd.s32 %s204, 1
      %s206 = scalar_select %p203, %s204, %s205
      %p209 = pneg %p203
      %p210 = scmp.eq.s32.totalorder %s23, 3
      %p211 = por %p209, %p210
      %p212 = scmp.ne.s32.totalorder %s204, %s207
      %p213 = scmp.eq.s32.totalorder %s23, 0
      %p214 = por %p212, %p213
      %p215 = scmp.ne.s32.totalorder %s204, %s207
      %p216 = scmp.eq.s32.totalorder %s28, 3
      %p217 = por %p215, %p216
      %p218 = scmp.ne.s32.totalorder %s207, %s208
      %p219 = scmp.eq.s32.totalorder %s28, 0
      %p220 = por %p218, %p219
      %p221 = scmp.ne.s32.totalorder %s207, %s208
      %p222 = scmp.eq.s32.totalorder %s29, 3
      %p223 = por %p221, %p222
      %p225 = scmp.ne.s32.totalorder %s208, %s224
      %p226 = scmp.eq.s32.totalorder %s29, 0
      %p227 = por %p225, %p226
      %s228 = ssub.s32 %s30, %s42
      %s229 = ssub.s32 %s31, %s38
      %s230 = sor.u32 %s228, %s229
      %p231 = scmp.eq.s32.totalorder %s230, 0
      %s233 = sadd.s32 %s232, 1
      %s234 = scalar_select %p231, %s232, %s233
      %p237 = pneg %p231
      %p238 = scmp.eq.s32.totalorder %s23, 3
      %p239 = por %p237, %p238
      %p240 = scmp.ne.s32.totalorder %s232, %s235
      %p241 = scmp.eq.s32.totalorder %s23, 0
      %p242 = por %p240, %p241
      %p243 = scmp.ne.s32.totalorder %s232, %s235
      %p244 = scmp.eq.s32.totalorder %s28, 3
      %p245 = por %p243, %p244
      %p246 = scmp.ne.s32.totalorder %s235, %s236
      %p247 = scmp.eq.s32.totalorder %s28, 0
      %p248 = por %p246, %p247
      %p249 = scmp.ne.s32.totalorder %s235, %s236
      %p250 = scmp.eq.s32.totalorder %s29, 3
      %p251 = por %p249, %p250
      %p253 = scmp.ne.s32.totalorder %s236, %s252
      %p254 = scmp.eq.s32.totalorder %s29, 0
      %p255 = por %p253, %p254
      %s256 = ssub.s32 %s30, %s42
      %p257 = scmp.eq.s32.totalorder %s256, 0
      %s259 = sadd.s32 %s258, 1
      %s260 = scalar_select %p257, %s258, %s259
      %p263 = pneg %p257
      %p264 = scmp.eq.s32.totalorder %s23, 3
      %p265 = por %p263, %p264
      %p266 = scmp.ne.s32.totalorder %s258, %s261
      %p267 = scmp.eq.s32.totalorder %s23, 0
      %p268 = por %p266, %p267
      %p269 = scmp.ne.s32.totalorder %s258, %s261
      %p270 = scmp.eq.s32.totalorder %s28, 3
      %p271 = por %p269, %p270
      %p272 = scmp.ne.s32.totalorder %s261, %s262
      %p273 = scmp.eq.s32.totalorder %s28, 0
      %p274 = por %p272, %p273
      %p275 = scmp.ne.s32.totalorder %s261, %s262
      %p276 = scmp.eq.s32.totalorder %s29, 3
      %p277 = por %p275, %p276
      %p279 = scmp.ne.s32.totalorder %s262, %s278
      %p280 = scmp.eq.s32.totalorder %s29, 0
      %p281 = por %p279, %p280
      %s282 = ssub.s32 %s30, %s42
      %p283 = scmp.eq.s32.totalorder %s282, 0
      %s285 = sadd.s32 %s284, 1
      %s286 = scalar_select %p283, %s284, %s285
      %p289 = pneg %p283
      %p290 = scmp.eq.s32.totalorder %s23, 3
      %p291 = por %p289, %p290
      %p292 = scmp.ne.s32.totalorder %s284, %s287
      %p293 = scmp.eq.s32.totalorder %s23, 0
      %p294 = por %p292, %p293
      %p295 = scmp.ne.s32.totalorder %s284, %s287
      %p296 = scmp.eq.s32.totalorder %s28, 3
      %p297 = por %p295, %p296
      %p298 = scmp.ne.s32.totalorder %s287, %s288
      %p299 = scmp.eq.s32.totalorder %s28, 0
      %p300 = por %p298, %p299
      %p301 = scmp.ne.s32.totalorder %s287, %s288
      %p302 = scmp.eq.s32.totalorder %s29, 3
      %p303 = por %p301, %p302
      %p305 = scmp.ne.s32.totalorder %s288, %s304
      %p306 = scmp.eq.s32.totalorder %s29, 0
      %p307 = por %p305, %p306
      %p308 = scmp.le.s32.totalorder 1, %s23
      %p309 = scmp.lt.s32.totalorder %s23, 5
      %p310 = pnand %p308, %p309
      %p311 = pneg %p310
      // Predicated region
      $region9: #{tpu_custom_call.1} parent=5 // pred_check
        _
      $region10: #{tpu_custom_call.1} parent=5 // pred_check_branch
        %313 = sbr.rel (%p310) target = $region12
      $region11: #{tpu_custom_call.1} parent=5 // pred_region
        %s314 = ssub.s32 %s23, 1
        // Predicated region
        $region13: #{tpu_custom_call.1} parent=11 // pred_check
          %p315 = pneg %p82
        $region14: #{tpu_custom_call.1} parent=11 // pred_check_branch
          %317 = sbr.rel (%p315) target = $region16
        $region15: #{tpu_custom_call.1} parent=11 // pred_region
          _
        $region16: #{tpu_custom_call.1} parent=11 // pred_fallthru
          _
        // Predicated region
        $region17: #{tpu_custom_call.1} parent=11 // pred_check
          %p318 = pneg %p103
        $region18: #{tpu_custom_call.1} parent=11 // pred_check_branch
          %320 = sbr.rel (%p318) target = $region20
        $region19: #{tpu_custom_call.1} parent=11 // pred_region
          _
        $region20: #{tpu_custom_call.1} parent=11 // pred_fallthru
          _
        // Predicated region
        $region21: #{tpu_custom_call.1} parent=11 // pred_check
          %p321 = pneg %p124
        $region22: #{tpu_custom_call.1} parent=11 // pred_check_branch
          %323 = sbr.rel (%p321) target = $region24
        $region23: #{tpu_custom_call.1} parent=11 // pred_region
          _
        $region24: #{tpu_custom_call.1} parent=11 // pred_fallthru
          _
        // Predicated region
        $region25: #{tpu_custom_call.1} parent=11 // pred_check
          %p324 = pneg %p145
        $region26: #{tpu_custom_call.1} parent=11 // pred_check_branch
          %326 = sbr.rel (%p324) target = $region28
        $region27: #{tpu_custom_call.1} parent=11 // pred_region
          _
        $region28: #{tpu_custom_call.1} parent=11 // pred_fallthru
          _
        // Predicated region
        $region29: #{tpu_custom_call.1} parent=11 // pred_check
          %p327 = pneg %p192
        $region30: #{tpu_custom_call.1} parent=11 // pred_check_branch
          %329 = sbr.rel (%p327) target = $region32
        $region31: #{tpu_custom_call.1} parent=11 // pred_region
          _
        $region32: #{tpu_custom_call.1} parent=11 // pred_fallthru
          _
      $region12: #{tpu_custom_call.1} parent=5 // pred_fallthru
        _
      %p330 = scmp.lt.s32.totalorder %s23, 4
      // Predicated region
      $region33: #{tpu_custom_call.1} parent=5 // pred_check
        %p331 = pneg %p330
      $region34: #{tpu_custom_call.1} parent=5 // pred_check_branch
        %333 = sbr.rel (%p331) target = $region36
      $region35: #{tpu_custom_call.1} parent=5 // pred_region
        // Predicated region
        $region37: #{tpu_custom_call.1} parent=35 // pred_check
          %p334 = pneg %p55
        $region38: #{tpu_custom_call.1} parent=35 // pred_check_branch
          %336 = sbr.rel (%p334) target = $region40
        $region39: #{tpu_custom_call.1} parent=35 // pred_region
          %p337 = scmp.lt.s32.totalorder %s30, 1
          %s338 = scalar_select %p337, %s30, 1
          %s339 = smul.addr %s338, 364
          %s340 = smul.addr %s339, 8
          %s341 = scalar_lea.vmem %s0, %s340
        $region40: #{tpu_custom_call.1} parent=35 // pred_fallthru
          _
        // Predicated region
        $region41: #{tpu_custom_call.1} parent=35 // pred_check
          %p342 = pneg %p165
        $region42: #{tpu_custom_call.1} parent=35 // pred_check_branch
          %344 = sbr.rel (%p342) target = $region44
        $region43: #{tpu_custom_call.1} parent=35 // pred_region
          %p345 = scmp.lt.s32.totalorder %s30, 1
          %s346 = scalar_select %p345, %s30, 1
          %s347 = scalar_lea.vmem %s5, %s346
        $region44: #{tpu_custom_call.1} parent=35 // pred_fallthru
          _
      $region36: #{tpu_custom_call.1} parent=5 // pred_fallthru
        _
      %p348 = scmp.le.s32.totalorder 1, %s23
      %p349 = scmp.lt.s32.totalorder %s23, 5
      %p350 = pnand %p348, %p349
      %p351 = pneg %p350
      // Predicated region
      $region45: #{tpu_custom_call.1} parent=5 // pred_check
        _
      $region46: #{tpu_custom_call.1} parent=5 // pred_check_branch
        %353 = sbr.rel (%p350) target = $region48
      $region47: #{tpu_custom_call.1} parent=5 // pred_region
        %s354 = ssub.s32 %s23, 1
        %p355 = scmp.lt.s32.totalorder %s32, 1
        %s356 = scalar_select %p355, %s32, 1
        %s357 = smul.addr %s356, 364
        %s358 = smul.addr %s357, 8
        %s359 = scalar_lea.vmem %s0, %s358
        %p360 = pneg %p61
        %p361 = pneg %p58
        %p362 = pneg %p82
        %p363 = pneg %p79
        %p364 = pneg %p103
        %p365 = pneg %p100
        %p366 = pneg %p124
        %p367 = pneg %p121
        %p368 = pneg %p145
        %p369 = pneg %p142
        %p370 = scmp.lt.s32.totalorder %s32, 1
        %s371 = scalar_select %p370, %s32, 1
        %s372 = scalar_lea.vmem %s5, %s371
        %p373 = pneg %p171
        %p374 = pneg %p168
        %p375 = pneg %p192
        %p376 = pneg %p189
        %p377 = pneg %p220
        %p378 = pneg %p217
        %s379 = smul.u32 16, %s33
        %p380 = scmp.lt.s32.totalorder %s32, 1
        %s381 = scalar_select %p380, %s32, 1
        %p382 = scmp.lt.s32.totalorder %s379, 31
        %s383 = scalar_select %p382, %s379, 31
        %s384 = smul.addr %s381, 32
        %s385 = sadd.s32 %s383, %s384
        %s386 = smul.addr %s385, 8
        %s387 = scalar_lea.vmem %s7, %s386
        %p388 = pneg %p248
        %p389 = pneg %p245
        %s390 = smul.u32 16, %s33
        %p391 = scmp.lt.s32.totalorder %s32, 1
        %s392 = scalar_select %p391, %s32, 1
        %p393 = scmp.lt.s32.totalorder %s390, 31
        %s394 = scalar_select %p393, %s390, 31
        %s395 = smul.addr %s392, 32
        %s396 = sadd.s32 %s394, %s395
        %s397 = smul.addr %s396, 8
        %s398 = scalar_lea.vmem %s8, %s397
        %p399 = pneg %p274
        %p400 = pneg %p271
        %s401 = sand.u32 %s261, 1
        %s402 = scalar_lea.sflag [#allocation3], %s401
        %s403 = sand.u32 %s261, 1
        %s404 = scalar_lea.vmem [#allocation2], %s403
        %p405 = pneg %p300
        %p406 = pneg %p297
        %s407 = sand.u32 %s287, 1
        %s408 = scalar_lea.sflag [#allocation5], %s407
        %s409 = sand.u32 %s287, 1
        %s410 = scalar_lea.vmem [#allocation4], %s409
        %p411 = scmp.lt.s32.totalorder %s32, 1
        %s412 = scalar_select %p411, %s32, 1
        %s413 = smul.addr %s412, 364
        %s414 = smul.addr %s413, 8
        %s415 = scalar_lea.vmem %s0, %s414
        %p416 = scmp.lt.s32.totalorder %s32, 1
        %s417 = scalar_select %p416, %s32, 1
        %s418 = scalar_lea.vmem %s5, %s417
        %s419 = smul.u32 16, %s33
        %p420 = scmp.lt.s32.totalorder %s32, 1
        %s421 = scalar_select %p420, %s32, 1
        %p422 = scmp.lt.s32.totalorder %s419, 31
        %s423 = scalar_select %p422, %s419, 31
        %s424 = smul.addr %s421, 32
        %s425 = sadd.s32 %s423, %s424
        %s426 = smul.addr %s425, 8
        %s427 = scalar_lea.vmem %s7, %s426
        %s428 = smul.u32 16, %s33
        %s429 = smul.u32 16, %s33
        %p430 = scmp.lt.s32.totalorder %s32, 1
        %s431 = scalar_select %p430, %s32, 1
        %p432 = scmp.lt.s32.totalorder %s429, 31
        %s433 = scalar_select %p432, %s429, 31
        %s434 = smul.addr %s431, 32
        %s435 = sadd.s32 %s433, %s434
        %s436 = smul.addr %s435, 8
        %s437 = scalar_lea.vmem %s8, %s436
        %s438 = smul.u32 16, %s33
        %s439 = smul.u32 %s33, 8
        %s440 = sadd.s32 %s439, 18
        %s441 = smul.u32 %s440, 56
        %s442 = scalar_lea.vmem %s415, %s441
        %v443 = vld [vmem:[%s442 + $0x12] sm:$0xff]
        %v444 = vld [vmem:[%s442 + $0x1a] sm:$0xff]
        %v445 = vld [vmem:[%s442 + $0x4a] sm:$0xff]
        %v446 = vld [vmem:[%s442 + $0x52] sm:$0xff]
        %v447 = vld [vmem:[%s442 + $0x82] sm:$0xff]
        %v448 = vld [vmem:[%s442 + $0x8a] sm:$0xff]
        %v449 = vld [vmem:[%s442 + $0xba] sm:$0xff]
        %v450 = vld [vmem:[%s442 + $0xc2] sm:$0xff]
        %v451 = vld [vmem:[%s442 + $0xf2] sm:$0xff]
        %v452 = vld [vmem:[%s442 + $0xfa] sm:$0xff]
        %v453 = vld [vmem:[%s442 + $0x12a] sm:$0xff]
        %v454 = vld [vmem:[%s442 + $0x132] sm:$0xff]
        %v455 = vld [vmem:[%s442 + $0x162] sm:$0xff]
        %v456 = vld [vmem:[%s442 + $0x16a] sm:$0xff]
        %v457 = vld [vmem:[%s442 + $0x19a] sm:$0xff]
        %v458 = vld [vmem:[%s442 + $0x1a2] sm:$0xff]
        %v459 = vld [vmem:[%s1] sm:$0xff]
        %v460 = vld [vmem:[%s1 + $0x8] sm:$0xff]
        %v461 = vld [vmem:[%s1 + $0x10] sm:$0xff]
        %v462 = vld [vmem:[%s1 + $0x18] sm:$0xff]
        %v463 = vld [vmem:[%s1 + $0x20] sm:$0xff]
        %v464 = vld [vmem:[%s1 + $0x28] sm:$0xff]
        %v465 = vld [vmem:[%s1 + $0x30] sm:$0xff]
        %v466 = vld [vmem:[%s1 + $0x38] sm:$0xff]
        %v467 = vld [vmem:[%s1 + $0x40] sm:$0xff]
        %v468 = vld [vmem:[%s1 + $0x48] sm:$0xff]
        %v469 = vld [vmem:[%s1 + $0x50] sm:$0xff]
        %v470 = vld [vmem:[%s1 + $0x58] sm:$0xff]
        %v471 = vld [vmem:[%s1 + $0x60] sm:$0xff]
        %v472 = vld [vmem:[%s1 + $0x68] sm:$0xff]
        %v473 = vld [vmem:[%s1 + $0x70] sm:$0xff]
        %v474 = vld [vmem:[%s1 + $0x78] sm:$0xff]
        %475 = vmatpush.msra.mxu0 %v474
        %476 = vmatpush.msra.mxu0 %v473
        %477 = vmatpush.msra.mxu0 %v472
        %478 = vmatpush.msra.mxu0 %v471
        %479 = vmatpush.msra.mxu0 %v470
        %480 = vmatpush.msra.mxu0 %v469
        %481 = vmatpush.msra.mxu0 %v468
        %482 = vmatpush.msra.mxu0 %v467
        %483 = vmatpush.msra.mxu0 %v466
        %484 = vmatpush.msra.mxu0 %v465
        %485 = vmatpush.msra.mxu0 %v464
        %486 = vmatpush.msra.mxu0 %v463
        %487 = vmatpush.msra.mxu0 %v462
        %488 = vmatpush.msra.mxu0 %v461
        %489 = vmatpush.msra.mxu0 %v460
        %490 = vmatpush.msra.mxu0 %v459
        %491 = vmatmul.f32.gmra.mxu0 %v443
        %v492 = vpop.f32.mrf.mxu0
        %v493 = vadd.f32 0.0, %v492
        %494 = vmatmul.f32.gmra.mxu0 %v444
        %v495 = vpop.f32.mrf.mxu0
        %v496 = vadd.f32 0.0, %v495
        %497 = vmatmul.f32.gmra.mxu0 %v445
        %v498 = vpop.f32.mrf.mxu0
        %v499 = vadd.f32 0.0, %v498
        %500 = vmatmul.f32.gmra.mxu0 %v446
        %v501 = vpop.f32.mrf.mxu0
        %v502 = vadd.f32 0.0, %v501
        %503 = vmatmul.f32.gmra.mxu0 %v447
        %v504 = vpop.f32.mrf.mxu0
        %v505 = vadd.f32 0.0, %v504
        %506 = vmatmul.f32.gmra.mxu0 %v448
        %v507 = vpop.f32.mrf.mxu0
        %v508 = vadd.f32 0.0, %v507
        %509 = vmatmul.f32.gmra.mxu0 %v449
        %v510 = vpop.f32.mrf.mxu0
        %v511 = vadd.f32 0.0, %v510
        %512 = vmatmul.f32.gmra.mxu0 %v450
        %v513 = vpop.f32.mrf.mxu0
        %v514 = vadd.f32 0.0, %v513
        %515 = vmatmul.f32.gmra.mxu0 %v451
        %v516 = vpop.f32.mrf.mxu0
        %v517 = vadd.f32 0.0, %v516
        %518 = vmatmul.f32.gmra.mxu0 %v452
        %v519 = vpop.f32.mrf.mxu0
        %v520 = vadd.f32 0.0, %v519
        %521 = vmatmul.f32.gmra.mxu0 %v453
        %v522 = vpop.f32.mrf.mxu0
        %v523 = vadd.f32 0.0, %v522
        %524 = vmatmul.f32.gmra.mxu0 %v454
        %v525 = vpop.f32.mrf.mxu0
        %v526 = vadd.f32 0.0, %v525
        %527 = vmatmul.f32.gmra.mxu0 %v455
        %v528 = vpop.f32.mrf.mxu0
        %v529 = vadd.f32 0.0, %v528
        %530 = vmatmul.f32.gmra.mxu0 %v456
        %v531 = vpop.f32.mrf.mxu0
        %v532 = vadd.f32 0.0, %v531
        %533 = vmatmul.f32.gmra.mxu0 %v457
        %v534 = vpop.f32.mrf.mxu0
        %v535 = vadd.f32 0.0, %v534
        %536 = vmatmul.f32.gmra.mxu0 %v458
        %v537 = vpop.f32.mrf.mxu0
        %v538 = vadd.f32 0.0, %v537
        %539 = vdwg.mxu0
        %v540 = vld [vmem:[%s6] sm:$0x1]
        %v542 = vperm.slane %v540, 0
        %543 = vrot.lane.b32.xlu0 %v542, 32
        %v544 = vpop.permute.xlu0 %543
        %v546 = vadd.f32 %v493, %v544
        %v547 = vadd.f32 %v496, %v544
        %v548 = vadd.f32 %v499, %v544
        %v549 = vadd.f32 %v502, %v544
        %v550 = vadd.f32 %v505, %v544
        %v551 = vadd.f32 %v508, %v544
        %v552 = vadd.f32 %v511, %v544
        %v553 = vadd.f32 %v514, %v544
        %v554 = vadd.f32 %v517, %v544
        %v555 = vadd.f32 %v520, %v544
        %v556 = vadd.f32 %v523, %v544
        %v557 = vadd.f32 %v526, %v544
        %v558 = vadd.f32 %v529, %v544
        %v559 = vadd.f32 %v532, %v544
        %v560 = vadd.f32 %v535, %v544
        %v561 = vadd.f32 %v538, %v544
        %s562 = sadd.s32 %s439, 12
        %s563 = smul.u32 %s562, 56
        %s564 = scalar_lea.vmem %s415, %s563
        %v565 = vld [vmem:[%s564 + $0xc] sm:$0xff]
        %v566 = vld [vmem:[%s564 + $0x14] sm:$0xff]
        %v567 = vld [vmem:[%s564 + $0x44] sm:$0xff]
        %v568 = vld [vmem:[%s564 + $0x4c] sm:$0xff]
        %v569 = vld [vmem:[%s564 + $0x7c] sm:$0xff]
        %v570 = vld [vmem:[%s564 + $0x84] sm:$0xff]
        %v571 = vld [vmem:[%s564 + $0xb4] sm:$0xff]
        %v572 = vld [vmem:[%s564 + $0xbc] sm:$0xff]
        %v573 = vld [vmem:[%s564 + $0xec] sm:$0xff]
        %v574 = vld [vmem:[%s564 + $0xf4] sm:$0xff]
        %v575 = vld [vmem:[%s564 + $0x124] sm:$0xff]
        %v576 = vld [vmem:[%s564 + $0x12c] sm:$0xff]
        %v577 = vld [vmem:[%s564 + $0x15c] sm:$0xff]
        %v578 = vld [vmem:[%s564 + $0x164] sm:$0xff]
        %v579 = vld [vmem:[%s564 + $0x194] sm:$0xff]
        %v580 = vld [vmem:[%s564 + $0x19c] sm:$0xff]
        %v581 = vld [vmem:[%s2] sm:$0xff]
        %v582 = vld [vmem:[%s2 + $0x8] sm:$0xff]
        %v583 = vld [vmem:[%s2 + $0x10] sm:$0xff]
        %v584 = vld [vmem:[%s2 + $0x18] sm:$0xff]
        %v585 = vld [vmem:[%s2 + $0x20] sm:$0xff]
        %v586 = vld [vmem:[%s2 + $0x28] sm:$0xff]
        %v587 = vld [vmem:[%s2 + $0x30] sm:$0xff]
        %v588 = vld [vmem:[%s2 + $0x38] sm:$0xff]
        %v589 = vld [vmem:[%s2 + $0x40] sm:$0xff]
        %v590 = vld [vmem:[%s2 + $0x48] sm:$0xff]
        %v591 = vld [vmem:[%s2 + $0x50] sm:$0xff]
        %v592 = vld [vmem:[%s2 + $0x58] sm:$0xff]
        %v593 = vld [vmem:[%s2 + $0x60] sm:$0xff]
        %v594 = vld [vmem:[%s2 + $0x68] sm:$0xff]
        %v595 = vld [vmem:[%s2 + $0x70] sm:$0xff]
        %v596 = vld [vmem:[%s2 + $0x78] sm:$0xff]
        %597 = vmatpush.msra.mxu0 %v596
        %598 = vmatpush.msra.mxu0 %v595
        %599 = vmatpush.msra.mxu0 %v594
        %600 = vmatpush.msra.mxu0 %v593
        %601 = vmatpush.msra.mxu0 %v592
        %602 = vmatpush.msra.mxu0 %v591
        %603 = vmatpush.msra.mxu0 %v590
        %604 = vmatpush.msra.mxu0 %v589
        %605 = vmatpush.msra.mxu0 %v588
        %606 = vmatpush.msra.mxu0 %v587
        %607 = vmatpush.msra.mxu0 %v586
        %608 = vmatpush.msra.mxu0 %v585
        %609 = vmatpush.msra.mxu0 %v584
        %610 = vmatpush.msra.mxu0 %v583
        %611 = vmatpush.msra.mxu0 %v582
        %612 = vmatpush.msra.mxu0 %v581
        %613 = vmatmul.f32.gmra.mxu0 %v565
        %v614 = vpop.f32.mrf.mxu0
        %v615 = vadd.f32 0.0, %v614
        %616 = vmatmul.f32.gmra.mxu0 %v566
        %v617 = vpop.f32.mrf.mxu0
        %v618 = vadd.f32 0.0, %v617
        %619 = vmatmul.f32.gmra.mxu0 %v567
        %v620 = vpop.f32.mrf.mxu0
        %v621 = vadd.f32 0.0, %v620
        %622 = vmatmul.f32.gmra.mxu0 %v568
        %v623 = vpop.f32.mrf.mxu0
        %v624 = vadd.f32 0.0, %v623
        %625 = vmatmul.f32.gmra.mxu0 %v569
        %v626 = vpop.f32.mrf.mxu0
        %v627 = vadd.f32 0.0, %v626
        %628 = vmatmul.f32.gmra.mxu0 %v570
        %v629 = vpop.f32.mrf.mxu0
        %v630 = vadd.f32 0.0, %v629
        %631 = vmatmul.f32.gmra.mxu0 %v571
        %v632 = vpop.f32.mrf.mxu0
        %v633 = vadd.f32 0.0, %v632
        %634 = vmatmul.f32.gmra.mxu0 %v572
        %v635 = vpop.f32.mrf.mxu0
        %v636 = vadd.f32 0.0, %v635
        %637 = vmatmul.f32.gmra.mxu0 %v573
        %v638 = vpop.f32.mrf.mxu0
        %v639 = vadd.f32 0.0, %v638
        %640 = vmatmul.f32.gmra.mxu0 %v574
        %v641 = vpop.f32.mrf.mxu0
        %v642 = vadd.f32 0.0, %v641
        %643 = vmatmul.f32.gmra.mxu0 %v575
        %v644 = vpop.f32.mrf.mxu0
        %v645 = vadd.f32 0.0, %v644
        %646 = vmatmul.f32.gmra.mxu0 %v576
        %v647 = vpop.f32.mrf.mxu0
        %v648 = vadd.f32 0.0, %v647
        %649 = vmatmul.f32.gmra.mxu0 %v577
        %v650 = vpop.f32.mrf.mxu0
        %v651 = vadd.f32 0.0, %v650
        %652 = vmatmul.f32.gmra.mxu0 %v578
        %v653 = vpop.f32.mrf.mxu0
        %v654 = vadd.f32 0.0, %v653
        %655 = vmatmul.f32.gmra.mxu0 %v579
        %v656 = vpop.f32.mrf.mxu0
        %v657 = vadd.f32 0.0, %v656
        %658 = vmatmul.f32.gmra.mxu0 %v580
        %v659 = vpop.f32.mrf.mxu0
        %v660 = vadd.f32 0.0, %v659
        %661 = vdwg.mxu0
        %v662 = vadd.f32 %v493, %v615
        %v663 = vadd.f32 %v496, %v618
        %v664 = vadd.f32 %v499, %v621
        %v665 = vadd.f32 %v502, %v624
        %v666 = vadd.f32 %v505, %v627
        %v667 = vadd.f32 %v508, %v630
        %v668 = vadd.f32 %v511, %v633
        %v669 = vadd.f32 %v514, %v636
        %v670 = vadd.f32 %v517, %v639
        %v671 = vadd.f32 %v520, %v642
        %v672 = vadd.f32 %v523, %v645
        %v673 = vadd.f32 %v526, %v648
        %v674 = vadd.f32 %v529, %v651
        %v675 = vadd.f32 %v532, %v654
        %v676 = vadd.f32 %v535, %v657
        %v677 = vadd.f32 %v538, %v660
        %v678 = vld [vmem:[%s564 + $0x12] sm:$0xff]
        %v679 = vld [vmem:[%s564 + $0x1a] sm:$0xff]
        %v680 = vld [vmem:[%s564 + $0x4a] sm:$0xff]
        %v681 = vld [vmem:[%s564 + $0x52] sm:$0xff]
        %v682 = vld [vmem:[%s564 + $0x82] sm:$0xff]
        %v683 = vld [vmem:[%s564 + $0x8a] sm:$0xff]
        %v684 = vld [vmem:[%s564 + $0xba] sm:$0xff]
        %v685 = vld [vmem:[%s564 + $0xc2] sm:$0xff]
        %v686 = vld [vmem:[%s564 + $0xf2] sm:$0xff]
        %v687 = vld [vmem:[%s564 + $0xfa] sm:$0xff]
        %v688 = vld [vmem:[%s564 + $0x12a] sm:$0xff]
        %v689 = vld [vmem:[%s564 + $0x132] sm:$0xff]
        %v690 = vld [vmem:[%s564 + $0x162] sm:$0xff]
        %v691 = vld [vmem:[%s564 + $0x16a] sm:$0xff]
        %v692 = vld [vmem:[%s564 + $0x19a] sm:$0xff]
        %v693 = vld [vmem:[%s564 + $0x1a2] sm:$0xff]
        %s694 = scalar_lea.vmem %s2, 128
        %v695 = vld [vmem:[%s694] sm:$0xff]
        %v696 = vld [vmem:[%s694 + $0x8] sm:$0xff]
        %v697 = vld [vmem:[%s694 + $0x10] sm:$0xff]
        %v698 = vld [vmem:[%s694 + $0x18] sm:$0xff]
        %v699 = vld [vmem:[%s694 + $0x20] sm:$0xff]
        %v700 = vld [vmem:[%s694 + $0x28] sm:$0xff]
        %v701 = vld [vmem:[%s694 + $0x30] sm:$0xff]
        %v702 = vld [vmem:[%s694 + $0x38] sm:$0xff]
        %v703 = vld [vmem:[%s694 + $0x40] sm:$0xff]
        %v704 = vld [vmem:[%s694 + $0x48] sm:$0xff]
        %v705 = vld [vmem:[%s694 + $0x50] sm:$0xff]
        %v706 = vld [vmem:[%s694 + $0x58] sm:$0xff]
        %v707 = vld [vmem:[%s694 + $0x60] sm:$0xff]
        %v708 = vld [vmem:[%s694 + $0x68] sm:$0xff]
        %v709 = vld [vmem:[%s694 + $0x70] sm:$0xff]
        %v710 = vld [vmem:[%s694 + $0x78] sm:$0xff]
        %711 = vmatpush.msra.mxu0 %v710
        %712 = vmatpush.msra.mxu0 %v709
        %713 = vmatpush.msra.mxu0 %v708
        %714 = vmatpush.msra.mxu0 %v707
        %715 = vmatpush.msra.mxu0 %v706
        %716 = vmatpush.msra.mxu0 %v705
        %717 = vmatpush.msra.mxu0 %v704
        %718 = vmatpush.msra.mxu0 %v703
        %719 = vmatpush.msra.mxu0 %v702
        %720 = vmatpush.msra.mxu0 %v701
        %721 = vmatpush.msra.mxu0 %v700
        %722 = vmatpush.msra.mxu0 %v699
        %723 = vmatpush.msra.mxu0 %v698
        %724 = vmatpush.msra.mxu0 %v697
        %725 = vmatpush.msra.mxu0 %v696
        %726 = vmatpush.msra.mxu0 %v695
        %727 = vmatmul.f32.gmra.mxu0 %v678
        %v728 = vpop.f32.mrf.mxu0
        %v729 = vadd.f32 0.0, %v728
        %730 = vmatmul.f32.gmra.mxu0 %v679
        %v731 = vpop.f32.mrf.mxu0
        %v732 = vadd.f32 0.0, %v731
        %733 = vmatmul.f32.gmra.mxu0 %v680
        %v734 = vpop.f32.mrf.mxu0
        %v735 = vadd.f32 0.0, %v734
        %736 = vmatmul.f32.gmra.mxu0 %v681
        %v737 = vpop.f32.mrf.mxu0
        %v738 = vadd.f32 0.0, %v737
        %739 = vmatmul.f32.gmra.mxu0 %v682
        %v740 = vpop.f32.mrf.mxu0
        %v741 = vadd.f32 0.0, %v740
        %742 = vmatmul.f32.gmra.mxu0 %v683
        %v743 = vpop.f32.mrf.mxu0
        %v744 = vadd.f32 0.0, %v743
        %745 = vmatmul.f32.gmra.mxu0 %v684
        %v746 = vpop.f32.mrf.mxu0
        %v747 = vadd.f32 0.0, %v746
        %748 = vmatmul.f32.gmra.mxu0 %v685
        %v749 = vpop.f32.mrf.mxu0
        %v750 = vadd.f32 0.0, %v749
        %751 = vmatmul.f32.gmra.mxu0 %v686
        %v752 = vpop.f32.mrf.mxu0
        %v753 = vadd.f32 0.0, %v752
        %754 = vmatmul.f32.gmra.mxu0 %v687
        %v755 = vpop.f32.mrf.mxu0
        %v756 = vadd.f32 0.0, %v755
        %757 = vmatmul.f32.gmra.mxu0 %v688
        %v758 = vpop.f32.mrf.mxu0
        %v759 = vadd.f32 0.0, %v758
        %760 = vmatmul.f32.gmra.mxu0 %v689
        %v761 = vpop.f32.mrf.mxu0
        %v762 = vadd.f32 0.0, %v761
        %763 = vmatmul.f32.gmra.mxu0 %v690
        %v764 = vpop.f32.mrf.mxu0
        %v765 = vadd.f32 0.0, %v764
        %766 = vmatmul.f32.gmra.mxu0 %v691
        %v767 = vpop.f32.mrf.mxu0
        %v768 = vadd.f32 0.0, %v767
        %769 = vmatmul.f32.gmra.mxu0 %v692
        %v770 = vpop.f32.mrf.mxu0
        %v771 = vadd.f32 0.0, %v770
        %772 = vmatmul.f32.gmra.mxu0 %v693
        %v773 = vpop.f32.mrf.mxu0
        %v774 = vadd.f32 0.0, %v773
        %775 = vdwg.mxu0
        %v776 = vadd.f32 %v662, %v729
        %v777 = vadd.f32 %v663, %v732
        %v778 = vadd.f32 %v664, %v735
        %v779 = vadd.f32 %v665, %v738
        %v780 = vadd.f32 %v666, %v741
        %v781 = vadd.f32 %v667, %v744
        %v782 = vadd.f32 %v668, %v747
        %v783 = vadd.f32 %v669, %v750
        %v784 = vadd.f32 %v670, %v753
        %v785 = vadd.f32 %v671, %v756
        %v786 = vadd.f32 %v672, %v759
        %v787 = vadd.f32 %v673, %v762
        %v788 = vadd.f32 %v674, %v765
        %v789 = vadd.f32 %v675, %v768
        %v790 = vadd.f32 %v676, %v771
        %v791 = vadd.f32 %v677, %v774
        %v792 = vld [vmem:[%s564 + $0x18] sm:$0xff]
        %v793 = vld [vmem:[%s564 + $0x20] sm:$0xff]
        %v794 = vld [vmem:[%s564 + $0x50] sm:$0xff]
        %v795 = vld [vmem:[%s564 + $0x58] sm:$0xff]
        %v796 = vld [vmem:[%s564 + $0x88] sm:$0xff]
        %v797 = vld [vmem:[%s564 + $0x90] sm:$0xff]
        %v798 = vld [vmem:[%s564 + $0xc0] sm:$0xff]
        %v799 = vld [vmem:[%s564 + $0xc8] sm:$0xff]
        %v800 = vld [vmem:[%s564 + $0xf8] sm:$0xff]
        %v801 = vld [vmem:[%s564 + $0x100] sm:$0xff]
        %v802 = vld [vmem:[%s564 + $0x130] sm:$0xff]
        %v803 = vld [vmem:[%s564 + $0x138] sm:$0xff]
        %v804 = vld [vmem:[%s564 + $0x168] sm:$0xff]
        %v805 = vld [vmem:[%s564 + $0x170] sm:$0xff]
        %v806 = vld [vmem:[%s564 + $0x1a0] sm:$0xff]
        %v807 = vld [vmem:[%s564 + $0x1a8] sm:$0xff]
        %s808 = scalar_lea.vmem %s2, 256
        %v809 = vld [vmem:[%s808] sm:$0xff]
        %v810 = vld [vmem:[%s808 + $0x8] sm:$0xff]
        %v811 = vld [vmem:[%s808 + $0x10] sm:$0xff]
        %v812 = vld [vmem:[%s808 + $0x18] sm:$0xff]
        %v813 = vld [vmem:[%s808 + $0x20] sm:$0xff]
        %v814 = vld [vmem:[%s808 + $0x28] sm:$0xff]
        %v815 = vld [vmem:[%s808 + $0x30] sm:$0xff]
        %v816 = vld [vmem:[%s808 + $0x38] sm:$0xff]
        %v817 = vld [vmem:[%s808 + $0x40] sm:$0xff]
        %v818 = vld [vmem:[%s808 + $0x48] sm:$0xff]
        %v819 = vld [vmem:[%s808 + $0x50] sm:$0xff]
        %v820 = vld [vmem:[%s808 + $0x58] sm:$0xff]
        %v821 = vld [vmem:[%s808 + $0x60] sm:$0xff]
        %v822 = vld [vmem:[%s808 + $0x68] sm:$0xff]
        %v823 = vld [vmem:[%s808 + $0x70] sm:$0xff]
        %v824 = vld [vmem:[%s808 + $0x78] sm:$0xff]
        %825 = vmatpush.msra.mxu0 %v824
        %826 = vmatpush.msra.mxu0 %v823
        %827 = vmatpush.msra.mxu0 %v822
        %828 = vmatpush.msra.mxu0 %v821
        %829 = vmatpush.msra.mxu0 %v820
        %830 = vmatpush.msra.mxu0 %v819
        %831 = vmatpush.msra.mxu0 %v818
        %832 = vmatpush.msra.mxu0 %v817
        %833 = vmatpush.msra.mxu0 %v816
        %834 = vmatpush.msra.mxu0 %v815
        %835 = vmatpush.msra.mxu0 %v814
        %836 = vmatpush.msra.mxu0 %v813
        %837 = vmatpush.msra.mxu0 %v812
        %838 = vmatpush.msra.mxu0 %v811
        %839 = vmatpush.msra.mxu0 %v810
        %840 = vmatpush.msra.mxu0 %v809
        %841 = vmatmul.f32.gmra.mxu0 %v792
        %v842 = vpop.f32.mrf.mxu0
        %v843 = vadd.f32 0.0, %v842
        %844 = vmatmul.f32.gmra.mxu0 %v793
        %v845 = vpop.f32.mrf.mxu0
        %v846 = vadd.f32 0.0, %v845
        %847 = vmatmul.f32.gmra.mxu0 %v794
        %v848 = vpop.f32.mrf.mxu0
        %v849 = vadd.f32 0.0, %v848
        %850 = vmatmul.f32.gmra.mxu0 %v795
        %v851 = vpop.f32.mrf.mxu0
        %v852 = vadd.f32 0.0, %v851
        %853 = vmatmul.f32.gmra.mxu0 %v796
        %v854 = vpop.f32.mrf.mxu0
        %v855 = vadd.f32 0.0, %v854
        %856 = vmatmul.f32.gmra.mxu0 %v797
        %v857 = vpop.f32.mrf.mxu0
        %v858 = vadd.f32 0.0, %v857
        %859 = vmatmul.f32.gmra.mxu0 %v798
        %v860 = vpop.f32.mrf.mxu0
        %v861 = vadd.f32 0.0, %v860
        %862 = vmatmul.f32.gmra.mxu0 %v799
        %v863 = vpop.f32.mrf.mxu0
        %v864 = vadd.f32 0.0, %v863
        %865 = vmatmul.f32.gmra.mxu0 %v800
        %v866 = vpop.f32.mrf.mxu0
        %v867 = vadd.f32 0.0, %v866
        %868 = vmatmul.f32.gmra.mxu0 %v801
        %v869 = vpop.f32.mrf.mxu0
        %v870 = vadd.f32 0.0, %v869
        %871 = vmatmul.f32.gmra.mxu0 %v802
        %v872 = vpop.f32.mrf.mxu0
        %v873 = vadd.f32 0.0, %v872
        %874 = vmatmul.f32.gmra.mxu0 %v803
        %v875 = vpop.f32.mrf.mxu0
        %v876 = vadd.f32 0.0, %v875
        %877 = vmatmul.f32.gmra.mxu0 %v804
        %v878 = vpop.f32.mrf.mxu0
        %v879 = vadd.f32 0.0, %v878
        %880 = vmatmul.f32.gmra.mxu0 %v805
        %v881 = vpop.f32.mrf.mxu0
        %v882 = vadd.f32 0.0, %v881
        %883 = vmatmul.f32.gmra.mxu0 %v806
        %v884 = vpop.f32.mrf.mxu0
        %v885 = vadd.f32 0.0, %v884
        %886 = vmatmul.f32.gmra.mxu0 %v807
        %v887 = vpop.f32.mrf.mxu0
        %v888 = vadd.f32 0.0, %v887
        %889 = vdwg.mxu0
        %v890 = vadd.f32 %v776, %v843
        %v891 = vadd.f32 %v777, %v846
        %v892 = vadd.f32 %v778, %v849
        %v893 = vadd.f32 %v779, %v852
        %v894 = vadd.f32 %v780, %v855
        %v895 = vadd.f32 %v781, %v858
        %v896 = vadd.f32 %v782, %v861
        %v897 = vadd.f32 %v783, %v864
        %v898 = vadd.f32 %v784, %v867
        %v899 = vadd.f32 %v785, %v870
        %v900 = vadd.f32 %v786, %v873
        %v901 = vadd.f32 %v787, %v876
        %v902 = vadd.f32 %v788, %v879
        %v903 = vadd.f32 %v789, %v882
        %v904 = vadd.f32 %v790, %v885
        %v905 = vadd.f32 %v791, %v888
        %v906 = vld [vmem:[%s442 + $0xc] sm:$0xff]
        %v907 = vld [vmem:[%s442 + $0x14] sm:$0xff]
        %v908 = vld [vmem:[%s442 + $0x44] sm:$0xff]
        %v909 = vld [vmem:[%s442 + $0x4c] sm:$0xff]
        %v910 = vld [vmem:[%s442 + $0x7c] sm:$0xff]
        %v911 = vld [vmem:[%s442 + $0x84] sm:$0xff]
        %v912 = vld [vmem:[%s442 + $0xb4] sm:$0xff]
        %v913 = vld [vmem:[%s442 + $0xbc] sm:$0xff]
        %v914 = vld [vmem:[%s442 + $0xec] sm:$0xff]
        %v915 = vld [vmem:[%s442 + $0xf4] sm:$0xff]
        %v916 = vld [vmem:[%s442 + $0x124] sm:$0xff]
        %v917 = vld [vmem:[%s442 + $0x12c] sm:$0xff]
        %v918 = vld [vmem:[%s442 + $0x15c] sm:$0xff]
        %v919 = vld [vmem:[%s442 + $0x164] sm:$0xff]
        %v920 = vld [vmem:[%s442 + $0x194] sm:$0xff]
        %v921 = vld [vmem:[%s442 + $0x19c] sm:$0xff]
        %s922 = scalar_lea.vmem %s2, 384
        %v923 = vld [vmem:[%s922] sm:$0xff]
        %v924 = vld [vmem:[%s922 + $0x8] sm:$0xff]
        %v925 = vld [vmem:[%s922 + $0x10] sm:$0xff]
        %v926 = vld [vmem:[%s922 + $0x18] sm:$0xff]
        %v927 = vld [vmem:[%s922 + $0x20] sm:$0xff]
        %v928 = vld [vmem:[%s922 + $0x28] sm:$0xff]
        %v929 = vld [vmem:[%s922 + $0x30] sm:$0xff]
        %v930 = vld [vmem:[%s922 + $0x38] sm:$0xff]
        %v931 = vld [vmem:[%s922 + $0x40] sm:$0xff]
        %v932 = vld [vmem:[%s922 + $0x48] sm:$0xff]
        %v933 = vld [vmem:[%s922 + $0x50] sm:$0xff]
        %v934 = vld [vmem:[%s922 + $0x58] sm:$0xff]
        %v935 = vld [vmem:[%s922 + $0x60] sm:$0xff]
        %v936 = vld [vmem:[%s922 + $0x68] sm:$0xff]
        %v937 = vld [vmem:[%s922 + $0x70] sm:$0xff]
        %v938 = vld [vmem:[%s922 + $0x78] sm:$0xff]
        %939 = vmatpush.msra.mxu0 %v938
        %940 = vmatpush.msra.mxu0 %v937
        %941 = vmatpush.msra.mxu0 %v936
        %942 = vmatpush.msra.mxu0 %v935
        %943 = vmatpush.msra.mxu0 %v934
        %944 = vmatpush.msra.mxu0 %v933
        %945 = vmatpush.msra.mxu0 %v932
        %946 = vmatpush.msra.mxu0 %v931
        %947 = vmatpush.msra.mxu0 %v930
        %948 = vmatpush.msra.mxu0 %v929
        %949 = vmatpush.msra.mxu0 %v928
        %950 = vmatpush.msra.mxu0 %v927
        %951 = vmatpush.msra.mxu0 %v926
        %952 = vmatpush.msra.mxu0 %v925
        %953 = vmatpush.msra.mxu0 %v924
        %954 = vmatpush.msra.mxu0 %v923
        %955 = vmatmul.f32.gmra.mxu0 %v906
        %v956 = vpop.f32.mrf.mxu0
        %v957 = vadd.f32 0.0, %v956
        %958 = vmatmul.f32.gmra.mxu0 %v907
        %v959 = vpop.f32.mrf.mxu0
        %v960 = vadd.f32 0.0, %v959
        %961 = vmatmul.f32.gmra.mxu0 %v908
        %v962 = vpop.f32.mrf.mxu0
        %v963 = vadd.f32 0.0, %v962
        %964 = vmatmul.f32.gmra.mxu0 %v909
        %v965 = vpop.f32.mrf.mxu0
        %v966 = vadd.f32 0.0, %v965
        %967 = vmatmul.f32.gmra.mxu0 %v910
        %v968 = vpop.f32.mrf.mxu0
        %v969 = vadd.f32 0.0, %v968
        %970 = vmatmul.f32.gmra.mxu0 %v911
        %v971 = vpop.f32.mrf.mxu0
        %v972 = vadd.f32 0.0, %v971
        %973 = vmatmul.f32.gmra.mxu0 %v912
        %v974 = vpop.f32.mrf.mxu0
        %v975 = vadd.f32 0.0, %v974
        %976 = vmatmul.f32.gmra.mxu0 %v913
        %v977 = vpop.f32.mrf.mxu0
        %v978 = vadd.f32 0.0, %v977
        %979 = vmatmul.f32.gmra.mxu0 %v914
        %v980 = vpop.f32.mrf.mxu0
        %v981 = vadd.f32 0.0, %v980
        %982 = vmatmul.f32.gmra.mxu0 %v915
        %v983 = vpop.f32.mrf.mxu0
        %v984 = vadd.f32 0.0, %v983
        %985 = vmatmul.f32.gmra.mxu0 %v916
        %v986 = vpop.f32.mrf.mxu0
        %v987 = vadd.f32 0.0, %v986
        %988 = vmatmul.f32.gmra.mxu0 %v917
        %v989 = vpop.f32.mrf.mxu0
        %v990 = vadd.f32 0.0, %v989
        %991 = vmatmul.f32.gmra.mxu0 %v918
        %v992 = vpop.f32.mrf.mxu0
        %v993 = vadd.f32 0.0, %v992
        %994 = vmatmul.f32.gmra.mxu0 %v919
        %v995 = vpop.f32.mrf.mxu0
        %v996 = vadd.f32 0.0, %v995
        %997 = vmatmul.f32.gmra.mxu0 %v920
        %v998 = vpop.f32.mrf.mxu0
        %v999 = vadd.f32 0.0, %v998
        %1000 = vmatmul.f32.gmra.mxu0 %v921
        %v1001 = vpop.f32.mrf.mxu0
        %v1002 = vadd.f32 0.0, %v1001
        %1003 = vdwg.mxu0
        %v1004 = vadd.f32 %v890, %v957
        %v1005 = vadd.f32 %v891, %v960
        %v1006 = vadd.f32 %v892, %v963
        %v1007 = vadd.f32 %v893, %v966
        %v1008 = vadd.f32 %v894, %v969
        %v1009 = vadd.f32 %v895, %v972
        %v1010 = vadd.f32 %v896, %v975
        %v1011 = vadd.f32 %v897, %v978
        %v1012 = vadd.f32 %v898, %v981
        %v1013 = vadd.f32 %v899, %v984
        %v1014 = vadd.f32 %v900, %v987
        %v1015 = vadd.f32 %v901, %v990
        %v1016 = vadd.f32 %v902, %v993
        %v1017 = vadd.f32 %v903, %v996
        %v1018 = vadd.f32 %v904, %v999
        %v1019 = vadd.f32 %v905, %v1002
        %s1020 = scalar_lea.vmem %s2, 512
        %v1021 = vld [vmem:[%s1020] sm:$0xff]
        %v1022 = vld [vmem:[%s1020 + $0x8] sm:$0xff]
        %v1023 = vld [vmem:[%s1020 + $0x10] sm:$0xff]
        %v1024 = vld [vmem:[%s1020 + $0x18] sm:$0xff]
        %v1025 = vld [vmem:[%s1020 + $0x20] sm:$0xff]
        %v1026 = vld [vmem:[%s1020 + $0x28] sm:$0xff]
        %v1027 = vld [vmem:[%s1020 + $0x30] sm:$0xff]
        %v1028 = vld [vmem:[%s1020 + $0x38] sm:$0xff]
        %v1029 = vld [vmem:[%s1020 + $0x40] sm:$0xff]
        %v1030 = vld [vmem:[%s1020 + $0x48] sm:$0xff]
        %v1031 = vld [vmem:[%s1020 + $0x50] sm:$0xff]
        %v1032 = vld [vmem:[%s1020 + $0x58] sm:$0xff]
        %v1033 = vld [vmem:[%s1020 + $0x60] sm:$0xff]
        %v1034 = vld [vmem:[%s1020 + $0x68] sm:$0xff]
        %v1035 = vld [vmem:[%s1020 + $0x70] sm:$0xff]
        %v1036 = vld [vmem:[%s1020 + $0x78] sm:$0xff]
        %1037 = vmatpush.msra.mxu0 %v1036
        %1038 = vmatpush.msra.mxu0 %v1035
        %1039 = vmatpush.msra.mxu0 %v1034
        %1040 = vmatpush.msra.mxu0 %v1033
        %1041 = vmatpush.msra.mxu0 %v1032
        %1042 = vmatpush.msra.mxu0 %v1031
        %1043 = vmatpush.msra.mxu0 %v1030
        %1044 = vmatpush.msra.mxu0 %v1029
        %1045 = vmatpush.msra.mxu0 %v1028
        %1046 = vmatpush.msra.mxu0 %v1027
        %1047 = vmatpush.msra.mxu0 %v1026
        %1048 = vmatpush.msra.mxu0 %v1025
        %1049 = vmatpush.msra.mxu0 %v1024
        %1050 = vmatpush.msra.mxu0 %v1023
        %1051 = vmatpush.msra.mxu0 %v1022
        %1052 = vmatpush.msra.mxu0 %v1021
        %1053 = vmatmul.f32.gmra.mxu0 %v443
        %v1054 = vpop.f32.mrf.mxu0
        %v1055 = vadd.f32 0.0, %v1054
        %1056 = vmatmul.f32.gmra.mxu0 %v444
        %v1057 = vpop.f32.mrf.mxu0
        %v1058 = vadd.f32 0.0, %v1057
        %1059 = vmatmul.f32.gmra.mxu0 %v445
        %v1060 = vpop.f32.mrf.mxu0
        %v1061 = vadd.f32 0.0, %v1060
        %1062 = vmatmul.f32.gmra.mxu0 %v446
        %v1063 = vpop.f32.mrf.mxu0
        %v1064 = vadd.f32 0.0, %v1063
        %1065 = vmatmul.f32.gmra.mxu0 %v447
        %v1066 = vpop.f32.mrf.mxu0
        %v1067 = vadd.f32 0.0, %v1066
        %1068 = vmatmul.f32.gmra.mxu0 %v448
        %v1069 = vpop.f32.mrf.mxu0
        %v1070 = vadd.f32 0.0, %v1069
        %1071 = vmatmul.f32.gmra.mxu0 %v449
        %v1072 = vpop.f32.mrf.mxu0
        %v1073 = vadd.f32 0.0, %v1072
        %1074 = vmatmul.f32.gmra.mxu0 %v450
        %v1075 = vpop.f32.mrf.mxu0
        %v1076 = vadd.f32 0.0, %v1075
        %1077 = vmatmul.f32.gmra.mxu0 %v451
        %v1078 = vpop.f32.mrf.mxu0
        %v1079 = vadd.f32 0.0, %v1078
        %1080 = vmatmul.f32.gmra.mxu0 %v452
        %v1081 = vpop.f32.mrf.mxu0
        %v1082 = vadd.f32 0.0, %v1081
        %1083 = vmatmul.f32.gmra.mxu0 %v453
        %v1084 = vpop.f32.mrf.mxu0
        %v1085 = vadd.f32 0.0, %v1084
        %1086 = vmatmul.f32.gmra.mxu0 %v454
        %v1087 = vpop.f32.mrf.mxu0
        %v1088 = vadd.f32 0.0, %v1087
        %1089 = vmatmul.f32.gmra.mxu0 %v455
        %v1090 = vpop.f32.mrf.mxu0
        %v1091 = vadd.f32 0.0, %v1090
        %1092 = vmatmul.f32.gmra.mxu0 %v456
        %v1093 = vpop.f32.mrf.mxu0
        %v1094 = vadd.f32 0.0, %v1093
        %1095 = vmatmul.f32.gmra.mxu0 %v457
        %v1096 = vpop.f32.mrf.mxu0
        %v1097 = vadd.f32 0.0, %v1096
        %1098 = vmatmul.f32.gmra.mxu0 %v458
        %v1099 = vpop.f32.mrf.mxu0
        %v1100 = vadd.f32 0.0, %v1099
        %1101 = vdwg.mxu0
        %v1102 = vadd.f32 %v1004, %v1055
        %v1103 = vadd.f32 %v1005, %v1058
        %v1104 = vadd.f32 %v1006, %v1061
        %v1105 = vadd.f32 %v1007, %v1064
        %v1106 = vadd.f32 %v1008, %v1067
        %v1107 = vadd.f32 %v1009, %v1070
        %v1108 = vadd.f32 %v1010, %v1073
        %v1109 = vadd.f32 %v1011, %v1076
        %v1110 = vadd.f32 %v1012, %v1079
        %v1111 = vadd.f32 %v1013, %v1082
        %v1112 = vadd.f32 %v1014, %v1085
        %v1113 = vadd.f32 %v1015, %v1088
        %v1114 = vadd.f32 %v1016, %v1091
        %v1115 = vadd.f32 %v1017, %v1094
        %v1116 = vadd.f32 %v1018, %v1097
        %v1117 = vadd.f32 %v1019, %v1100
        %v1118 = vld [vmem:[%s442 + $0x18] sm:$0xff]
        %v1119 = vld [vmem:[%s442 + $0x20] sm:$0xff]
        %v1120 = vld [vmem:[%s442 + $0x50] sm:$0xff]
        %v1121 = vld [vmem:[%s442 + $0x58] sm:$0xff]
        %v1122 = vld [vmem:[%s442 + $0x88] sm:$0xff]
        %v1123 = vld [vmem:[%s442 + $0x90] sm:$0xff]
        %v1124 = vld [vmem:[%s442 + $0xc0] sm:$0xff]
        %v1125 = vld [vmem:[%s442 + $0xc8] sm:$0xff]
        %v1126 = vld [vmem:[%s442 + $0xf8] sm:$0xff]
        %v1127 = vld [vmem:[%s442 + $0x100] sm:$0xff]
        %v1128 = vld [vmem:[%s442 + $0x130] sm:$0xff]
        %v1129 = vld [vmem:[%s442 + $0x138] sm:$0xff]
        %v1130 = vld [vmem:[%s442 + $0x168] sm:$0xff]
        %v1131 = vld [vmem:[%s442 + $0x170] sm:$0xff]
        %v1132 = vld [vmem:[%s442 + $0x1a0] sm:$0xff]
        %v1133 = vld [vmem:[%s442 + $0x1a8] sm:$0xff]
        %s1134 = scalar_lea.vmem %s2, 640
        %v1135 = vld [vmem:[%s1134] sm:$0xff]
        %v1136 = vld [vmem:[%s1134 + $0x8] sm:$0xff]
        %v1137 = vld [vmem:[%s1134 + $0x10] sm:$0xff]
        %v1138 = vld [vmem:[%s1134 + $0x18] sm:$0xff]
        %v1139 = vld [vmem:[%s1134 + $0x20] sm:$0xff]
        %v1140 = vld [vmem:[%s1134 + $0x28] sm:$0xff]
        %v1141 = vld [vmem:[%s1134 + $0x30] sm:$0xff]
        %v1142 = vld [vmem:[%s1134 + $0x38] sm:$0xff]
        %v1143 = vld [vmem:[%s1134 + $0x40] sm:$0xff]
        %v1144 = vld [vmem:[%s1134 + $0x48] sm:$0xff]
        %v1145 = vld [vmem:[%s1134 + $0x50] sm:$0xff]
        %v1146 = vld [vmem:[%s1134 + $0x58] sm:$0xff]
        %v1147 = vld [vmem:[%s1134 + $0x60] sm:$0xff]
        %v1148 = vld [vmem:[%s1134 + $0x68] sm:$0xff]
        %v1149 = vld [vmem:[%s1134 + $0x70] sm:$0xff]
        %v1150 = vld [vmem:[%s1134 + $0x78] sm:$0xff]
        %1151 = vmatpush.msra.mxu0 %v1150
        %1152 = vmatpush.msra.mxu0 %v1149
        %1153 = vmatpush.msra.mxu0 %v1148
        %1154 = vmatpush.msra.mxu0 %v1147
        %1155 = vmatpush.msra.mxu0 %v1146
        %1156 = vmatpush.msra.mxu0 %v1145
        %1157 = vmatpush.msra.mxu0 %v1144
        %1158 = vmatpush.msra.mxu0 %v1143
        %1159 = vmatpush.msra.mxu0 %v1142
        %1160 = vmatpush.msra.mxu0 %v1141
        %1161 = vmatpush.msra.mxu0 %v1140
        %1162 = vmatpush.msra.mxu0 %v1139
        %1163 = vmatpush.msra.mxu0 %v1138
        %1164 = vmatpush.msra.mxu0 %v1137
        %1165 = vmatpush.msra.mxu0 %v1136
        %1166 = vmatpush.msra.mxu0 %v1135
        %1167 = vmatmul.f32.gmra.mxu0 %v1118
        %v1168 = vpop.f32.mrf.mxu0
        %v1169 = vadd.f32 0.0, %v1168
        %1170 = vmatmul.f32.gmra.mxu0 %v1119
        %v1171 = vpop.f32.mrf.mxu0
        %v1172 = vadd.f32 0.0, %v1171
        %1173 = vmatmul.f32.gmra.mxu0 %v1120
        %v1174 = vpop.f32.mrf.mxu0
        %v1175 = vadd.f32 0.0, %v1174
        %1176 = vmatmul.f32.gmra.mxu0 %v1121
        %v1177 = vpop.f32.mrf.mxu0
        %v1178 = vadd.f32 0.0, %v1177
        %1179 = vmatmul.f32.gmra.mxu0 %v1122
        %v1180 = vpop.f32.mrf.mxu0
        %v1181 = vadd.f32 0.0, %v1180
        %1182 = vmatmul.f32.gmra.mxu0 %v1123
        %v1183 = vpop.f32.mrf.mxu0
        %v1184 = vadd.f32 0.0, %v1183
        %1185 = vmatmul.f32.gmra.mxu0 %v1124
        %v1186 = vpop.f32.mrf.mxu0
        %v1187 = vadd.f32 0.0, %v1186
        %1188 = vmatmul.f32.gmra.mxu0 %v1125
        %v1189 = vpop.f32.mrf.mxu0
        %v1190 = vadd.f32 0.0, %v1189
        %1191 = vmatmul.f32.gmra.mxu0 %v1126
        %v1192 = vpop.f32.mrf.mxu0
        %v1193 = vadd.f32 0.0, %v1192
        %1194 = vmatmul.f32.gmra.mxu0 %v1127
        %v1195 = vpop.f32.mrf.mxu0
        %v1196 = vadd.f32 0.0, %v1195
        %1197 = vmatmul.f32.gmra.mxu0 %v1128
        %v1198 = vpop.f32.mrf.mxu0
        %v1199 = vadd.f32 0.0, %v1198
        %1200 = vmatmul.f32.gmra.mxu0 %v1129
        %v1201 = vpop.f32.mrf.mxu0
        %v1202 = vadd.f32 0.0, %v1201
        %1203 = vmatmul.f32.gmra.mxu0 %v1130
        %v1204 = vpop.f32.mrf.mxu0
        %v1205 = vadd.f32 0.0, %v1204
        %1206 = vmatmul.f32.gmra.mxu0 %v1131
        %v1207 = vpop.f32.mrf.mxu0
        %v1208 = vadd.f32 0.0, %v1207
        %1209 = vmatmul.f32.gmra.mxu0 %v1132
        %v1210 = vpop.f32.mrf.mxu0
        %v1211 = vadd.f32 0.0, %v1210
        %1212 = vmatmul.f32.gmra.mxu0 %v1133
        %v1213 = vpop.f32.mrf.mxu0
        %v1214 = vadd.f32 0.0, %v1213
        %1215 = vdwg.mxu0
        %v1216 = vadd.f32 %v1102, %v1169
        %v1217 = vadd.f32 %v1103, %v1172
        %v1218 = vadd.f32 %v1104, %v1175
        %v1219 = vadd.f32 %v1105, %v1178
        %v1220 = vadd.f32 %v1106, %v1181
        %v1221 = vadd.f32 %v1107, %v1184
        %v1222 = vadd.f32 %v1108, %v1187
        %v1223 = vadd.f32 %v1109, %v1190
        %v1224 = vadd.f32 %v1110, %v1193
        %v1225 = vadd.f32 %v1111, %v1196
        %v1226 = vadd.f32 %v1112, %v1199
        %v1227 = vadd.f32 %v1113, %v1202
        %v1228 = vadd.f32 %v1114, %v1205
        %v1229 = vadd.f32 %v1115, %v1208
        %v1230 = vadd.f32 %v1116, %v1211
        %v1231 = vadd.f32 %v1117, %v1214
        %s1232 = sadd.s32 %s439, 24
        %s1233 = smul.u32 %s1232, 56
        %s1234 = scalar_lea.vmem %s415, %s1233
        %v1235 = vld [vmem:[%s1234 + $0xc] sm:$0xff]
        %v1236 = vld [vmem:[%s1234 + $0x14] sm:$0xff]
        %v1237 = vld [vmem:[%s1234 + $0x44] sm:$0xff]
        %v1238 = vld [vmem:[%s1234 + $0x4c] sm:$0xff]
        %v1239 = vld [vmem:[%s1234 + $0x7c] sm:$0xff]
        %v1240 = vld [vmem:[%s1234 + $0x84] sm:$0xff]
        %v1241 = vld [vmem:[%s1234 + $0xb4] sm:$0xff]
        %v1242 = vld [vmem:[%s1234 + $0xbc] sm:$0xff]
        %v1243 = vld [vmem:[%s1234 + $0xec] sm:$0xff]
        %v1244 = vld [vmem:[%s1234 + $0xf4] sm:$0xff]
        %v1245 = vld [vmem:[%s1234 + $0x124] sm:$0xff]
        %v1246 = vld [vmem:[%s1234 + $0x12c] sm:$0xff]
        %v1247 = vld [vmem:[%s1234 + $0x15c] sm:$0xff]
        %v1248 = vld [vmem:[%s1234 + $0x164] sm:$0xff]
        %v1249 = vld [vmem:[%s1234 + $0x194] sm:$0xff]
        %v1250 = vld [vmem:[%s1234 + $0x19c] sm:$0xff]
        %s1251 = scalar_lea.vmem %s2, 768
        %v1252 = vld [vmem:[%s1251] sm:$0xff]
        %v1253 = vld [vmem:[%s1251 + $0x8] sm:$0xff]
        %v1254 = vld [vmem:[%s1251 + $0x10] sm:$0xff]
        %v1255 = vld [vmem:[%s1251 + $0x18] sm:$0xff]
        %v1256 = vld [vmem:[%s1251 + $0x20] sm:$0xff]
        %v1257 = vld [vmem:[%s1251 + $0x28] sm:$0xff]
        %v1258 = vld [vmem:[%s1251 + $0x30] sm:$0xff]
        %v1259 = vld [vmem:[%s1251 + $0x38] sm:$0xff]
        %v1260 = vld [vmem:[%s1251 + $0x40] sm:$0xff]
        %v1261 = vld [vmem:[%s1251 + $0x48] sm:$0xff]
        %v1262 = vld [vmem:[%s1251 + $0x50] sm:$0xff]
        %v1263 = vld [vmem:[%s1251 + $0x58] sm:$0xff]
        %v1264 = vld [vmem:[%s1251 + $0x60] sm:$0xff]
        %v1265 = vld [vmem:[%s1251 + $0x68] sm:$0xff]
        %v1266 = vld [vmem:[%s1251 + $0x70] sm:$0xff]
        %v1267 = vld [vmem:[%s1251 + $0x78] sm:$0xff]
        %1268 = vmatpush.msra.mxu0 %v1267
        %1269 = vmatpush.msra.mxu0 %v1266
        %1270 = vmatpush.msra.mxu0 %v1265
        %1271 = vmatpush.msra.mxu0 %v1264
        %1272 = vmatpush.msra.mxu0 %v1263
        %1273 = vmatpush.msra.mxu0 %v1262
        %1274 = vmatpush.msra.mxu0 %v1261
        %1275 = vmatpush.msra.mxu0 %v1260
        %1276 = vmatpush.msra.mxu0 %v1259
        %1277 = vmatpush.msra.mxu0 %v1258
        %1278 = vmatpush.msra.mxu0 %v1257
        %1279 = vmatpush.msra.mxu0 %v1256
        %1280 = vmatpush.msra.mxu0 %v1255
        %1281 = vmatpush.msra.mxu0 %v1254
        %1282 = vmatpush.msra.mxu0 %v1253
        %1283 = vmatpush.msra.mxu0 %v1252
        %1284 = vmatmul.f32.gmra.mxu0 %v1235
        %v1285 = vpop.f32.mrf.mxu0
        %v1286 = vadd.f32 0.0, %v1285
        %1287 = vmatmul.f32.gmra.mxu0 %v1236
        %v1288 = vpop.f32.mrf.mxu0
        %v1289 = vadd.f32 0.0, %v1288
        %1290 = vmatmul.f32.gmra.mxu0 %v1237
        %v1291 = vpop.f32.mrf.mxu0
        %v1292 = vadd.f32 0.0, %v1291
        %1293 = vmatmul.f32.gmra.mxu0 %v1238
        %v1294 = vpop.f32.mrf.mxu0
        %v1295 = vadd.f32 0.0, %v1294
        %1296 = vmatmul.f32.gmra.mxu0 %v1239
        %v1297 = vpop.f32.mrf.mxu0
        %v1298 = vadd.f32 0.0, %v1297
        %1299 = vmatmul.f32.gmra.mxu0 %v1240
        %v1300 = vpop.f32.mrf.mxu0
        %v1301 = vadd.f32 0.0, %v1300
        %1302 = vmatmul.f32.gmra.mxu0 %v1241
        %v1303 = vpop.f32.mrf.mxu0
        %v1304 = vadd.f32 0.0, %v1303
        %1305 = vmatmul.f32.gmra.mxu0 %v1242
        %v1306 = vpop.f32.mrf.mxu0
        %v1307 = vadd.f32 0.0, %v1306
        %1308 = vmatmul.f32.gmra.mxu0 %v1243
        %v1309 = vpop.f32.mrf.mxu0
        %v1310 = vadd.f32 0.0, %v1309
        %1311 = vmatmul.f32.gmra.mxu0 %v1244
        %v1312 = vpop.f32.mrf.mxu0
        %v1313 = vadd.f32 0.0, %v1312
        %1314 = vmatmul.f32.gmra.mxu0 %v1245
        %v1315 = vpop.f32.mrf.mxu0
        %v1316 = vadd.f32 0.0, %v1315
        %1317 = vmatmul.f32.gmra.mxu0 %v1246
        %v1318 = vpop.f32.mrf.mxu0
        %v1319 = vadd.f32 0.0, %v1318
        %1320 = vmatmul.f32.gmra.mxu0 %v1247
        %v1321 = vpop.f32.mrf.mxu0
        %v1322 = vadd.f32 0.0, %v1321
        %1323 = vmatmul.f32.gmra.mxu0 %v1248
        %v1324 = vpop.f32.mrf.mxu0
        %v1325 = vadd.f32 0.0, %v1324
        %1326 = vmatmul.f32.gmra.mxu0 %v1249
        %v1327 = vpop.f32.mrf.mxu0
        %v1328 = vadd.f32 0.0, %v1327
        %1329 = vmatmul.f32.gmra.mxu0 %v1250
        %v1330 = vpop.f32.mrf.mxu0
        %v1331 = vadd.f32 0.0, %v1330
        %1332 = vdwg.mxu0
        %v1333 = vadd.f32 %v1216, %v1286
        %v1334 = vadd.f32 %v1217, %v1289
        %v1335 = vadd.f32 %v1218, %v1292
        %v1336 = vadd.f32 %v1219, %v1295
        %v1337 = vadd.f32 %v1220, %v1298
        %v1338 = vadd.f32 %v1221, %v1301
        %v1339 = vadd.f32 %v1222, %v1304
        %v1340 = vadd.f32 %v1223, %v1307
        %v1341 = vadd.f32 %v1224, %v1310
        %v1342 = vadd.f32 %v1225, %v1313
        %v1343 = vadd.f32 %v1226, %v1316
        %v1344 = vadd.f32 %v1227, %v1319
        %v1345 = vadd.f32 %v1228, %v1322
        %v1346 = vadd.f32 %v1229, %v1325
        %v1347 = vadd.f32 %v1230, %v1328
        %v1348 = vadd.f32 %v1231, %v1331
        %v1349 = vld [vmem:[%s1234 + $0x12] sm:$0xff]
        %v1350 = vld [vmem:[%s1234 + $0x1a] sm:$0xff]
        %v1351 = vld [vmem:[%s1234 + $0x4a] sm:$0xff]
        %v1352 = vld [vmem:[%s1234 + $0x52] sm:$0xff]
        %v1353 = vld [vmem:[%s1234 + $0x82] sm:$0xff]
        %v1354 = vld [vmem:[%s1234 + $0x8a] sm:$0xff]
        %v1355 = vld [vmem:[%s1234 + $0xba] sm:$0xff]
        %v1356 = vld [vmem:[%s1234 + $0xc2] sm:$0xff]
        %v1357 = vld [vmem:[%s1234 + $0xf2] sm:$0xff]
        %v1358 = vld [vmem:[%s1234 + $0xfa] sm:$0xff]
        %v1359 = vld [vmem:[%s1234 + $0x12a] sm:$0xff]
        %v1360 = vld [vmem:[%s1234 + $0x132] sm:$0xff]
        %v1361 = vld [vmem:[%s1234 + $0x162] sm:$0xff]
        %v1362 = vld [vmem:[%s1234 + $0x16a] sm:$0xff]
        %v1363 = vld [vmem:[%s1234 + $0x19a] sm:$0xff]
        %v1364 = vld [vmem:[%s1234 + $0x1a2] sm:$0xff]
        %s1365 = scalar_lea.vmem %s2, 896
        %v1366 = vld [vmem:[%s1365] sm:$0xff]
        %v1367 = vld [vmem:[%s1365 + $0x8] sm:$0xff]
        %v1368 = vld [vmem:[%s1365 + $0x10] sm:$0xff]
        %v1369 = vld [vmem:[%s1365 + $0x18] sm:$0xff]
        %v1370 = vld [vmem:[%s1365 + $0x20] sm:$0xff]
        %v1371 = vld [vmem:[%s1365 + $0x28] sm:$0xff]
        %v1372 = vld [vmem:[%s1365 + $0x30] sm:$0xff]
        %v1373 = vld [vmem:[%s1365 + $0x38] sm:$0xff]
        %v1374 = vld [vmem:[%s1365 + $0x40] sm:$0xff]
        %v1375 = vld [vmem:[%s1365 + $0x48] sm:$0xff]
        %v1376 = vld [vmem:[%s1365 + $0x50] sm:$0xff]
        %v1377 = vld [vmem:[%s1365 + $0x58] sm:$0xff]
        %v1378 = vld [vmem:[%s1365 + $0x60] sm:$0xff]
        %v1379 = vld [vmem:[%s1365 + $0x68] sm:$0xff]
        %v1380 = vld [vmem:[%s1365 + $0x70] sm:$0xff]
        %v1381 = vld [vmem:[%s1365 + $0x78] sm:$0xff]
        %1382 = vmatpush.msra.mxu0 %v1381
        %1383 = vmatpush.msra.mxu0 %v1380
        %1384 = vmatpush.msra.mxu0 %v1379
        %1385 = vmatpush.msra.mxu0 %v1378
        %1386 = vmatpush.msra.mxu0 %v1377
        %1387 = vmatpush.msra.mxu0 %v1376
        %1388 = vmatpush.msra.mxu0 %v1375
        %1389 = vmatpush.msra.mxu0 %v1374
        %1390 = vmatpush.msra.mxu0 %v1373
        %1391 = vmatpush.msra.mxu0 %v1372
        %1392 = vmatpush.msra.mxu0 %v1371
        %1393 = vmatpush.msra.mxu0 %v1370
        %1394 = vmatpush.msra.mxu0 %v1369
        %1395 = vmatpush.msra.mxu0 %v1368
        %1396 = vmatpush.msra.mxu0 %v1367
        %1397 = vmatpush.msra.mxu0 %v1366
        %1398 = vmatmul.f32.gmra.mxu0 %v1349
        %v1399 = vpop.f32.mrf.mxu0
        %v1400 = vadd.f32 0.0, %v1399
        %1401 = vmatmul.f32.gmra.mxu0 %v1350
        %v1402 = vpop.f32.mrf.mxu0
        %v1403 = vadd.f32 0.0, %v1402
        %1404 = vmatmul.f32.gmra.mxu0 %v1351
        %v1405 = vpop.f32.mrf.mxu0
        %v1406 = vadd.f32 0.0, %v1405
        %1407 = vmatmul.f32.gmra.mxu0 %v1352
        %v1408 = vpop.f32.mrf.mxu0
        %v1409 = vadd.f32 0.0, %v1408
        %1410 = vmatmul.f32.gmra.mxu0 %v1353
        %v1411 = vpop.f32.mrf.mxu0
        %v1412 = vadd.f32 0.0, %v1411
        %1413 = vmatmul.f32.gmra.mxu0 %v1354
        %v1414 = vpop.f32.mrf.mxu0
        %v1415 = vadd.f32 0.0, %v1414
        %1416 = vmatmul.f32.gmra.mxu0 %v1355
        %v1417 = vpop.f32.mrf.mxu0
        %v1418 = vadd.f32 0.0, %v1417
        %1419 = vmatmul.f32.gmra.mxu0 %v1356
        %v1420 = vpop.f32.mrf.mxu0
        %v1421 = vadd.f32 0.0, %v1420
        %1422 = vmatmul.f32.gmra.mxu0 %v1357
        %v1423 = vpop.f32.mrf.mxu0
        %v1424 = vadd.f32 0.0, %v1423
        %1425 = vmatmul.f32.gmra.mxu0 %v1358
        %v1426 = vpop.f32.mrf.mxu0
        %v1427 = vadd.f32 0.0, %v1426
        %1428 = vmatmul.f32.gmra.mxu0 %v1359
        %v1429 = vpop.f32.mrf.mxu0
        %v1430 = vadd.f32 0.0, %v1429
        %1431 = vmatmul.f32.gmra.mxu0 %v1360
        %v1432 = vpop.f32.mrf.mxu0
        %v1433 = vadd.f32 0.0, %v1432
        %1434 = vmatmul.f32.gmra.mxu0 %v1361
        %v1435 = vpop.f32.mrf.mxu0
        %v1436 = vadd.f32 0.0, %v1435
        %1437 = vmatmul.f32.gmra.mxu0 %v1362
        %v1438 = vpop.f32.mrf.mxu0
        %v1439 = vadd.f32 0.0, %v1438
        %1440 = vmatmul.f32.gmra.mxu0 %v1363
        %v1441 = vpop.f32.mrf.mxu0
        %v1442 = vadd.f32 0.0, %v1441
        %1443 = vmatmul.f32.gmra.mxu0 %v1364
        %v1444 = vpop.f32.mrf.mxu0
        %v1445 = vadd.f32 0.0, %v1444
        %1446 = vdwg.mxu0
        %v1447 = vadd.f32 %v1333, %v1400
        %v1448 = vadd.f32 %v1334, %v1403
        %v1449 = vadd.f32 %v1335, %v1406
        %v1450 = vadd.f32 %v1336, %v1409
        %v1451 = vadd.f32 %v1337, %v1412
        %v1452 = vadd.f32 %v1338, %v1415
        %v1453 = vadd.f32 %v1339, %v1418
        %v1454 = vadd.f32 %v1340, %v1421
        %v1455 = vadd.f32 %v1341, %v1424
        %v1456 = vadd.f32 %v1342, %v1427
        %v1457 = vadd.f32 %v1343, %v1430
        %v1458 = vadd.f32 %v1344, %v1433
        %v1459 = vadd.f32 %v1345, %v1436
        %v1460 = vadd.f32 %v1346, %v1439
        %v1461 = vadd.f32 %v1347, %v1442
        %v1462 = vadd.f32 %v1348, %v1445
        %v1463 = vld [vmem:[%s1234 + $0x18] sm:$0xff]
        %v1464 = vld [vmem:[%s1234 + $0x20] sm:$0xff]
        %v1465 = vld [vmem:[%s1234 + $0x50] sm:$0xff]
        %v1466 = vld [vmem:[%s1234 + $0x58] sm:$0xff]
        %v1467 = vld [vmem:[%s1234 + $0x88] sm:$0xff]
        %v1468 = vld [vmem:[%s1234 + $0x90] sm:$0xff]
        %v1469 = vld [vmem:[%s1234 + $0xc0] sm:$0xff]
        %v1470 = vld [vmem:[%s1234 + $0xc8] sm:$0xff]
        %v1471 = vld [vmem:[%s1234 + $0xf8] sm:$0xff]
        %v1472 = vld [vmem:[%s1234 + $0x100] sm:$0xff]
        %v1473 = vld [vmem:[%s1234 + $0x130] sm:$0xff]
        %v1474 = vld [vmem:[%s1234 + $0x138] sm:$0xff]
        %v1475 = vld [vmem:[%s1234 + $0x168] sm:$0xff]
        %v1476 = vld [vmem:[%s1234 + $0x170] sm:$0xff]
        %v1477 = vld [vmem:[%s1234 + $0x1a0] sm:$0xff]
        %v1478 = vld [vmem:[%s1234 + $0x1a8] sm:$0xff]
        %s1479 = scalar_lea.vmem %s2, 1024
        %v1480 = vld [vmem:[%s1479] sm:$0xff]
        %v1481 = vld [vmem:[%s1479 + $0x8] sm:$0xff]
        %v1482 = vld [vmem:[%s1479 + $0x10] sm:$0xff]
        %v1483 = vld [vmem:[%s1479 + $0x18] sm:$0xff]
        %v1484 = vld [vmem:[%s1479 + $0x20] sm:$0xff]
        %v1485 = vld [vmem:[%s1479 + $0x28] sm:$0xff]
        %v1486 = vld [vmem:[%s1479 + $0x30] sm:$0xff]
        %v1487 = vld [vmem:[%s1479 + $0x38] sm:$0xff]
        %v1488 = vld [vmem:[%s1479 + $0x40] sm:$0xff]
        %v1489 = vld [vmem:[%s1479 + $0x48] sm:$0xff]
        %v1490 = vld [vmem:[%s1479 + $0x50] sm:$0xff]
        %v1491 = vld [vmem:[%s1479 + $0x58] sm:$0xff]
        %v1492 = vld [vmem:[%s1479 + $0x60] sm:$0xff]
        %v1493 = vld [vmem:[%s1479 + $0x68] sm:$0xff]
        %v1494 = vld [vmem:[%s1479 + $0x70] sm:$0xff]
        %v1495 = vld [vmem:[%s1479 + $0x78] sm:$0xff]
        %1496 = vmatpush.msra.mxu0 %v1495
        %1497 = vmatpush.msra.mxu0 %v1494
        %1498 = vmatpush.msra.mxu0 %v1493
        %1499 = vmatpush.msra.mxu0 %v1492
        %1500 = vmatpush.msra.mxu0 %v1491
        %1501 = vmatpush.msra.mxu0 %v1490
        %1502 = vmatpush.msra.mxu0 %v1489
        %1503 = vmatpush.msra.mxu0 %v1488
        %1504 = vmatpush.msra.mxu0 %v1487
        %1505 = vmatpush.msra.mxu0 %v1486
        %1506 = vmatpush.msra.mxu0 %v1485
        %1507 = vmatpush.msra.mxu0 %v1484
        %1508 = vmatpush.msra.mxu0 %v1483
        %1509 = vmatpush.msra.mxu0 %v1482
        %1510 = vmatpush.msra.mxu0 %v1481
        %1511 = vmatpush.msra.mxu0 %v1480
        %1512 = vmatmul.f32.gmra.mxu0 %v1463
        %v1513 = vpop.f32.mrf.mxu0
        %v1514 = vadd.f32 0.0, %v1513
        %1515 = vmatmul.f32.gmra.mxu0 %v1464
        %v1516 = vpop.f32.mrf.mxu0
        %v1517 = vadd.f32 0.0, %v1516
        %1518 = vmatmul.f32.gmra.mxu0 %v1465
        %v1519 = vpop.f32.mrf.mxu0
        %v1520 = vadd.f32 0.0, %v1519
        %1521 = vmatmul.f32.gmra.mxu0 %v1466
        %v1522 = vpop.f32.mrf.mxu0
        %v1523 = vadd.f32 0.0, %v1522
        %1524 = vmatmul.f32.gmra.mxu0 %v1467
        %v1525 = vpop.f32.mrf.mxu0
        %v1526 = vadd.f32 0.0, %v1525
        %1527 = vmatmul.f32.gmra.mxu0 %v1468
        %v1528 = vpop.f32.mrf.mxu0
        %v1529 = vadd.f32 0.0, %v1528
        %1530 = vmatmul.f32.gmra.mxu0 %v1469
        %v1531 = vpop.f32.mrf.mxu0
        %v1532 = vadd.f32 0.0, %v1531
        %1533 = vmatmul.f32.gmra.mxu0 %v1470
        %v1534 = vpop.f32.mrf.mxu0
        %v1535 = vadd.f32 0.0, %v1534
        %1536 = vmatmul.f32.gmra.mxu0 %v1471
        %v1537 = vpop.f32.mrf.mxu0
        %v1538 = vadd.f32 0.0, %v1537
        %1539 = vmatmul.f32.gmra.mxu0 %v1472
        %v1540 = vpop.f32.mrf.mxu0
        %v1541 = vadd.f32 0.0, %v1540
        %1542 = vmatmul.f32.gmra.mxu0 %v1473
        %v1543 = vpop.f32.mrf.mxu0
        %v1544 = vadd.f32 0.0, %v1543
        %1545 = vmatmul.f32.gmra.mxu0 %v1474
        %v1546 = vpop.f32.mrf.mxu0
        %v1547 = vadd.f32 0.0, %v1546
        %1548 = vmatmul.f32.gmra.mxu0 %v1475
        %v1549 = vpop.f32.mrf.mxu0
        %v1550 = vadd.f32 0.0, %v1549
        %1551 = vmatmul.f32.gmra.mxu0 %v1476
        %v1552 = vpop.f32.mrf.mxu0
        %v1553 = vadd.f32 0.0, %v1552
        %1554 = vmatmul.f32.gmra.mxu0 %v1477
        %v1555 = vpop.f32.mrf.mxu0
        %v1556 = vadd.f32 0.0, %v1555
        %1557 = vmatmul.f32.gmra.mxu0 %v1478
        %v1558 = vpop.f32.mrf.mxu0
        %v1559 = vadd.f32 0.0, %v1558
        %1560 = vdwg.mxu0
        %v1561 = vadd.f32 %v1447, %v1514
        %v1562 = vadd.f32 %v1448, %v1517
        %v1563 = vadd.f32 %v1449, %v1520
        %v1564 = vadd.f32 %v1450, %v1523
        %v1565 = vadd.f32 %v1451, %v1526
        %v1566 = vadd.f32 %v1452, %v1529
        %v1567 = vadd.f32 %v1453, %v1532
        %v1568 = vadd.f32 %v1454, %v1535
        %v1569 = vadd.f32 %v1455, %v1538
        %v1570 = vadd.f32 %v1456, %v1541
        %v1571 = vadd.f32 %v1457, %v1544
        %v1572 = vadd.f32 %v1458, %v1547
        %v1573 = vadd.f32 %v1459, %v1550
        %v1574 = vadd.f32 %v1460, %v1553
        %v1575 = vadd.f32 %v1461, %v1556
        %v1576 = vadd.f32 %v1462, %v1559
        %s1577 = sadd.s32 %s439, 6
        %s1578 = smul.u32 %s1577, 56
        %s1579 = scalar_lea.vmem %s415, %s1578
        %v1580 = vld [vmem:[%s1579 + $0x6] sm:$0xff]
        %v1581 = vld [vmem:[%s1579 + $0xe] sm:$0xff]
        %v1582 = vld [vmem:[%s1579 + $0x3e] sm:$0xff]
        %v1583 = vld [vmem:[%s1579 + $0x46] sm:$0xff]
        %v1584 = vld [vmem:[%s1579 + $0x76] sm:$0xff]
        %v1585 = vld [vmem:[%s1579 + $0x7e] sm:$0xff]
        %v1586 = vld [vmem:[%s1579 + $0xae] sm:$0xff]
        %v1587 = vld [vmem:[%s1579 + $0xb6] sm:$0xff]
        %v1588 = vld [vmem:[%s1579 + $0xe6] sm:$0xff]
        %v1589 = vld [vmem:[%s1579 + $0xee] sm:$0xff]
        %v1590 = vld [vmem:[%s1579 + $0x11e] sm:$0xff]
        %v1591 = vld [vmem:[%s1579 + $0x126] sm:$0xff]
        %v1592 = vld [vmem:[%s1579 + $0x156] sm:$0xff]
        %v1593 = vld [vmem:[%s1579 + $0x15e] sm:$0xff]
        %v1594 = vld [vmem:[%s1579 + $0x18e] sm:$0xff]
        %v1595 = vld [vmem:[%s1579 + $0x196] sm:$0xff]
        %v1596 = vld [vmem:[%s3] sm:$0xff]
        %v1597 = vld [vmem:[%s3 + $0x8] sm:$0xff]
        %v1598 = vld [vmem:[%s3 + $0x10] sm:$0xff]
        %v1599 = vld [vmem:[%s3 + $0x18] sm:$0xff]
        %v1600 = vld [vmem:[%s3 + $0x20] sm:$0xff]
        %v1601 = vld [vmem:[%s3 + $0x28] sm:$0xff]
        %v1602 = vld [vmem:[%s3 + $0x30] sm:$0xff]
        %v1603 = vld [vmem:[%s3 + $0x38] sm:$0xff]
        %v1604 = vld [vmem:[%s3 + $0x40] sm:$0xff]
        %v1605 = vld [vmem:[%s3 + $0x48] sm:$0xff]
        %v1606 = vld [vmem:[%s3 + $0x50] sm:$0xff]
        %v1607 = vld [vmem:[%s3 + $0x58] sm:$0xff]
        %v1608 = vld [vmem:[%s3 + $0x60] sm:$0xff]
        %v1609 = vld [vmem:[%s3 + $0x68] sm:$0xff]
        %v1610 = vld [vmem:[%s3 + $0x70] sm:$0xff]
        %v1611 = vld [vmem:[%s3 + $0x78] sm:$0xff]
        %1612 = vmatpush.msra.mxu0 %v1611
        %1613 = vmatpush.msra.mxu0 %v1610
        %1614 = vmatpush.msra.mxu0 %v1609
        %1615 = vmatpush.msra.mxu0 %v1608
        %1616 = vmatpush.msra.mxu0 %v1607
        %1617 = vmatpush.msra.mxu0 %v1606
        %1618 = vmatpush.msra.mxu0 %v1605
        %1619 = vmatpush.msra.mxu0 %v1604
        %1620 = vmatpush.msra.mxu0 %v1603
        %1621 = vmatpush.msra.mxu0 %v1602
        %1622 = vmatpush.msra.mxu0 %v1601
        %1623 = vmatpush.msra.mxu0 %v1600
        %1624 = vmatpush.msra.mxu0 %v1599
        %1625 = vmatpush.msra.mxu0 %v1598
        %1626 = vmatpush.msra.mxu0 %v1597
        %1627 = vmatpush.msra.mxu0 %v1596
        %1628 = vmatmul.f32.gmra.mxu0 %v1580
        %v1629 = vpop.f32.mrf.mxu0
        %v1630 = vadd.f32 0.0, %v1629
        %1631 = vmatmul.f32.gmra.mxu0 %v1581
        %v1632 = vpop.f32.mrf.mxu0
        %v1633 = vadd.f32 0.0, %v1632
        %1634 = vmatmul.f32.gmra.mxu0 %v1582
        %v1635 = vpop.f32.mrf.mxu0
        %v1636 = vadd.f32 0.0, %v1635
        %1637 = vmatmul.f32.gmra.mxu0 %v1583
        %v1638 = vpop.f32.mrf.mxu0
        %v1639 = vadd.f32 0.0, %v1638
        %1640 = vmatmul.f32.gmra.mxu0 %v1584
        %v1641 = vpop.f32.mrf.mxu0
        %v1642 = vadd.f32 0.0, %v1641
        %1643 = vmatmul.f32.gmra.mxu0 %v1585
        %v1644 = vpop.f32.mrf.mxu0
        %v1645 = vadd.f32 0.0, %v1644
        %1646 = vmatmul.f32.gmra.mxu0 %v1586
        %v1647 = vpop.f32.mrf.mxu0
        %v1648 = vadd.f32 0.0, %v1647
        %1649 = vmatmul.f32.gmra.mxu0 %v1587
        %v1650 = vpop.f32.mrf.mxu0
        %v1651 = vadd.f32 0.0, %v1650
        %1652 = vmatmul.f32.gmra.mxu0 %v1588
        %v1653 = vpop.f32.mrf.mxu0
        %v1654 = vadd.f32 0.0, %v1653
        %1655 = vmatmul.f32.gmra.mxu0 %v1589
        %v1656 = vpop.f32.mrf.mxu0
        %v1657 = vadd.f32 0.0, %v1656
        %1658 = vmatmul.f32.gmra.mxu0 %v1590
        %v1659 = vpop.f32.mrf.mxu0
        %v1660 = vadd.f32 0.0, %v1659
        %1661 = vmatmul.f32.gmra.mxu0 %v1591
        %v1662 = vpop.f32.mrf.mxu0
        %v1663 = vadd.f32 0.0, %v1662
        %1664 = vmatmul.f32.gmra.mxu0 %v1592
        %v1665 = vpop.f32.mrf.mxu0
        %v1666 = vadd.f32 0.0, %v1665
        %1667 = vmatmul.f32.gmra.mxu0 %v1593
        %v1668 = vpop.f32.mrf.mxu0
        %v1669 = vadd.f32 0.0, %v1668
        %1670 = vmatmul.f32.gmra.mxu0 %v1594
        %v1671 = vpop.f32.mrf.mxu0
        %v1672 = vadd.f32 0.0, %v1671
        %1673 = vmatmul.f32.gmra.mxu0 %v1595
        %v1674 = vpop.f32.mrf.mxu0
        %v1675 = vadd.f32 0.0, %v1674
        %1676 = vdwg.mxu0
        %v1677 = vadd.f32 %v1561, %v1630
        %v1678 = vadd.f32 %v1562, %v1633
        %v1679 = vadd.f32 %v1563, %v1636
        %v1680 = vadd.f32 %v1564, %v1639
        %v1681 = vadd.f32 %v1565, %v1642
        %v1682 = vadd.f32 %v1566, %v1645
        %v1683 = vadd.f32 %v1567, %v1648
        %v1684 = vadd.f32 %v1568, %v1651
        %v1685 = vadd.f32 %v1569, %v1654
        %v1686 = vadd.f32 %v1570, %v1657
        %v1687 = vadd.f32 %v1571, %v1660
        %v1688 = vadd.f32 %v1572, %v1663
        %v1689 = vadd.f32 %v1573, %v1666
        %v1690 = vadd.f32 %v1574, %v1669
        %v1691 = vadd.f32 %v1575, %v1672
        %v1692 = vadd.f32 %v1576, %v1675
        %v1693 = vld [vmem:[%s1579 + $0x12] sm:$0xff]
        %v1694 = vld [vmem:[%s1579 + $0x1a] sm:$0xff]
        %v1695 = vld [vmem:[%s1579 + $0x4a] sm:$0xff]
        %v1696 = vld [vmem:[%s1579 + $0x52] sm:$0xff]
        %v1697 = vld [vmem:[%s1579 + $0x82] sm:$0xff]
        %v1698 = vld [vmem:[%s1579 + $0x8a] sm:$0xff]
        %v1699 = vld [vmem:[%s1579 + $0xba] sm:$0xff]
        %v1700 = vld [vmem:[%s1579 + $0xc2] sm:$0xff]
        %v1701 = vld [vmem:[%s1579 + $0xf2] sm:$0xff]
        %v1702 = vld [vmem:[%s1579 + $0xfa] sm:$0xff]
        %v1703 = vld [vmem:[%s1579 + $0x12a] sm:$0xff]
        %v1704 = vld [vmem:[%s1579 + $0x132] sm:$0xff]
        %v1705 = vld [vmem:[%s1579 + $0x162] sm:$0xff]
        %v1706 = vld [vmem:[%s1579 + $0x16a] sm:$0xff]
        %v1707 = vld [vmem:[%s1579 + $0x19a] sm:$0xff]
        %v1708 = vld [vmem:[%s1579 + $0x1a2] sm:$0xff]
        %s1709 = scalar_lea.vmem %s3, 128
        %v1710 = vld [vmem:[%s1709] sm:$0xff]
        %v1711 = vld [vmem:[%s1709 + $0x8] sm:$0xff]
        %v1712 = vld [vmem:[%s1709 + $0x10] sm:$0xff]
        %v1713 = vld [vmem:[%s1709 + $0x18] sm:$0xff]
        %v1714 = vld [vmem:[%s1709 + $0x20] sm:$0xff]
        %v1715 = vld [vmem:[%s1709 + $0x28] sm:$0xff]
        %v1716 = vld [vmem:[%s1709 + $0x30] sm:$0xff]
        %v1717 = vld [vmem:[%s1709 + $0x38] sm:$0xff]
        %v1718 = vld [vmem:[%s1709 + $0x40] sm:$0xff]
        %v1719 = vld [vmem:[%s1709 + $0x48] sm:$0xff]
        %v1720 = vld [vmem:[%s1709 + $0x50] sm:$0xff]
        %v1721 = vld [vmem:[%s1709 + $0x58] sm:$0xff]
        %v1722 = vld [vmem:[%s1709 + $0x60] sm:$0xff]
        %v1723 = vld [vmem:[%s1709 + $0x68] sm:$0xff]
        %v1724 = vld [vmem:[%s1709 + $0x70] sm:$0xff]
        %v1725 = vld [vmem:[%s1709 + $0x78] sm:$0xff]
        %1726 = vmatpush.msra.mxu0 %v1725
        %1727 = vmatpush.msra.mxu0 %v1724
        %1728 = vmatpush.msra.mxu0 %v1723
        %1729 = vmatpush.msra.mxu0 %v1722
        %1730 = vmatpush.msra.mxu0 %v1721
        %1731 = vmatpush.msra.mxu0 %v1720
        %1732 = vmatpush.msra.mxu0 %v1719
        %1733 = vmatpush.msra.mxu0 %v1718
        %1734 = vmatpush.msra.mxu0 %v1717
        %1735 = vmatpush.msra.mxu0 %v1716
        %1736 = vmatpush.msra.mxu0 %v1715
        %1737 = vmatpush.msra.mxu0 %v1714
        %1738 = vmatpush.msra.mxu0 %v1713
        %1739 = vmatpush.msra.mxu0 %v1712
        %1740 = vmatpush.msra.mxu0 %v1711
        %1741 = vmatpush.msra.mxu0 %v1710
        %1742 = vmatmul.f32.gmra.mxu0 %v1693
        %v1743 = vpop.f32.mrf.mxu0
        %v1744 = vadd.f32 0.0, %v1743
        %1745 = vmatmul.f32.gmra.mxu0 %v1694
        %v1746 = vpop.f32.mrf.mxu0
        %v1747 = vadd.f32 0.0, %v1746
        %1748 = vmatmul.f32.gmra.mxu0 %v1695
        %v1749 = vpop.f32.mrf.mxu0
        %v1750 = vadd.f32 0.0, %v1749
        %1751 = vmatmul.f32.gmra.mxu0 %v1696
        %v1752 = vpop.f32.mrf.mxu0
        %v1753 = vadd.f32 0.0, %v1752
        %1754 = vmatmul.f32.gmra.mxu0 %v1697
        %v1755 = vpop.f32.mrf.mxu0
        %v1756 = vadd.f32 0.0, %v1755
        %1757 = vmatmul.f32.gmra.mxu0 %v1698
        %v1758 = vpop.f32.mrf.mxu0
        %v1759 = vadd.f32 0.0, %v1758
        %1760 = vmatmul.f32.gmra.mxu0 %v1699
        %v1761 = vpop.f32.mrf.mxu0
        %v1762 = vadd.f32 0.0, %v1761
        %1763 = vmatmul.f32.gmra.mxu0 %v1700
        %v1764 = vpop.f32.mrf.mxu0
        %v1765 = vadd.f32 0.0, %v1764
        %1766 = vmatmul.f32.gmra.mxu0 %v1701
        %v1767 = vpop.f32.mrf.mxu0
        %v1768 = vadd.f32 0.0, %v1767
        %1769 = vmatmul.f32.gmra.mxu0 %v1702
        %v1770 = vpop.f32.mrf.mxu0
        %v1771 = vadd.f32 0.0, %v1770
        %1772 = vmatmul.f32.gmra.mxu0 %v1703
        %v1773 = vpop.f32.mrf.mxu0
        %v1774 = vadd.f32 0.0, %v1773
        %1775 = vmatmul.f32.gmra.mxu0 %v1704
        %v1776 = vpop.f32.mrf.mxu0
        %v1777 = vadd.f32 0.0, %v1776
        %1778 = vmatmul.f32.gmra.mxu0 %v1705
        %v1779 = vpop.f32.mrf.mxu0
        %v1780 = vadd.f32 0.0, %v1779
        %1781 = vmatmul.f32.gmra.mxu0 %v1706
        %v1782 = vpop.f32.mrf.mxu0
        %v1783 = vadd.f32 0.0, %v1782
        %1784 = vmatmul.f32.gmra.mxu0 %v1707
        %v1785 = vpop.f32.mrf.mxu0
        %v1786 = vadd.f32 0.0, %v1785
        %1787 = vmatmul.f32.gmra.mxu0 %v1708
        %v1788 = vpop.f32.mrf.mxu0
        %v1789 = vadd.f32 0.0, %v1788
        %1790 = vdwg.mxu0
        %v1791 = vadd.f32 %v1677, %v1744
        %v1792 = vadd.f32 %v1678, %v1747
        %v1793 = vadd.f32 %v1679, %v1750
        %v1794 = vadd.f32 %v1680, %v1753
        %v1795 = vadd.f32 %v1681, %v1756
        %v1796 = vadd.f32 %v1682, %v1759
        %v1797 = vadd.f32 %v1683, %v1762
        %v1798 = vadd.f32 %v1684, %v1765
        %v1799 = vadd.f32 %v1685, %v1768
        %v1800 = vadd.f32 %v1686, %v1771
        %v1801 = vadd.f32 %v1687, %v1774
        %v1802 = vadd.f32 %v1688, %v1777
        %v1803 = vadd.f32 %v1689, %v1780
        %v1804 = vadd.f32 %v1690, %v1783
        %v1805 = vadd.f32 %v1691, %v1786
        %v1806 = vadd.f32 %v1692, %v1789
        %v1807 = vld [vmem:[%s1579 + $0x1e] sm:$0xff]
        %v1808 = vld [vmem:[%s1579 + $0x26] sm:$0xff]
        %v1809 = vld [vmem:[%s1579 + $0x56] sm:$0xff]
        %v1810 = vld [vmem:[%s1579 + $0x5e] sm:$0xff]
        %v1811 = vld [vmem:[%s1579 + $0x8e] sm:$0xff]
        %v1812 = vld [vmem:[%s1579 + $0x96] sm:$0xff]
        %v1813 = vld [vmem:[%s1579 + $0xc6] sm:$0xff]
        %v1814 = vld [vmem:[%s1579 + $0xce] sm:$0xff]
        %v1815 = vld [vmem:[%s1579 + $0xfe] sm:$0xff]
        %v1816 = vld [vmem:[%s1579 + $0x106] sm:$0xff]
        %v1817 = vld [vmem:[%s1579 + $0x136] sm:$0xff]
        %v1818 = vld [vmem:[%s1579 + $0x13e] sm:$0xff]
        %v1819 = vld [vmem:[%s1579 + $0x16e] sm:$0xff]
        %v1820 = vld [vmem:[%s1579 + $0x176] sm:$0xff]
        %v1821 = vld [vmem:[%s1579 + $0x1a6] sm:$0xff]
        %v1822 = vld [vmem:[%s1579 + $0x1ae] sm:$0xff]
        %s1823 = scalar_lea.vmem %s3, 256
        %v1824 = vld [vmem:[%s1823] sm:$0xff]
        %v1825 = vld [vmem:[%s1823 + $0x8] sm:$0xff]
        %v1826 = vld [vmem:[%s1823 + $0x10] sm:$0xff]
        %v1827 = vld [vmem:[%s1823 + $0x18] sm:$0xff]
        %v1828 = vld [vmem:[%s1823 + $0x20] sm:$0xff]
        %v1829 = vld [vmem:[%s1823 + $0x28] sm:$0xff]
        %v1830 = vld [vmem:[%s1823 + $0x30] sm:$0xff]
        %v1831 = vld [vmem:[%s1823 + $0x38] sm:$0xff]
        %v1832 = vld [vmem:[%s1823 + $0x40] sm:$0xff]
        %v1833 = vld [vmem:[%s1823 + $0x48] sm:$0xff]
        %v1834 = vld [vmem:[%s1823 + $0x50] sm:$0xff]
        %v1835 = vld [vmem:[%s1823 + $0x58] sm:$0xff]
        %v1836 = vld [vmem:[%s1823 + $0x60] sm:$0xff]
        %v1837 = vld [vmem:[%s1823 + $0x68] sm:$0xff]
        %v1838 = vld [vmem:[%s1823 + $0x70] sm:$0xff]
        %v1839 = vld [vmem:[%s1823 + $0x78] sm:$0xff]
        %1840 = vmatpush.msra.mxu0 %v1839
        %1841 = vmatpush.msra.mxu0 %v1838
        %1842 = vmatpush.msra.mxu0 %v1837
        %1843 = vmatpush.msra.mxu0 %v1836
        %1844 = vmatpush.msra.mxu0 %v1835
        %1845 = vmatpush.msra.mxu0 %v1834
        %1846 = vmatpush.msra.mxu0 %v1833
        %1847 = vmatpush.msra.mxu0 %v1832
        %1848 = vmatpush.msra.mxu0 %v1831
        %1849 = vmatpush.msra.mxu0 %v1830
        %1850 = vmatpush.msra.mxu0 %v1829
        %1851 = vmatpush.msra.mxu0 %v1828
        %1852 = vmatpush.msra.mxu0 %v1827
        %1853 = vmatpush.msra.mxu0 %v1826
        %1854 = vmatpush.msra.mxu0 %v1825
        %1855 = vmatpush.msra.mxu0 %v1824
        %1856 = vmatmul.f32.gmra.mxu0 %v1807
        %v1857 = vpop.f32.mrf.mxu0
        %v1858 = vadd.f32 0.0, %v1857
        %1859 = vmatmul.f32.gmra.mxu0 %v1808
        %v1860 = vpop.f32.mrf.mxu0
        %v1861 = vadd.f32 0.0, %v1860
        %1862 = vmatmul.f32.gmra.mxu0 %v1809
        %v1863 = vpop.f32.mrf.mxu0
        %v1864 = vadd.f32 0.0, %v1863
        %1865 = vmatmul.f32.gmra.mxu0 %v1810
        %v1866 = vpop.f32.mrf.mxu0
        %v1867 = vadd.f32 0.0, %v1866
        %1868 = vmatmul.f32.gmra.mxu0 %v1811
        %v1869 = vpop.f32.mrf.mxu0
        %v1870 = vadd.f32 0.0, %v1869
        %1871 = vmatmul.f32.gmra.mxu0 %v1812
        %v1872 = vpop.f32.mrf.mxu0
        %v1873 = vadd.f32 0.0, %v1872
        %1874 = vmatmul.f32.gmra.mxu0 %v1813
        %v1875 = vpop.f32.mrf.mxu0
        %v1876 = vadd.f32 0.0, %v1875
        %1877 = vmatmul.f32.gmra.mxu0 %v1814
        %v1878 = vpop.f32.mrf.mxu0
        %v1879 = vadd.f32 0.0, %v1878
        %1880 = vmatmul.f32.gmra.mxu0 %v1815
        %v1881 = vpop.f32.mrf.mxu0
        %v1882 = vadd.f32 0.0, %v1881
        %1883 = vmatmul.f32.gmra.mxu0 %v1816
        %v1884 = vpop.f32.mrf.mxu0
        %v1885 = vadd.f32 0.0, %v1884
        %1886 = vmatmul.f32.gmra.mxu0 %v1817
        %v1887 = vpop.f32.mrf.mxu0
        %v1888 = vadd.f32 0.0, %v1887
        %1889 = vmatmul.f32.gmra.mxu0 %v1818
        %v1890 = vpop.f32.mrf.mxu0
        %v1891 = vadd.f32 0.0, %v1890
        %1892 = vmatmul.f32.gmra.mxu0 %v1819
        %v1893 = vpop.f32.mrf.mxu0
        %v1894 = vadd.f32 0.0, %v1893
        %1895 = vmatmul.f32.gmra.mxu0 %v1820
        %v1896 = vpop.f32.mrf.mxu0
        %v1897 = vadd.f32 0.0, %v1896
        %1898 = vmatmul.f32.gmra.mxu0 %v1821
        %v1899 = vpop.f32.mrf.mxu0
        %v1900 = vadd.f32 0.0, %v1899
        %1901 = vmatmul.f32.gmra.mxu0 %v1822
        %v1902 = vpop.f32.mrf.mxu0
        %v1903 = vadd.f32 0.0, %v1902
        %1904 = vdwg.mxu0
        %v1905 = vadd.f32 %v1791, %v1858
        %v1906 = vadd.f32 %v1792, %v1861
        %v1907 = vadd.f32 %v1793, %v1864
        %v1908 = vadd.f32 %v1794, %v1867
        %v1909 = vadd.f32 %v1795, %v1870
        %v1910 = vadd.f32 %v1796, %v1873
        %v1911 = vadd.f32 %v1797, %v1876
        %v1912 = vadd.f32 %v1798, %v1879
        %v1913 = vadd.f32 %v1799, %v1882
        %v1914 = vadd.f32 %v1800, %v1885
        %v1915 = vadd.f32 %v1801, %v1888
        %v1916 = vadd.f32 %v1802, %v1891
        %v1917 = vadd.f32 %v1803, %v1894
        %v1918 = vadd.f32 %v1804, %v1897
        %v1919 = vadd.f32 %v1805, %v1900
        %v1920 = vadd.f32 %v1806, %v1903
        %v1921 = vld [vmem:[%s442 + $0x6] sm:$0xff]
        %v1922 = vld [vmem:[%s442 + $0xe] sm:$0xff]
        %v1923 = vld [vmem:[%s442 + $0x3e] sm:$0xff]
        %v1924 = vld [vmem:[%s442 + $0x46] sm:$0xff]
        %v1925 = vld [vmem:[%s442 + $0x76] sm:$0xff]
        %v1926 = vld [vmem:[%s442 + $0x7e] sm:$0xff]
        %v1927 = vld [vmem:[%s442 + $0xae] sm:$0xff]
        %v1928 = vld [vmem:[%s442 + $0xb6] sm:$0xff]
        %v1929 = vld [vmem:[%s442 + $0xe6] sm:$0xff]
        %v1930 = vld [vmem:[%s442 + $0xee] sm:$0xff]
        %v1931 = vld [vmem:[%s442 + $0x11e] sm:$0xff]
        %v1932 = vld [vmem:[%s442 + $0x126] sm:$0xff]
        %v1933 = vld [vmem:[%s442 + $0x156] sm:$0xff]
        %v1934 = vld [vmem:[%s442 + $0x15e] sm:$0xff]
        %v1935 = vld [vmem:[%s442 + $0x18e] sm:$0xff]
        %v1936 = vld [vmem:[%s442 + $0x196] sm:$0xff]
        %s1937 = scalar_lea.vmem %s3, 384
        %v1938 = vld [vmem:[%s1937] sm:$0xff]
        %v1939 = vld [vmem:[%s1937 + $0x8] sm:$0xff]
        %v1940 = vld [vmem:[%s1937 + $0x10] sm:$0xff]
        %v1941 = vld [vmem:[%s1937 + $0x18] sm:$0xff]
        %v1942 = vld [vmem:[%s1937 + $0x20] sm:$0xff]
        %v1943 = vld [vmem:[%s1937 + $0x28] sm:$0xff]
        %v1944 = vld [vmem:[%s1937 + $0x30] sm:$0xff]
        %v1945 = vld [vmem:[%s1937 + $0x38] sm:$0xff]
        %v1946 = vld [vmem:[%s1937 + $0x40] sm:$0xff]
        %v1947 = vld [vmem:[%s1937 + $0x48] sm:$0xff]
        %v1948 = vld [vmem:[%s1937 + $0x50] sm:$0xff]
        %v1949 = vld [vmem:[%s1937 + $0x58] sm:$0xff]
        %v1950 = vld [vmem:[%s1937 + $0x60] sm:$0xff]
        %v1951 = vld [vmem:[%s1937 + $0x68] sm:$0xff]
        %v1952 = vld [vmem:[%s1937 + $0x70] sm:$0xff]
        %v1953 = vld [vmem:[%s1937 + $0x78] sm:$0xff]
        %1954 = vmatpush.msra.mxu0 %v1953
        %1955 = vmatpush.msra.mxu0 %v1952
        %1956 = vmatpush.msra.mxu0 %v1951
        %1957 = vmatpush.msra.mxu0 %v1950
        %1958 = vmatpush.msra.mxu0 %v1949
        %1959 = vmatpush.msra.mxu0 %v1948
        %1960 = vmatpush.msra.mxu0 %v1947
        %1961 = vmatpush.msra.mxu0 %v1946
        %1962 = vmatpush.msra.mxu0 %v1945
        %1963 = vmatpush.msra.mxu0 %v1944
        %1964 = vmatpush.msra.mxu0 %v1943
        %1965 = vmatpush.msra.mxu0 %v1942
        %1966 = vmatpush.msra.mxu0 %v1941
        %1967 = vmatpush.msra.mxu0 %v1940
        %1968 = vmatpush.msra.mxu0 %v1939
        %1969 = vmatpush.msra.mxu0 %v1938
        %1970 = vmatmul.f32.gmra.mxu0 %v1921
        %v1971 = vpop.f32.mrf.mxu0
        %v1972 = vadd.f32 0.0, %v1971
        %1973 = vmatmul.f32.gmra.mxu0 %v1922
        %v1974 = vpop.f32.mrf.mxu0
        %v1975 = vadd.f32 0.0, %v1974
        %1976 = vmatmul.f32.gmra.mxu0 %v1923
        %v1977 = vpop.f32.mrf.mxu0
        %v1978 = vadd.f32 0.0, %v1977
        %1979 = vmatmul.f32.gmra.mxu0 %v1924
        %v1980 = vpop.f32.mrf.mxu0
        %v1981 = vadd.f32 0.0, %v1980
        %1982 = vmatmul.f32.gmra.mxu0 %v1925
        %v1983 = vpop.f32.mrf.mxu0
        %v1984 = vadd.f32 0.0, %v1983
        %1985 = vmatmul.f32.gmra.mxu0 %v1926
        %v1986 = vpop.f32.mrf.mxu0
        %v1987 = vadd.f32 0.0, %v1986
        %1988 = vmatmul.f32.gmra.mxu0 %v1927
        %v1989 = vpop.f32.mrf.mxu0
        %v1990 = vadd.f32 0.0, %v1989
        %1991 = vmatmul.f32.gmra.mxu0 %v1928
        %v1992 = vpop.f32.mrf.mxu0
        %v1993 = vadd.f32 0.0, %v1992
        %1994 = vmatmul.f32.gmra.mxu0 %v1929
        %v1995 = vpop.f32.mrf.mxu0
        %v1996 = vadd.f32 0.0, %v1995
        %1997 = vmatmul.f32.gmra.mxu0 %v1930
        %v1998 = vpop.f32.mrf.mxu0
        %v1999 = vadd.f32 0.0, %v1998
        %2000 = vmatmul.f32.gmra.mxu0 %v1931
        %v2001 = vpop.f32.mrf.mxu0
        %v2002 = vadd.f32 0.0, %v2001
        %2003 = vmatmul.f32.gmra.mxu0 %v1932
        %v2004 = vpop.f32.mrf.mxu0
        %v2005 = vadd.f32 0.0, %v2004
        %2006 = vmatmul.f32.gmra.mxu0 %v1933
        %v2007 = vpop.f32.mrf.mxu0
        %v2008 = vadd.f32 0.0, %v2007
        %2009 = vmatmul.f32.gmra.mxu0 %v1934
        %v2010 = vpop.f32.mrf.mxu0
        %v2011 = vadd.f32 0.0, %v2010
        %2012 = vmatmul.f32.gmra.mxu0 %v1935
        %v2013 = vpop.f32.mrf.mxu0
        %v2014 = vadd.f32 0.0, %v2013
        %2015 = vmatmul.f32.gmra.mxu0 %v1936
        %v2016 = vpop.f32.mrf.mxu0
        %v2017 = vadd.f32 0.0, %v2016
        %2018 = vdwg.mxu0
        %v2019 = vadd.f32 %v1905, %v1972
        %v2020 = vadd.f32 %v1906, %v1975
        %v2021 = vadd.f32 %v1907, %v1978
        %v2022 = vadd.f32 %v1908, %v1981
        %v2023 = vadd.f32 %v1909, %v1984
        %v2024 = vadd.f32 %v1910, %v1987
        %v2025 = vadd.f32 %v1911, %v1990
        %v2026 = vadd.f32 %v1912, %v1993
        %v2027 = vadd.f32 %v1913, %v1996
        %v2028 = vadd.f32 %v1914, %v1999
        %v2029 = vadd.f32 %v1915, %v2002
        %v2030 = vadd.f32 %v1916, %v2005
        %v2031 = vadd.f32 %v1917, %v2008
        %v2032 = vadd.f32 %v1918, %v2011
        %v2033 = vadd.f32 %v1919, %v2014
        %v2034 = vadd.f32 %v1920, %v2017
        %s2035 = scalar_lea.vmem %s3, 512
        %v2036 = vld [vmem:[%s2035] sm:$0xff]
        %v2037 = vld [vmem:[%s2035 + $0x8] sm:$0xff]
        %v2038 = vld [vmem:[%s2035 + $0x10] sm:$0xff]
        %v2039 = vld [vmem:[%s2035 + $0x18] sm:$0xff]
        %v2040 = vld [vmem:[%s2035 + $0x20] sm:$0xff]
        %v2041 = vld [vmem:[%s2035 + $0x28] sm:$0xff]
        %v2042 = vld [vmem:[%s2035 + $0x30] sm:$0xff]
        %v2043 = vld [vmem:[%s2035 + $0x38] sm:$0xff]
        %v2044 = vld [vmem:[%s2035 + $0x40] sm:$0xff]
        %v2045 = vld [vmem:[%s2035 + $0x48] sm:$0xff]
        %v2046 = vld [vmem:[%s2035 + $0x50] sm:$0xff]
        %v2047 = vld [vmem:[%s2035 + $0x58] sm:$0xff]
        %v2048 = vld [vmem:[%s2035 + $0x60] sm:$0xff]
        %v2049 = vld [vmem:[%s2035 + $0x68] sm:$0xff]
        %v2050 = vld [vmem:[%s2035 + $0x70] sm:$0xff]
        %v2051 = vld [vmem:[%s2035 + $0x78] sm:$0xff]
        %2052 = vmatpush.msra.mxu0 %v2051
        %2053 = vmatpush.msra.mxu0 %v2050
        %2054 = vmatpush.msra.mxu0 %v2049
        %2055 = vmatpush.msra.mxu0 %v2048
        %2056 = vmatpush.msra.mxu0 %v2047
        %2057 = vmatpush.msra.mxu0 %v2046
        %2058 = vmatpush.msra.mxu0 %v2045
        %2059 = vmatpush.msra.mxu0 %v2044
        %2060 = vmatpush.msra.mxu0 %v2043
        %2061 = vmatpush.msra.mxu0 %v2042
        %2062 = vmatpush.msra.mxu0 %v2041
        %2063 = vmatpush.msra.mxu0 %v2040
        %2064 = vmatpush.msra.mxu0 %v2039
        %2065 = vmatpush.msra.mxu0 %v2038
        %2066 = vmatpush.msra.mxu0 %v2037
        %2067 = vmatpush.msra.mxu0 %v2036
        %2068 = vmatmul.f32.gmra.mxu0 %v443
        %v2069 = vpop.f32.mrf.mxu0
        %v2070 = vadd.f32 0.0, %v2069
        %2071 = vmatmul.f32.gmra.mxu0 %v444
        %v2072 = vpop.f32.mrf.mxu0
        %v2073 = vadd.f32 0.0, %v2072
        %2074 = vmatmul.f32.gmra.mxu0 %v445
        %v2075 = vpop.f32.mrf.mxu0
        %v2076 = vadd.f32 0.0, %v2075
        %2077 = vmatmul.f32.gmra.mxu0 %v446
        %v2078 = vpop.f32.mrf.mxu0
        %v2079 = vadd.f32 0.0, %v2078
        %2080 = vmatmul.f32.gmra.mxu0 %v447
        %v2081 = vpop.f32.mrf.mxu0
        %v2082 = vadd.f32 0.0, %v2081
        %2083 = vmatmul.f32.gmra.mxu0 %v448
        %v2084 = vpop.f32.mrf.mxu0
        %v2085 = vadd.f32 0.0, %v2084
        %2086 = vmatmul.f32.gmra.mxu0 %v449
        %v2087 = vpop.f32.mrf.mxu0
        %v2088 = vadd.f32 0.0, %v2087
        %2089 = vmatmul.f32.gmra.mxu0 %v450
        %v2090 = vpop.f32.mrf.mxu0
        %v2091 = vadd.f32 0.0, %v2090
        %2092 = vmatmul.f32.gmra.mxu0 %v451
        %v2093 = vpop.f32.mrf.mxu0
        %v2094 = vadd.f32 0.0, %v2093
        %2095 = vmatmul.f32.gmra.mxu0 %v452
        %v2096 = vpop.f32.mrf.mxu0
        %v2097 = vadd.f32 0.0, %v2096
        %2098 = vmatmul.f32.gmra.mxu0 %v453
        %v2099 = vpop.f32.mrf.mxu0
        %v2100 = vadd.f32 0.0, %v2099
        %2101 = vmatmul.f32.gmra.mxu0 %v454
        %v2102 = vpop.f32.mrf.mxu0
        %v2103 = vadd.f32 0.0, %v2102
        %2104 = vmatmul.f32.gmra.mxu0 %v455
        %v2105 = vpop.f32.mrf.mxu0
        %v2106 = vadd.f32 0.0, %v2105
        %2107 = vmatmul.f32.gmra.mxu0 %v456
        %v2108 = vpop.f32.mrf.mxu0
        %v2109 = vadd.f32 0.0, %v2108
        %2110 = vmatmul.f32.gmra.mxu0 %v457
        %v2111 = vpop.f32.mrf.mxu0
        %v2112 = vadd.f32 0.0, %v2111
        %2113 = vmatmul.f32.gmra.mxu0 %v458
        %v2114 = vpop.f32.mrf.mxu0
        %v2115 = vadd.f32 0.0, %v2114
        %2116 = vdwg.mxu0
        %v2117 = vadd.f32 %v2019, %v2070
        %v2118 = vadd.f32 %v2020, %v2073
        %v2119 = vadd.f32 %v2021, %v2076
        %v2120 = vadd.f32 %v2022, %v2079
        %v2121 = vadd.f32 %v2023, %v2082
        %v2122 = vadd.f32 %v2024, %v2085
        %v2123 = vadd.f32 %v2025, %v2088
        %v2124 = vadd.f32 %v2026, %v2091
        %v2125 = vadd.f32 %v2027, %v2094
        %v2126 = vadd.f32 %v2028, %v2097
        %v2127 = vadd.f32 %v2029, %v2100
        %v2128 = vadd.f32 %v2030, %v2103
        %v2129 = vadd.f32 %v2031, %v2106
        %v2130 = vadd.f32 %v2032, %v2109
        %v2131 = vadd.f32 %v2033, %v2112
        %v2132 = vadd.f32 %v2034, %v2115
        %v2133 = vld [vmem:[%s442 + $0x1e] sm:$0xff]
        %v2134 = vld [vmem:[%s442 + $0x26] sm:$0xff]
        %v2135 = vld [vmem:[%s442 + $0x56] sm:$0xff]
        %v2136 = vld [vmem:[%s442 + $0x5e] sm:$0xff]
        %v2137 = vld [vmem:[%s442 + $0x8e] sm:$0xff]
        %v2138 = vld [vmem:[%s442 + $0x96] sm:$0xff]
        %v2139 = vld [vmem:[%s442 + $0xc6] sm:$0xff]
        %v2140 = vld [vmem:[%s442 + $0xce] sm:$0xff]
        %v2141 = vld [vmem:[%s442 + $0xfe] sm:$0xff]
        %v2142 = vld [vmem:[%s442 + $0x106] sm:$0xff]
        %v2143 = vld [vmem:[%s442 + $0x136] sm:$0xff]
        %v2144 = vld [vmem:[%s442 + $0x13e] sm:$0xff]
        %v2145 = vld [vmem:[%s442 + $0x16e] sm:$0xff]
        %v2146 = vld [vmem:[%s442 + $0x176] sm:$0xff]
        %v2147 = vld [vmem:[%s442 + $0x1a6] sm:$0xff]
        %v2148 = vld [vmem:[%s442 + $0x1ae] sm:$0xff]
        %s2149 = scalar_lea.vmem %s3, 640
        %v2150 = vld [vmem:[%s2149] sm:$0xff]
        %v2151 = vld [vmem:[%s2149 + $0x8] sm:$0xff]
        %v2152 = vld [vmem:[%s2149 + $0x10] sm:$0xff]
        %v2153 = vld [vmem:[%s2149 + $0x18] sm:$0xff]
        %v2154 = vld [vmem:[%s2149 + $0x20] sm:$0xff]
        %v2155 = vld [vmem:[%s2149 + $0x28] sm:$0xff]
        %v2156 = vld [vmem:[%s2149 + $0x30] sm:$0xff]
        %v2157 = vld [vmem:[%s2149 + $0x38] sm:$0xff]
        %v2158 = vld [vmem:[%s2149 + $0x40] sm:$0xff]
        %v2159 = vld [vmem:[%s2149 + $0x48] sm:$0xff]
        %v2160 = vld [vmem:[%s2149 + $0x50] sm:$0xff]
        %v2161 = vld [vmem:[%s2149 + $0x58] sm:$0xff]
        %v2162 = vld [vmem:[%s2149 + $0x60] sm:$0xff]
        %v2163 = vld [vmem:[%s2149 + $0x68] sm:$0xff]
        %v2164 = vld [vmem:[%s2149 + $0x70] sm:$0xff]
        %v2165 = vld [vmem:[%s2149 + $0x78] sm:$0xff]
        %2166 = vmatpush.msra.mxu0 %v2165
        %2167 = vmatpush.msra.mxu0 %v2164
        %2168 = vmatpush.msra.mxu0 %v2163
        %2169 = vmatpush.msra.mxu0 %v2162
        %2170 = vmatpush.msra.mxu0 %v2161
        %2171 = vmatpush.msra.mxu0 %v2160
        %2172 = vmatpush.msra.mxu0 %v2159
        %2173 = vmatpush.msra.mxu0 %v2158
        %2174 = vmatpush.msra.mxu0 %v2157
        %2175 = vmatpush.msra.mxu0 %v2156
        %2176 = vmatpush.msra.mxu0 %v2155
        %2177 = vmatpush.msra.mxu0 %v2154
        %2178 = vmatpush.msra.mxu0 %v2153
        %2179 = vmatpush.msra.mxu0 %v2152
        %2180 = vmatpush.msra.mxu0 %v2151
        %2181 = vmatpush.msra.mxu0 %v2150
        %2182 = vmatmul.f32.gmra.mxu0 %v2133
        %v2183 = vpop.f32.mrf.mxu0
        %v2184 = vadd.f32 0.0, %v2183
        %2185 = vmatmul.f32.gmra.mxu0 %v2134
        %v2186 = vpop.f32.mrf.mxu0
        %v2187 = vadd.f32 0.0, %v2186
        %2188 = vmatmul.f32.gmra.mxu0 %v2135
        %v2189 = vpop.f32.mrf.mxu0
        %v2190 = vadd.f32 0.0, %v2189
        %2191 = vmatmul.f32.gmra.mxu0 %v2136
        %v2192 = vpop.f32.mrf.mxu0
        %v2193 = vadd.f32 0.0, %v2192
        %2194 = vmatmul.f32.gmra.mxu0 %v2137
        %v2195 = vpop.f32.mrf.mxu0
        %v2196 = vadd.f32 0.0, %v2195
        %2197 = vmatmul.f32.gmra.mxu0 %v2138
        %v2198 = vpop.f32.mrf.mxu0
        %v2199 = vadd.f32 0.0, %v2198
        %2200 = vmatmul.f32.gmra.mxu0 %v2139
        %v2201 = vpop.f32.mrf.mxu0
        %v2202 = vadd.f32 0.0, %v2201
        %2203 = vmatmul.f32.gmra.mxu0 %v2140
        %v2204 = vpop.f32.mrf.mxu0
        %v2205 = vadd.f32 0.0, %v2204
        %2206 = vmatmul.f32.gmra.mxu0 %v2141
        %v2207 = vpop.f32.mrf.mxu0
        %v2208 = vadd.f32 0.0, %v2207
        %2209 = vmatmul.f32.gmra.mxu0 %v2142
        %v2210 = vpop.f32.mrf.mxu0
        %v2211 = vadd.f32 0.0, %v2210
        %2212 = vmatmul.f32.gmra.mxu0 %v2143
        %v2213 = vpop.f32.mrf.mxu0
        %v2214 = vadd.f32 0.0, %v2213
        %2215 = vmatmul.f32.gmra.mxu0 %v2144
        %v2216 = vpop.f32.mrf.mxu0
        %v2217 = vadd.f32 0.0, %v2216
        %2218 = vmatmul.f32.gmra.mxu0 %v2145
        %v2219 = vpop.f32.mrf.mxu0
        %v2220 = vadd.f32 0.0, %v2219
        %2221 = vmatmul.f32.gmra.mxu0 %v2146
        %v2222 = vpop.f32.mrf.mxu0
        %v2223 = vadd.f32 0.0, %v2222
        %2224 = vmatmul.f32.gmra.mxu0 %v2147
        %v2225 = vpop.f32.mrf.mxu0
        %v2226 = vadd.f32 0.0, %v2225
        %2227 = vmatmul.f32.gmra.mxu0 %v2148
        %v2228 = vpop.f32.mrf.mxu0
        %v2229 = vadd.f32 0.0, %v2228
        %2230 = vdwg.mxu0
        %v2231 = vadd.f32 %v2117, %v2184
        %v2232 = vadd.f32 %v2118, %v2187
        %v2233 = vadd.f32 %v2119, %v2190
        %v2234 = vadd.f32 %v2120, %v2193
        %v2235 = vadd.f32 %v2121, %v2196
        %v2236 = vadd.f32 %v2122, %v2199
        %v2237 = vadd.f32 %v2123, %v2202
        %v2238 = vadd.f32 %v2124, %v2205
        %v2239 = vadd.f32 %v2125, %v2208
        %v2240 = vadd.f32 %v2126, %v2211
        %v2241 = vadd.f32 %v2127, %v2214
        %v2242 = vadd.f32 %v2128, %v2217
        %v2243 = vadd.f32 %v2129, %v2220
        %v2244 = vadd.f32 %v2130, %v2223
        %v2245 = vadd.f32 %v2131, %v2226
        %v2246 = vadd.f32 %v2132, %v2229
        %s2247 = sadd.s32 %s439, 30
        %s2248 = smul.u32 %s2247, 56
        %s2249 = scalar_lea.vmem %s415, %s2248
        %v2250 = vld [vmem:[%s2249 + $0x6] sm:$0xff]
        %v2251 = vld [vmem:[%s2249 + $0xe] sm:$0xff]
        %v2252 = vld [vmem:[%s2249 + $0x3e] sm:$0xff]
        %v2253 = vld [vmem:[%s2249 + $0x46] sm:$0xff]
        %v2254 = vld [vmem:[%s2249 + $0x76] sm:$0xff]
        %v2255 = vld [vmem:[%s2249 + $0x7e] sm:$0xff]
        %v2256 = vld [vmem:[%s2249 + $0xae] sm:$0xff]
        %v2257 = vld [vmem:[%s2249 + $0xb6] sm:$0xff]
        %v2258 = vld [vmem:[%s2249 + $0xe6] sm:$0xff]
        %v2259 = vld [vmem:[%s2249 + $0xee] sm:$0xff]
        %v2260 = vld [vmem:[%s2249 + $0x11e] sm:$0xff]
        %v2261 = vld [vmem:[%s2249 + $0x126] sm:$0xff]
        %v2262 = vld [vmem:[%s2249 + $0x156] sm:$0xff]
        %v2263 = vld [vmem:[%s2249 + $0x15e] sm:$0xff]
        %v2264 = vld [vmem:[%s2249 + $0x18e] sm:$0xff]
        %v2265 = vld [vmem:[%s2249 + $0x196] sm:$0xff]
        %s2266 = scalar_lea.vmem %s3, 768
        %v2267 = vld [vmem:[%s2266] sm:$0xff]
        %v2268 = vld [vmem:[%s2266 + $0x8] sm:$0xff]
        %v2269 = vld [vmem:[%s2266 + $0x10] sm:$0xff]
        %v2270 = vld [vmem:[%s2266 + $0x18] sm:$0xff]
        %v2271 = vld [vmem:[%s2266 + $0x20] sm:$0xff]
        %v2272 = vld [vmem:[%s2266 + $0x28] sm:$0xff]
        %v2273 = vld [vmem:[%s2266 + $0x30] sm:$0xff]
        %v2274 = vld [vmem:[%s2266 + $0x38] sm:$0xff]
        %v2275 = vld [vmem:[%s2266 + $0x40] sm:$0xff]
        %v2276 = vld [vmem:[%s2266 + $0x48] sm:$0xff]
        %v2277 = vld [vmem:[%s2266 + $0x50] sm:$0xff]
        %v2278 = vld [vmem:[%s2266 + $0x58] sm:$0xff]
        %v2279 = vld [vmem:[%s2266 + $0x60] sm:$0xff]
        %v2280 = vld [vmem:[%s2266 + $0x68] sm:$0xff]
        %v2281 = vld [vmem:[%s2266 + $0x70] sm:$0xff]
        %v2282 = vld [vmem:[%s2266 + $0x78] sm:$0xff]
        %2283 = vmatpush.msra.mxu0 %v2282
        %2284 = vmatpush.msra.mxu0 %v2281
        %2285 = vmatpush.msra.mxu0 %v2280
        %2286 = vmatpush.msra.mxu0 %v2279
        %2287 = vmatpush.msra.mxu0 %v2278
        %2288 = vmatpush.msra.mxu0 %v2277
        %2289 = vmatpush.msra.mxu0 %v2276
        %2290 = vmatpush.msra.mxu0 %v2275
        %2291 = vmatpush.msra.mxu0 %v2274
        %2292 = vmatpush.msra.mxu0 %v2273
        %2293 = vmatpush.msra.mxu0 %v2272
        %2294 = vmatpush.msra.mxu0 %v2271
        %2295 = vmatpush.msra.mxu0 %v2270
        %2296 = vmatpush.msra.mxu0 %v2269
        %2297 = vmatpush.msra.mxu0 %v2268
        %2298 = vmatpush.msra.mxu0 %v2267
        %2299 = vmatmul.f32.gmra.mxu0 %v2250
        %v2300 = vpop.f32.mrf.mxu0
        %v2301 = vadd.f32 0.0, %v2300
        %2302 = vmatmul.f32.gmra.mxu0 %v2251
        %v2303 = vpop.f32.mrf.mxu0
        %v2304 = vadd.f32 0.0, %v2303
        %2305 = vmatmul.f32.gmra.mxu0 %v2252
        %v2306 = vpop.f32.mrf.mxu0
        %v2307 = vadd.f32 0.0, %v2306
        %2308 = vmatmul.f32.gmra.mxu0 %v2253
        %v2309 = vpop.f32.mrf.mxu0
        %v2310 = vadd.f32 0.0, %v2309
        %2311 = vmatmul.f32.gmra.mxu0 %v2254
        %v2312 = vpop.f32.mrf.mxu0
        %v2313 = vadd.f32 0.0, %v2312
        %2314 = vmatmul.f32.gmra.mxu0 %v2255
        %v2315 = vpop.f32.mrf.mxu0
        %v2316 = vadd.f32 0.0, %v2315
        %2317 = vmatmul.f32.gmra.mxu0 %v2256
        %v2318 = vpop.f32.mrf.mxu0
        %v2319 = vadd.f32 0.0, %v2318
        %2320 = vmatmul.f32.gmra.mxu0 %v2257
        %v2321 = vpop.f32.mrf.mxu0
        %v2322 = vadd.f32 0.0, %v2321
        %2323 = vmatmul.f32.gmra.mxu0 %v2258
        %v2324 = vpop.f32.mrf.mxu0
        %v2325 = vadd.f32 0.0, %v2324
        %2326 = vmatmul.f32.gmra.mxu0 %v2259
        %v2327 = vpop.f32.mrf.mxu0
        %v2328 = vadd.f32 0.0, %v2327
        %2329 = vmatmul.f32.gmra.mxu0 %v2260
        %v2330 = vpop.f32.mrf.mxu0
        %v2331 = vadd.f32 0.0, %v2330
        %2332 = vmatmul.f32.gmra.mxu0 %v2261
        %v2333 = vpop.f32.mrf.mxu0
        %v2334 = vadd.f32 0.0, %v2333
        %2335 = vmatmul.f32.gmra.mxu0 %v2262
        %v2336 = vpop.f32.mrf.mxu0
        %v2337 = vadd.f32 0.0, %v2336
        %2338 = vmatmul.f32.gmra.mxu0 %v2263
        %v2339 = vpop.f32.mrf.mxu0
        %v2340 = vadd.f32 0.0, %v2339
        %2341 = vmatmul.f32.gmra.mxu0 %v2264
        %v2342 = vpop.f32.mrf.mxu0
        %v2343 = vadd.f32 0.0, %v2342
        %2344 = vmatmul.f32.gmra.mxu0 %v2265
        %v2345 = vpop.f32.mrf.mxu0
        %v2346 = vadd.f32 0.0, %v2345
        %2347 = vdwg.mxu0
        %v2348 = vadd.f32 %v2231, %v2301
        %v2349 = vadd.f32 %v2232, %v2304
        %v2350 = vadd.f32 %v2233, %v2307
        %v2351 = vadd.f32 %v2234, %v2310
        %v2352 = vadd.f32 %v2235, %v2313
        %v2353 = vadd.f32 %v2236, %v2316
        %v2354 = vadd.f32 %v2237, %v2319
        %v2355 = vadd.f32 %v2238, %v2322
        %v2356 = vadd.f32 %v2239, %v2325
        %v2357 = vadd.f32 %v2240, %v2328
        %v2358 = vadd.f32 %v2241, %v2331
        %v2359 = vadd.f32 %v2242, %v2334
        %v2360 = vadd.f32 %v2243, %v2337
        %v2361 = vadd.f32 %v2244, %v2340
        %v2362 = vadd.f32 %v2245, %v2343
        %v2363 = vadd.f32 %v2246, %v2346
        %v2364 = vld [vmem:[%s2249 + $0x12] sm:$0xff]
        %v2365 = vld [vmem:[%s2249 + $0x1a] sm:$0xff]
        %v2366 = vld [vmem:[%s2249 + $0x4a] sm:$0xff]
        %v2367 = vld [vmem:[%s2249 + $0x52] sm:$0xff]
        %v2368 = vld [vmem:[%s2249 + $0x82] sm:$0xff]
        %v2369 = vld [vmem:[%s2249 + $0x8a] sm:$0xff]
        %v2370 = vld [vmem:[%s2249 + $0xba] sm:$0xff]
        %v2371 = vld [vmem:[%s2249 + $0xc2] sm:$0xff]
        %v2372 = vld [vmem:[%s2249 + $0xf2] sm:$0xff]
        %v2373 = vld [vmem:[%s2249 + $0xfa] sm:$0xff]
        %v2374 = vld [vmem:[%s2249 + $0x12a] sm:$0xff]
        %v2375 = vld [vmem:[%s2249 + $0x132] sm:$0xff]
        %v2376 = vld [vmem:[%s2249 + $0x162] sm:$0xff]
        %v2377 = vld [vmem:[%s2249 + $0x16a] sm:$0xff]
        %v2378 = vld [vmem:[%s2249 + $0x19a] sm:$0xff]
        %v2379 = vld [vmem:[%s2249 + $0x1a2] sm:$0xff]
        %s2380 = scalar_lea.vmem %s3, 896
        %v2381 = vld [vmem:[%s2380] sm:$0xff]
        %v2382 = vld [vmem:[%s2380 + $0x8] sm:$0xff]
        %v2383 = vld [vmem:[%s2380 + $0x10] sm:$0xff]
        %v2384 = vld [vmem:[%s2380 + $0x18] sm:$0xff]
        %v2385 = vld [vmem:[%s2380 + $0x20] sm:$0xff]
        %v2386 = vld [vmem:[%s2380 + $0x28] sm:$0xff]
        %v2387 = vld [vmem:[%s2380 + $0x30] sm:$0xff]
        %v2388 = vld [vmem:[%s2380 + $0x38] sm:$0xff]
        %v2389 = vld [vmem:[%s2380 + $0x40] sm:$0xff]
        %v2390 = vld [vmem:[%s2380 + $0x48] sm:$0xff]
        %v2391 = vld [vmem:[%s2380 + $0x50] sm:$0xff]
        %v2392 = vld [vmem:[%s2380 + $0x58] sm:$0xff]
        %v2393 = vld [vmem:[%s2380 + $0x60] sm:$0xff]
        %v2394 = vld [vmem:[%s2380 + $0x68] sm:$0xff]
        %v2395 = vld [vmem:[%s2380 + $0x70] sm:$0xff]
        %v2396 = vld [vmem:[%s2380 + $0x78] sm:$0xff]
        %2397 = vmatpush.msra.mxu0 %v2396
        %2398 = vmatpush.msra.mxu0 %v2395
        %2399 = vmatpush.msra.mxu0 %v2394
        %2400 = vmatpush.msra.mxu0 %v2393
        %2401 = vmatpush.msra.mxu0 %v2392
        %2402 = vmatpush.msra.mxu0 %v2391
        %2403 = vmatpush.msra.mxu0 %v2390
        %2404 = vmatpush.msra.mxu0 %v2389
        %2405 = vmatpush.msra.mxu0 %v2388
        %2406 = vmatpush.msra.mxu0 %v2387
        %2407 = vmatpush.msra.mxu0 %v2386
        %2408 = vmatpush.msra.mxu0 %v2385
        %2409 = vmatpush.msra.mxu0 %v2384
        %2410 = vmatpush.msra.mxu0 %v2383
        %2411 = vmatpush.msra.mxu0 %v2382
        %2412 = vmatpush.msra.mxu0 %v2381
        %2413 = vmatmul.f32.gmra.mxu0 %v2364
        %v2414 = vpop.f32.mrf.mxu0
        %v2415 = vadd.f32 0.0, %v2414
        %2416 = vmatmul.f32.gmra.mxu0 %v2365
        %v2417 = vpop.f32.mrf.mxu0
        %v2418 = vadd.f32 0.0, %v2417
        %2419 = vmatmul.f32.gmra.mxu0 %v2366
        %v2420 = vpop.f32.mrf.mxu0
        %v2421 = vadd.f32 0.0, %v2420
        %2422 = vmatmul.f32.gmra.mxu0 %v2367
        %v2423 = vpop.f32.mrf.mxu0
        %v2424 = vadd.f32 0.0, %v2423
        %2425 = vmatmul.f32.gmra.mxu0 %v2368
        %v2426 = vpop.f32.mrf.mxu0
        %v2427 = vadd.f32 0.0, %v2426
        %2428 = vmatmul.f32.gmra.mxu0 %v2369
        %v2429 = vpop.f32.mrf.mxu0
        %v2430 = vadd.f32 0.0, %v2429
        %2431 = vmatmul.f32.gmra.mxu0 %v2370
        %v2432 = vpop.f32.mrf.mxu0
        %v2433 = vadd.f32 0.0, %v2432
        %2434 = vmatmul.f32.gmra.mxu0 %v2371
        %v2435 = vpop.f32.mrf.mxu0
        %v2436 = vadd.f32 0.0, %v2435
        %2437 = vmatmul.f32.gmra.mxu0 %v2372
        %v2438 = vpop.f32.mrf.mxu0
        %v2439 = vadd.f32 0.0, %v2438
        %2440 = vmatmul.f32.gmra.mxu0 %v2373
        %v2441 = vpop.f32.mrf.mxu0
        %v2442 = vadd.f32 0.0, %v2441
        %2443 = vmatmul.f32.gmra.mxu0 %v2374
        %v2444 = vpop.f32.mrf.mxu0
        %v2445 = vadd.f32 0.0, %v2444
        %2446 = vmatmul.f32.gmra.mxu0 %v2375
        %v2447 = vpop.f32.mrf.mxu0
        %v2448 = vadd.f32 0.0, %v2447
        %2449 = vmatmul.f32.gmra.mxu0 %v2376
        %v2450 = vpop.f32.mrf.mxu0
        %v2451 = vadd.f32 0.0, %v2450
        %2452 = vmatmul.f32.gmra.mxu0 %v2377
        %v2453 = vpop.f32.mrf.mxu0
        %v2454 = vadd.f32 0.0, %v2453
        %2455 = vmatmul.f32.gmra.mxu0 %v2378
        %v2456 = vpop.f32.mrf.mxu0
        %v2457 = vadd.f32 0.0, %v2456
        %2458 = vmatmul.f32.gmra.mxu0 %v2379
        %v2459 = vpop.f32.mrf.mxu0
        %v2460 = vadd.f32 0.0, %v2459
        %2461 = vdwg.mxu0
        %v2462 = vadd.f32 %v2348, %v2415
        %v2463 = vadd.f32 %v2349, %v2418
        %v2464 = vadd.f32 %v2350, %v2421
        %v2465 = vadd.f32 %v2351, %v2424
        %v2466 = vadd.f32 %v2352, %v2427
        %v2467 = vadd.f32 %v2353, %v2430
        %v2468 = vadd.f32 %v2354, %v2433
        %v2469 = vadd.f32 %v2355, %v2436
        %v2470 = vadd.f32 %v2356, %v2439
        %v2471 = vadd.f32 %v2357, %v2442
        %v2472 = vadd.f32 %v2358, %v2445
        %v2473 = vadd.f32 %v2359, %v2448
        %v2474 = vadd.f32 %v2360, %v2451
        %v2475 = vadd.f32 %v2361, %v2454
        %v2476 = vadd.f32 %v2362, %v2457
        %v2477 = vadd.f32 %v2363, %v2460
        %v2478 = vld [vmem:[%s2249 + $0x1e] sm:$0xff]
        %v2479 = vld [vmem:[%s2249 + $0x26] sm:$0xff]
        %v2480 = vld [vmem:[%s2249 + $0x56] sm:$0xff]
        %v2481 = vld [vmem:[%s2249 + $0x5e] sm:$0xff]
        %v2482 = vld [vmem:[%s2249 + $0x8e] sm:$0xff]
        %v2483 = vld [vmem:[%s2249 + $0x96] sm:$0xff]
        %v2484 = vld [vmem:[%s2249 + $0xc6] sm:$0xff]
        %v2485 = vld [vmem:[%s2249 + $0xce] sm:$0xff]
        %v2486 = vld [vmem:[%s2249 + $0xfe] sm:$0xff]
        %v2487 = vld [vmem:[%s2249 + $0x106] sm:$0xff]
        %v2488 = vld [vmem:[%s2249 + $0x136] sm:$0xff]
        %v2489 = vld [vmem:[%s2249 + $0x13e] sm:$0xff]
        %v2490 = vld [vmem:[%s2249 + $0x16e] sm:$0xff]
        %v2491 = vld [vmem:[%s2249 + $0x176] sm:$0xff]
        %v2492 = vld [vmem:[%s2249 + $0x1a6] sm:$0xff]
        %v2493 = vld [vmem:[%s2249 + $0x1ae] sm:$0xff]
        %s2494 = scalar_lea.vmem %s3, 1024
        %v2495 = vld [vmem:[%s2494] sm:$0xff]
        %v2496 = vld [vmem:[%s2494 + $0x8] sm:$0xff]
        %v2497 = vld [vmem:[%s2494 + $0x10] sm:$0xff]
        %v2498 = vld [vmem:[%s2494 + $0x18] sm:$0xff]
        %v2499 = vld [vmem:[%s2494 + $0x20] sm:$0xff]
        %v2500 = vld [vmem:[%s2494 + $0x28] sm:$0xff]
        %v2501 = vld [vmem:[%s2494 + $0x30] sm:$0xff]
        %v2502 = vld [vmem:[%s2494 + $0x38] sm:$0xff]
        %v2503 = vld [vmem:[%s2494 + $0x40] sm:$0xff]
        %v2504 = vld [vmem:[%s2494 + $0x48] sm:$0xff]
        %v2505 = vld [vmem:[%s2494 + $0x50] sm:$0xff]
        %v2506 = vld [vmem:[%s2494 + $0x58] sm:$0xff]
        %v2507 = vld [vmem:[%s2494 + $0x60] sm:$0xff]
        %v2508 = vld [vmem:[%s2494 + $0x68] sm:$0xff]
        %v2509 = vld [vmem:[%s2494 + $0x70] sm:$0xff]
        %v2510 = vld [vmem:[%s2494 + $0x78] sm:$0xff]
        %2511 = vmatpush.msra.mxu0 %v2510
        %2512 = vmatpush.msra.mxu0 %v2509
        %2513 = vmatpush.msra.mxu0 %v2508
        %2514 = vmatpush.msra.mxu0 %v2507
        %2515 = vmatpush.msra.mxu0 %v2506
        %2516 = vmatpush.msra.mxu0 %v2505
        %2517 = vmatpush.msra.mxu0 %v2504
        %2518 = vmatpush.msra.mxu0 %v2503
        %2519 = vmatpush.msra.mxu0 %v2502
        %2520 = vmatpush.msra.mxu0 %v2501
        %2521 = vmatpush.msra.mxu0 %v2500
        %2522 = vmatpush.msra.mxu0 %v2499
        %2523 = vmatpush.msra.mxu0 %v2498
        %2524 = vmatpush.msra.mxu0 %v2497
        %2525 = vmatpush.msra.mxu0 %v2496
        %2526 = vmatpush.msra.mxu0 %v2495
        %2527 = vmatmul.f32.gmra.mxu0 %v2478
        %v2528 = vpop.f32.mrf.mxu0
        %v2529 = vadd.f32 0.0, %v2528
        %2530 = vmatmul.f32.gmra.mxu0 %v2479
        %v2531 = vpop.f32.mrf.mxu0
        %v2532 = vadd.f32 0.0, %v2531
        %2533 = vmatmul.f32.gmra.mxu0 %v2480
        %v2534 = vpop.f32.mrf.mxu0
        %v2535 = vadd.f32 0.0, %v2534
        %2536 = vmatmul.f32.gmra.mxu0 %v2481
        %v2537 = vpop.f32.mrf.mxu0
        %v2538 = vadd.f32 0.0, %v2537
        %2539 = vmatmul.f32.gmra.mxu0 %v2482
        %v2540 = vpop.f32.mrf.mxu0
        %v2541 = vadd.f32 0.0, %v2540
        %2542 = vmatmul.f32.gmra.mxu0 %v2483
        %v2543 = vpop.f32.mrf.mxu0
        %v2544 = vadd.f32 0.0, %v2543
        %2545 = vmatmul.f32.gmra.mxu0 %v2484
        %v2546 = vpop.f32.mrf.mxu0
        %v2547 = vadd.f32 0.0, %v2546
        %2548 = vmatmul.f32.gmra.mxu0 %v2485
        %v2549 = vpop.f32.mrf.mxu0
        %v2550 = vadd.f32 0.0, %v2549
        %2551 = vmatmul.f32.gmra.mxu0 %v2486
        %v2552 = vpop.f32.mrf.mxu0
        %v2553 = vadd.f32 0.0, %v2552
        %2554 = vmatmul.f32.gmra.mxu0 %v2487
        %v2555 = vpop.f32.mrf.mxu0
        %v2556 = vadd.f32 0.0, %v2555
        %2557 = vmatmul.f32.gmra.mxu0 %v2488
        %v2558 = vpop.f32.mrf.mxu0
        %v2559 = vadd.f32 0.0, %v2558
        %2560 = vmatmul.f32.gmra.mxu0 %v2489
        %v2561 = vpop.f32.mrf.mxu0
        %v2562 = vadd.f32 0.0, %v2561
        %2563 = vmatmul.f32.gmra.mxu0 %v2490
        %v2564 = vpop.f32.mrf.mxu0
        %v2565 = vadd.f32 0.0, %v2564
        %2566 = vmatmul.f32.gmra.mxu0 %v2491
        %v2567 = vpop.f32.mrf.mxu0
        %v2568 = vadd.f32 0.0, %v2567
        %2569 = vmatmul.f32.gmra.mxu0 %v2492
        %v2570 = vpop.f32.mrf.mxu0
        %v2571 = vadd.f32 0.0, %v2570
        %2572 = vmatmul.f32.gmra.mxu0 %v2493
        %v2573 = vpop.f32.mrf.mxu0
        %v2574 = vadd.f32 0.0, %v2573
        %2575 = vdwg.mxu0
        %v2576 = vadd.f32 %v2462, %v2529
        %v2577 = vadd.f32 %v2463, %v2532
        %v2578 = vadd.f32 %v2464, %v2535
        %v2579 = vadd.f32 %v2465, %v2538
        %v2580 = vadd.f32 %v2466, %v2541
        %v2581 = vadd.f32 %v2467, %v2544
        %v2582 = vadd.f32 %v2468, %v2547
        %v2583 = vadd.f32 %v2469, %v2550
        %v2584 = vadd.f32 %v2470, %v2553
        %v2585 = vadd.f32 %v2471, %v2556
        %v2586 = vadd.f32 %v2472, %v2559
        %v2587 = vadd.f32 %v2473, %v2562
        %v2588 = vadd.f32 %v2474, %v2565
        %v2589 = vadd.f32 %v2475, %v2568
        %v2590 = vadd.f32 %v2476, %v2571
        %v2591 = vadd.f32 %v2477, %v2574
        %s2592 = smul.u32 %s439, 56
        %s2593 = scalar_lea.vmem %s415, %s2592
        %v2594 = vld [vmem:[%s2593] sm:$0xff]
        %v2595 = vld [vmem:[%s2593 + $0x8] sm:$0xff]
        %v2596 = vld [vmem:[%s2593 + $0x38] sm:$0xff]
        %v2597 = vld [vmem:[%s2593 + $0x40] sm:$0xff]
        %v2598 = vld [vmem:[%s2593 + $0x70] sm:$0xff]
        %v2599 = vld [vmem:[%s2593 + $0x78] sm:$0xff]
        %v2600 = vld [vmem:[%s2593 + $0xa8] sm:$0xff]
        %v2601 = vld [vmem:[%s2593 + $0xb0] sm:$0xff]
        %v2602 = vld [vmem:[%s2593 + $0xe0] sm:$0xff]
        %v2603 = vld [vmem:[%s2593 + $0xe8] sm:$0xff]
        %v2604 = vld [vmem:[%s2593 + $0x118] sm:$0xff]
        %v2605 = vld [vmem:[%s2593 + $0x120] sm:$0xff]
        %v2606 = vld [vmem:[%s2593 + $0x150] sm:$0xff]
        %v2607 = vld [vmem:[%s2593 + $0x158] sm:$0xff]
        %v2608 = vld [vmem:[%s2593 + $0x188] sm:$0xff]
        %v2609 = vld [vmem:[%s2593 + $0x190] sm:$0xff]
        %v2610 = vld [vmem:[%s4] sm:$0xff]
        %v2611 = vld [vmem:[%s4 + $0x8] sm:$0xff]
        %v2612 = vld [vmem:[%s4 + $0x10] sm:$0xff]
        %v2613 = vld [vmem:[%s4 + $0x18] sm:$0xff]
        %v2614 = vld [vmem:[%s4 + $0x20] sm:$0xff]
        %v2615 = vld [vmem:[%s4 + $0x28] sm:$0xff]
        %v2616 = vld [vmem:[%s4 + $0x30] sm:$0xff]
        %v2617 = vld [vmem:[%s4 + $0x38] sm:$0xff]
        %v2618 = vld [vmem:[%s4 + $0x40] sm:$0xff]
        %v2619 = vld [vmem:[%s4 + $0x48] sm:$0xff]
        %v2620 = vld [vmem:[%s4 + $0x50] sm:$0xff]
        %v2621 = vld [vmem:[%s4 + $0x58] sm:$0xff]
        %v2622 = vld [vmem:[%s4 + $0x60] sm:$0xff]
        %v2623 = vld [vmem:[%s4 + $0x68] sm:$0xff]
        %v2624 = vld [vmem:[%s4 + $0x70] sm:$0xff]
        %v2625 = vld [vmem:[%s4 + $0x78] sm:$0xff]
        %2626 = vmatpush.msra.mxu0 %v2625
        %2627 = vmatpush.msra.mxu0 %v2624
        %2628 = vmatpush.msra.mxu0 %v2623
        %2629 = vmatpush.msra.mxu0 %v2622
        %2630 = vmatpush.msra.mxu0 %v2621
        %2631 = vmatpush.msra.mxu0 %v2620
        %2632 = vmatpush.msra.mxu0 %v2619
        %2633 = vmatpush.msra.mxu0 %v2618
        %2634 = vmatpush.msra.mxu0 %v2617
        %2635 = vmatpush.msra.mxu0 %v2616
        %2636 = vmatpush.msra.mxu0 %v2615
        %2637 = vmatpush.msra.mxu0 %v2614
        %2638 = vmatpush.msra.mxu0 %v2613
        %2639 = vmatpush.msra.mxu0 %v2612
        %2640 = vmatpush.msra.mxu0 %v2611
        %2641 = vmatpush.msra.mxu0 %v2610
        %2642 = vmatmul.f32.gmra.mxu0 %v2594
        %v2643 = vpop.f32.mrf.mxu0
        %v2644 = vadd.f32 0.0, %v2643
        %2645 = vmatmul.f32.gmra.mxu0 %v2595
        %v2646 = vpop.f32.mrf.mxu0
        %v2647 = vadd.f32 0.0, %v2646
        %2648 = vmatmul.f32.gmra.mxu0 %v2596
        %v2649 = vpop.f32.mrf.mxu0
        %v2650 = vadd.f32 0.0, %v2649
        %2651 = vmatmul.f32.gmra.mxu0 %v2597
        %v2652 = vpop.f32.mrf.mxu0
        %v2653 = vadd.f32 0.0, %v2652
        %2654 = vmatmul.f32.gmra.mxu0 %v2598
        %v2655 = vpop.f32.mrf.mxu0
        %v2656 = vadd.f32 0.0, %v2655
        %2657 = vmatmul.f32.gmra.mxu0 %v2599
        %v2658 = vpop.f32.mrf.mxu0
        %v2659 = vadd.f32 0.0, %v2658
        %2660 = vmatmul.f32.gmra.mxu0 %v2600
        %v2661 = vpop.f32.mrf.mxu0
        %v2662 = vadd.f32 0.0, %v2661
        %2663 = vmatmul.f32.gmra.mxu0 %v2601
        %v2664 = vpop.f32.mrf.mxu0
        %v2665 = vadd.f32 0.0, %v2664
        %2666 = vmatmul.f32.gmra.mxu0 %v2602
        %v2667 = vpop.f32.mrf.mxu0
        %v2668 = vadd.f32 0.0, %v2667
        %2669 = vmatmul.f32.gmra.mxu0 %v2603
        %v2670 = vpop.f32.mrf.mxu0
        %v2671 = vadd.f32 0.0, %v2670
        %2672 = vmatmul.f32.gmra.mxu0 %v2604
        %v2673 = vpop.f32.mrf.mxu0
        %v2674 = vadd.f32 0.0, %v2673
        %2675 = vmatmul.f32.gmra.mxu0 %v2605
        %v2676 = vpop.f32.mrf.mxu0
        %v2677 = vadd.f32 0.0, %v2676
        %2678 = vmatmul.f32.gmra.mxu0 %v2606
        %v2679 = vpop.f32.mrf.mxu0
        %v2680 = vadd.f32 0.0, %v2679
        %2681 = vmatmul.f32.gmra.mxu0 %v2607
        %v2682 = vpop.f32.mrf.mxu0
        %v2683 = vadd.f32 0.0, %v2682
        %2684 = vmatmul.f32.gmra.mxu0 %v2608
        %v2685 = vpop.f32.mrf.mxu0
        %v2686 = vadd.f32 0.0, %v2685
        %2687 = vmatmul.f32.gmra.mxu0 %v2609
        %v2688 = vpop.f32.mrf.mxu0
        %v2689 = vadd.f32 0.0, %v2688
        %2690 = vdwg.mxu0
        %v2691 = vadd.f32 %v2576, %v2644
        %v2692 = vadd.f32 %v2577, %v2647
        %v2693 = vadd.f32 %v2578, %v2650
        %v2694 = vadd.f32 %v2579, %v2653
        %v2695 = vadd.f32 %v2580, %v2656
        %v2696 = vadd.f32 %v2581, %v2659
        %v2697 = vadd.f32 %v2582, %v2662
        %v2698 = vadd.f32 %v2583, %v2665
        %v2699 = vadd.f32 %v2584, %v2668
        %v2700 = vadd.f32 %v2585, %v2671
        %v2701 = vadd.f32 %v2586, %v2674
        %v2702 = vadd.f32 %v2587, %v2677
        %v2703 = vadd.f32 %v2588, %v2680
        %v2704 = vadd.f32 %v2589, %v2683
        %v2705 = vadd.f32 %v2590, %v2686
        %v2706 = vadd.f32 %v2591, %v2689
        %v2707 = vld [vmem:[%s2593 + $0x12] sm:$0xff]
        %v2708 = vld [vmem:[%s2593 + $0x1a] sm:$0xff]
        %v2709 = vld [vmem:[%s2593 + $0x4a] sm:$0xff]
        %v2710 = vld [vmem:[%s2593 + $0x52] sm:$0xff]
        %v2711 = vld [vmem:[%s2593 + $0x82] sm:$0xff]
        %v2712 = vld [vmem:[%s2593 + $0x8a] sm:$0xff]
        %v2713 = vld [vmem:[%s2593 + $0xba] sm:$0xff]
        %v2714 = vld [vmem:[%s2593 + $0xc2] sm:$0xff]
        %v2715 = vld [vmem:[%s2593 + $0xf2] sm:$0xff]
        %v2716 = vld [vmem:[%s2593 + $0xfa] sm:$0xff]
        %v2717 = vld [vmem:[%s2593 + $0x12a] sm:$0xff]
        %v2718 = vld [vmem:[%s2593 + $0x132] sm:$0xff]
        %v2719 = vld [vmem:[%s2593 + $0x162] sm:$0xff]
        %v2720 = vld [vmem:[%s2593 + $0x16a] sm:$0xff]
        %v2721 = vld [vmem:[%s2593 + $0x19a] sm:$0xff]
        %v2722 = vld [vmem:[%s2593 + $0x1a2] sm:$0xff]
        %s2723 = scalar_lea.vmem %s4, 128
        %v2724 = vld [vmem:[%s2723] sm:$0xff]
        %v2725 = vld [vmem:[%s2723 + $0x8] sm:$0xff]
        %v2726 = vld [vmem:[%s2723 + $0x10] sm:$0xff]
        %v2727 = vld [vmem:[%s2723 + $0x18] sm:$0xff]
        %v2728 = vld [vmem:[%s2723 + $0x20] sm:$0xff]
        %v2729 = vld [vmem:[%s2723 + $0x28] sm:$0xff]
        %v2730 = vld [vmem:[%s2723 + $0x30] sm:$0xff]
        %v2731 = vld [vmem:[%s2723 + $0x38] sm:$0xff]
        %v2732 = vld [vmem:[%s2723 + $0x40] sm:$0xff]
        %v2733 = vld [vmem:[%s2723 + $0x48] sm:$0xff]
        %v2734 = vld [vmem:[%s2723 + $0x50] sm:$0xff]
        %v2735 = vld [vmem:[%s2723 + $0x58] sm:$0xff]
        %v2736 = vld [vmem:[%s2723 + $0x60] sm:$0xff]
        %v2737 = vld [vmem:[%s2723 + $0x68] sm:$0xff]
        %v2738 = vld [vmem:[%s2723 + $0x70] sm:$0xff]
        %v2739 = vld [vmem:[%s2723 + $0x78] sm:$0xff]
        %2740 = vmatpush.msra.mxu0 %v2739
        %2741 = vmatpush.msra.mxu0 %v2738
        %2742 = vmatpush.msra.mxu0 %v2737
        %2743 = vmatpush.msra.mxu0 %v2736
        %2744 = vmatpush.msra.mxu0 %v2735
        %2745 = vmatpush.msra.mxu0 %v2734
        %2746 = vmatpush.msra.mxu0 %v2733
        %2747 = vmatpush.msra.mxu0 %v2732
        %2748 = vmatpush.msra.mxu0 %v2731
        %2749 = vmatpush.msra.mxu0 %v2730
        %2750 = vmatpush.msra.mxu0 %v2729
        %2751 = vmatpush.msra.mxu0 %v2728
        %2752 = vmatpush.msra.mxu0 %v2727
        %2753 = vmatpush.msra.mxu0 %v2726
        %2754 = vmatpush.msra.mxu0 %v2725
        %2755 = vmatpush.msra.mxu0 %v2724
        %2756 = vmatmul.f32.gmra.mxu0 %v2707
        %v2757 = vpop.f32.mrf.mxu0
        %v2758 = vadd.f32 0.0, %v2757
        %2759 = vmatmul.f32.gmra.mxu0 %v2708
        %v2760 = vpop.f32.mrf.mxu0
        %v2761 = vadd.f32 0.0, %v2760
        %2762 = vmatmul.f32.gmra.mxu0 %v2709
        %v2763 = vpop.f32.mrf.mxu0
        %v2764 = vadd.f32 0.0, %v2763
        %2765 = vmatmul.f32.gmra.mxu0 %v2710
        %v2766 = vpop.f32.mrf.mxu0
        %v2767 = vadd.f32 0.0, %v2766
        %2768 = vmatmul.f32.gmra.mxu0 %v2711
        %v2769 = vpop.f32.mrf.mxu0
        %v2770 = vadd.f32 0.0, %v2769
        %2771 = vmatmul.f32.gmra.mxu0 %v2712
        %v2772 = vpop.f32.mrf.mxu0
        %v2773 = vadd.f32 0.0, %v2772
        %2774 = vmatmul.f32.gmra.mxu0 %v2713
        %v2775 = vpop.f32.mrf.mxu0
        %v2776 = vadd.f32 0.0, %v2775
        %2777 = vmatmul.f32.gmra.mxu0 %v2714
        %v2778 = vpop.f32.mrf.mxu0
        %v2779 = vadd.f32 0.0, %v2778
        %2780 = vmatmul.f32.gmra.mxu0 %v2715
        %v2781 = vpop.f32.mrf.mxu0
        %v2782 = vadd.f32 0.0, %v2781
        %2783 = vmatmul.f32.gmra.mxu0 %v2716
        %v2784 = vpop.f32.mrf.mxu0
        %v2785 = vadd.f32 0.0, %v2784
        %2786 = vmatmul.f32.gmra.mxu0 %v2717
        %v2787 = vpop.f32.mrf.mxu0
        %v2788 = vadd.f32 0.0, %v2787
        %2789 = vmatmul.f32.gmra.mxu0 %v2718
        %v2790 = vpop.f32.mrf.mxu0
        %v2791 = vadd.f32 0.0, %v2790
        %2792 = vmatmul.f32.gmra.mxu0 %v2719
        %v2793 = vpop.f32.mrf.mxu0
        %v2794 = vadd.f32 0.0, %v2793
        %2795 = vmatmul.f32.gmra.mxu0 %v2720
        %v2796 = vpop.f32.mrf.mxu0
        %v2797 = vadd.f32 0.0, %v2796
        %2798 = vmatmul.f32.gmra.mxu0 %v2721
        %v2799 = vpop.f32.mrf.mxu0
        %v2800 = vadd.f32 0.0, %v2799
        %2801 = vmatmul.f32.gmra.mxu0 %v2722
        %v2802 = vpop.f32.mrf.mxu0
        %v2803 = vadd.f32 0.0, %v2802
        %2804 = vdwg.mxu0
        %v2805 = vadd.f32 %v2691, %v2758
        %v2806 = vadd.f32 %v2692, %v2761
        %v2807 = vadd.f32 %v2693, %v2764
        %v2808 = vadd.f32 %v2694, %v2767
        %v2809 = vadd.f32 %v2695, %v2770
        %v2810 = vadd.f32 %v2696, %v2773
        %v2811 = vadd.f32 %v2697, %v2776
        %v2812 = vadd.f32 %v2698, %v2779
        %v2813 = vadd.f32 %v2699, %v2782
        %v2814 = vadd.f32 %v2700, %v2785
        %v2815 = vadd.f32 %v2701, %v2788
        %v2816 = vadd.f32 %v2702, %v2791
        %v2817 = vadd.f32 %v2703, %v2794
        %v2818 = vadd.f32 %v2704, %v2797
        %v2819 = vadd.f32 %v2705, %v2800
        %v2820 = vadd.f32 %v2706, %v2803
        %v2821 = vld [vmem:[%s2593 + $0x24] sm:$0xff]
        %v2822 = vld [vmem:[%s2593 + $0x2c] sm:$0xff]
        %v2823 = vld [vmem:[%s2593 + $0x5c] sm:$0xff]
        %v2824 = vld [vmem:[%s2593 + $0x64] sm:$0xff]
        %v2825 = vld [vmem:[%s2593 + $0x94] sm:$0xff]
        %v2826 = vld [vmem:[%s2593 + $0x9c] sm:$0xff]
        %v2827 = vld [vmem:[%s2593 + $0xcc] sm:$0xff]
        %v2828 = vld [vmem:[%s2593 + $0xd4] sm:$0xff]
        %v2829 = vld [vmem:[%s2593 + $0x104] sm:$0xff]
        %v2830 = vld [vmem:[%s2593 + $0x10c] sm:$0xff]
        %v2831 = vld [vmem:[%s2593 + $0x13c] sm:$0xff]
        %v2832 = vld [vmem:[%s2593 + $0x144] sm:$0xff]
        %v2833 = vld [vmem:[%s2593 + $0x174] sm:$0xff]
        %v2834 = vld [vmem:[%s2593 + $0x17c] sm:$0xff]
        %v2835 = vld [vmem:[%s2593 + $0x1ac] sm:$0xff]
        %v2836 = vld [vmem:[%s2593 + $0x1b4] sm:$0xff]
        %s2837 = scalar_lea.vmem %s4, 256
        %v2838 = vld [vmem:[%s2837] sm:$0xff]
        %v2839 = vld [vmem:[%s2837 + $0x8] sm:$0xff]
        %v2840 = vld [vmem:[%s2837 + $0x10] sm:$0xff]
        %v2841 = vld [vmem:[%s2837 + $0x18] sm:$0xff]
        %v2842 = vld [vmem:[%s2837 + $0x20] sm:$0xff]
        %v2843 = vld [vmem:[%s2837 + $0x28] sm:$0xff]
        %v2844 = vld [vmem:[%s2837 + $0x30] sm:$0xff]
        %v2845 = vld [vmem:[%s2837 + $0x38] sm:$0xff]
        %v2846 = vld [vmem:[%s2837 + $0x40] sm:$0xff]
        %v2847 = vld [vmem:[%s2837 + $0x48] sm:$0xff]
        %v2848 = vld [vmem:[%s2837 + $0x50] sm:$0xff]
        %v2849 = vld [vmem:[%s2837 + $0x58] sm:$0xff]
        %v2850 = vld [vmem:[%s2837 + $0x60] sm:$0xff]
        %v2851 = vld [vmem:[%s2837 + $0x68] sm:$0xff]
        %v2852 = vld [vmem:[%s2837 + $0x70] sm:$0xff]
        %v2853 = vld [vmem:[%s2837 + $0x78] sm:$0xff]
        %2854 = vmatpush.msra.mxu0 %v2853
        %2855 = vmatpush.msra.mxu0 %v2852
        %2856 = vmatpush.msra.mxu0 %v2851
        %2857 = vmatpush.msra.mxu0 %v2850
        %2858 = vmatpush.msra.mxu0 %v2849
        %2859 = vmatpush.msra.mxu0 %v2848
        %2860 = vmatpush.msra.mxu0 %v2847
        %2861 = vmatpush.msra.mxu0 %v2846
        %2862 = vmatpush.msra.mxu0 %v2845
        %2863 = vmatpush.msra.mxu0 %v2844
        %2864 = vmatpush.msra.mxu0 %v2843
        %2865 = vmatpush.msra.mxu0 %v2842
        %2866 = vmatpush.msra.mxu0 %v2841
        %2867 = vmatpush.msra.mxu0 %v2840
        %2868 = vmatpush.msra.mxu0 %v2839
        %2869 = vmatpush.msra.mxu0 %v2838
        %2870 = vmatmul.f32.gmra.mxu0 %v2821
        %v2871 = vpop.f32.mrf.mxu0
        %v2872 = vadd.f32 0.0, %v2871
        %2873 = vmatmul.f32.gmra.mxu0 %v2822
        %v2874 = vpop.f32.mrf.mxu0
        %v2875 = vadd.f32 0.0, %v2874
        %2876 = vmatmul.f32.gmra.mxu0 %v2823
        %v2877 = vpop.f32.mrf.mxu0
        %v2878 = vadd.f32 0.0, %v2877
        %2879 = vmatmul.f32.gmra.mxu0 %v2824
        %v2880 = vpop.f32.mrf.mxu0
        %v2881 = vadd.f32 0.0, %v2880
        %2882 = vmatmul.f32.gmra.mxu0 %v2825
        %v2883 = vpop.f32.mrf.mxu0
        %v2884 = vadd.f32 0.0, %v2883
        %2885 = vmatmul.f32.gmra.mxu0 %v2826
        %v2886 = vpop.f32.mrf.mxu0
        %v2887 = vadd.f32 0.0, %v2886
        %2888 = vmatmul.f32.gmra.mxu0 %v2827
        %v2889 = vpop.f32.mrf.mxu0
        %v2890 = vadd.f32 0.0, %v2889
        %2891 = vmatmul.f32.gmra.mxu0 %v2828
        %v2892 = vpop.f32.mrf.mxu0
        %v2893 = vadd.f32 0.0, %v2892
        %2894 = vmatmul.f32.gmra.mxu0 %v2829
        %v2895 = vpop.f32.mrf.mxu0
        %v2896 = vadd.f32 0.0, %v2895
        %2897 = vmatmul.f32.gmra.mxu0 %v2830
        %v2898 = vpop.f32.mrf.mxu0
        %v2899 = vadd.f32 0.0, %v2898
        %2900 = vmatmul.f32.gmra.mxu0 %v2831
        %v2901 = vpop.f32.mrf.mxu0
        %v2902 = vadd.f32 0.0, %v2901
        %2903 = vmatmul.f32.gmra.mxu0 %v2832
        %v2904 = vpop.f32.mrf.mxu0
        %v2905 = vadd.f32 0.0, %v2904
        %2906 = vmatmul.f32.gmra.mxu0 %v2833
        %v2907 = vpop.f32.mrf.mxu0
        %v2908 = vadd.f32 0.0, %v2907
        %2909 = vmatmul.f32.gmra.mxu0 %v2834
        %v2910 = vpop.f32.mrf.mxu0
        %v2911 = vadd.f32 0.0, %v2910
        %2912 = vmatmul.f32.gmra.mxu0 %v2835
        %v2913 = vpop.f32.mrf.mxu0
        %v2914 = vadd.f32 0.0, %v2913
        %2915 = vmatmul.f32.gmra.mxu0 %v2836
        %v2916 = vpop.f32.mrf.mxu0
        %v2917 = vadd.f32 0.0, %v2916
        %2918 = vdwg.mxu0
        %v2919 = vadd.f32 %v2805, %v2872
        %v2920 = vadd.f32 %v2806, %v2875
        %v2921 = vadd.f32 %v2807, %v2878
        %v2922 = vadd.f32 %v2808, %v2881
        %v2923 = vadd.f32 %v2809, %v2884
        %v2924 = vadd.f32 %v2810, %v2887
        %v2925 = vadd.f32 %v2811, %v2890
        %v2926 = vadd.f32 %v2812, %v2893
        %v2927 = vadd.f32 %v2813, %v2896
        %v2928 = vadd.f32 %v2814, %v2899
        %v2929 = vadd.f32 %v2815, %v2902
        %v2930 = vadd.f32 %v2816, %v2905
        %v2931 = vadd.f32 %v2817, %v2908
        %v2932 = vadd.f32 %v2818, %v2911
        %v2933 = vadd.f32 %v2819, %v2914
        %v2934 = vadd.f32 %v2820, %v2917
        %v2935 = vld [vmem:[%s442] sm:$0xff]
        %v2936 = vld [vmem:[%s442 + $0x8] sm:$0xff]
        %v2937 = vld [vmem:[%s442 + $0x38] sm:$0xff]
        %v2938 = vld [vmem:[%s442 + $0x40] sm:$0xff]
        %v2939 = vld [vmem:[%s442 + $0x70] sm:$0xff]
        %v2940 = vld [vmem:[%s442 + $0x78] sm:$0xff]
        %v2941 = vld [vmem:[%s442 + $0xa8] sm:$0xff]
        %v2942 = vld [vmem:[%s442 + $0xb0] sm:$0xff]
        %v2943 = vld [vmem:[%s442 + $0xe0] sm:$0xff]
        %v2944 = vld [vmem:[%s442 + $0xe8] sm:$0xff]
        %v2945 = vld [vmem:[%s442 + $0x118] sm:$0xff]
        %v2946 = vld [vmem:[%s442 + $0x120] sm:$0xff]
        %v2947 = vld [vmem:[%s442 + $0x150] sm:$0xff]
        %v2948 = vld [vmem:[%s442 + $0x158] sm:$0xff]
        %v2949 = vld [vmem:[%s442 + $0x188] sm:$0xff]
        %v2950 = vld [vmem:[%s442 + $0x190] sm:$0xff]
        %s2951 = scalar_lea.vmem %s4, 384
        %v2952 = vld [vmem:[%s2951] sm:$0xff]
        %v2953 = vld [vmem:[%s2951 + $0x8] sm:$0xff]
        %v2954 = vld [vmem:[%s2951 + $0x10] sm:$0xff]
        %v2955 = vld [vmem:[%s2951 + $0x18] sm:$0xff]
        %v2956 = vld [vmem:[%s2951 + $0x20] sm:$0xff]
        %v2957 = vld [vmem:[%s2951 + $0x28] sm:$0xff]
        %v2958 = vld [vmem:[%s2951 + $0x30] sm:$0xff]
        %v2959 = vld [vmem:[%s2951 + $0x38] sm:$0xff]
        %v2960 = vld [vmem:[%s2951 + $0x40] sm:$0xff]
        %v2961 = vld [vmem:[%s2951 + $0x48] sm:$0xff]
        %v2962 = vld [vmem:[%s2951 + $0x50] sm:$0xff]
        %v2963 = vld [vmem:[%s2951 + $0x58] sm:$0xff]
        %v2964 = vld [vmem:[%s2951 + $0x60] sm:$0xff]
        %v2965 = vld [vmem:[%s2951 + $0x68] sm:$0xff]
        %v2966 = vld [vmem:[%s2951 + $0x70] sm:$0xff]
        %v2967 = vld [vmem:[%s2951 + $0x78] sm:$0xff]
        %2968 = vmatpush.msra.mxu0 %v2967
        %2969 = vmatpush.msra.mxu0 %v2966
        %2970 = vmatpush.msra.mxu0 %v2965
        %2971 = vmatpush.msra.mxu0 %v2964
        %2972 = vmatpush.msra.mxu0 %v2963
        %2973 = vmatpush.msra.mxu0 %v2962
        %2974 = vmatpush.msra.mxu0 %v2961
        %2975 = vmatpush.msra.mxu0 %v2960
        %2976 = vmatpush.msra.mxu0 %v2959
        %2977 = vmatpush.msra.mxu0 %v2958
        %2978 = vmatpush.msra.mxu0 %v2957
        %2979 = vmatpush.msra.mxu0 %v2956
        %2980 = vmatpush.msra.mxu0 %v2955
        %2981 = vmatpush.msra.mxu0 %v2954
        %2982 = vmatpush.msra.mxu0 %v2953
        %2983 = vmatpush.msra.mxu0 %v2952
        %2984 = vmatmul.f32.gmra.mxu0 %v2935
        %v2985 = vpop.f32.mrf.mxu0
        %v2986 = vadd.f32 0.0, %v2985
        %2987 = vmatmul.f32.gmra.mxu0 %v2936
        %v2988 = vpop.f32.mrf.mxu0
        %v2989 = vadd.f32 0.0, %v2988
        %2990 = vmatmul.f32.gmra.mxu0 %v2937
        %v2991 = vpop.f32.mrf.mxu0
        %v2992 = vadd.f32 0.0, %v2991
        %2993 = vmatmul.f32.gmra.mxu0 %v2938
        %v2994 = vpop.f32.mrf.mxu0
        %v2995 = vadd.f32 0.0, %v2994
        %2996 = vmatmul.f32.gmra.mxu0 %v2939
        %v2997 = vpop.f32.mrf.mxu0
        %v2998 = vadd.f32 0.0, %v2997
        %2999 = vmatmul.f32.gmra.mxu0 %v2940
        %v3000 = vpop.f32.mrf.mxu0
        %v3001 = vadd.f32 0.0, %v3000
        %3002 = vmatmul.f32.gmra.mxu0 %v2941
        %v3003 = vpop.f32.mrf.mxu0
        %v3004 = vadd.f32 0.0, %v3003
        %3005 = vmatmul.f32.gmra.mxu0 %v2942
        %v3006 = vpop.f32.mrf.mxu0
        %v3007 = vadd.f32 0.0, %v3006
        %3008 = vmatmul.f32.gmra.mxu0 %v2943
        %v3009 = vpop.f32.mrf.mxu0
        %v3010 = vadd.f32 0.0, %v3009
        %3011 = vmatmul.f32.gmra.mxu0 %v2944
        %v3012 = vpop.f32.mrf.mxu0
        %v3013 = vadd.f32 0.0, %v3012
        %3014 = vmatmul.f32.gmra.mxu0 %v2945
        %v3015 = vpop.f32.mrf.mxu0
        %v3016 = vadd.f32 0.0, %v3015
        %3017 = vmatmul.f32.gmra.mxu0 %v2946
        %v3018 = vpop.f32.mrf.mxu0
        %v3019 = vadd.f32 0.0, %v3018
        %3020 = vmatmul.f32.gmra.mxu0 %v2947
        %v3021 = vpop.f32.mrf.mxu0
        %v3022 = vadd.f32 0.0, %v3021
        %3023 = vmatmul.f32.gmra.mxu0 %v2948
        %v3024 = vpop.f32.mrf.mxu0
        %v3025 = vadd.f32 0.0, %v3024
        %3026 = vmatmul.f32.gmra.mxu0 %v2949
        %v3027 = vpop.f32.mrf.mxu0
        %v3028 = vadd.f32 0.0, %v3027
        %3029 = vmatmul.f32.gmra.mxu0 %v2950
        %v3030 = vpop.f32.mrf.mxu0
        %v3031 = vadd.f32 0.0, %v3030
        %3032 = vdwg.mxu0
        %v3033 = vadd.f32 %v2919, %v2986
        %v3034 = vadd.f32 %v2920, %v2989
        %v3035 = vadd.f32 %v2921, %v2992
        %v3036 = vadd.f32 %v2922, %v2995
        %v3037 = vadd.f32 %v2923, %v2998
        %v3038 = vadd.f32 %v2924, %v3001
        %v3039 = vadd.f32 %v2925, %v3004
        %v3040 = vadd.f32 %v2926, %v3007
        %v3041 = vadd.f32 %v2927, %v3010
        %v3042 = vadd.f32 %v2928, %v3013
        %v3043 = vadd.f32 %v2929, %v3016
        %v3044 = vadd.f32 %v2930, %v3019
        %v3045 = vadd.f32 %v2931, %v3022
        %v3046 = vadd.f32 %v2932, %v3025
        %v3047 = vadd.f32 %v2933, %v3028
        %v3048 = vadd.f32 %v2934, %v3031
        %s3049 = scalar_lea.vmem %s4, 512
        %v3050 = vld [vmem:[%s3049] sm:$0xff]
        %v3051 = vld [vmem:[%s3049 + $0x8] sm:$0xff]
        %v3052 = vld [vmem:[%s3049 + $0x10] sm:$0xff]
        %v3053 = vld [vmem:[%s3049 + $0x18] sm:$0xff]
        %v3054 = vld [vmem:[%s3049 + $0x20] sm:$0xff]
        %v3055 = vld [vmem:[%s3049 + $0x28] sm:$0xff]
        %v3056 = vld [vmem:[%s3049 + $0x30] sm:$0xff]
        %v3057 = vld [vmem:[%s3049 + $0x38] sm:$0xff]
        %v3058 = vld [vmem:[%s3049 + $0x40] sm:$0xff]
        %v3059 = vld [vmem:[%s3049 + $0x48] sm:$0xff]
        %v3060 = vld [vmem:[%s3049 + $0x50] sm:$0xff]
        %v3061 = vld [vmem:[%s3049 + $0x58] sm:$0xff]
        %v3062 = vld [vmem:[%s3049 + $0x60] sm:$0xff]
        %v3063 = vld [vmem:[%s3049 + $0x68] sm:$0xff]
        %v3064 = vld [vmem:[%s3049 + $0x70] sm:$0xff]
        %v3065 = vld [vmem:[%s3049 + $0x78] sm:$0xff]
        %3066 = vmatpush.msra.mxu0 %v3065
        %3067 = vmatpush.msra.mxu0 %v3064
        %3068 = vmatpush.msra.mxu0 %v3063
        %3069 = vmatpush.msra.mxu0 %v3062
        %3070 = vmatpush.msra.mxu0 %v3061
        %3071 = vmatpush.msra.mxu0 %v3060
        %3072 = vmatpush.msra.mxu0 %v3059
        %3073 = vmatpush.msra.mxu0 %v3058
        %3074 = vmatpush.msra.mxu0 %v3057
        %3075 = vmatpush.msra.mxu0 %v3056
        %3076 = vmatpush.msra.mxu0 %v3055
        %3077 = vmatpush.msra.mxu0 %v3054
        %3078 = vmatpush.msra.mxu0 %v3053
        %3079 = vmatpush.msra.mxu0 %v3052
        %3080 = vmatpush.msra.mxu0 %v3051
        %3081 = vmatpush.msra.mxu0 %v3050
        %3082 = vmatmul.f32.gmra.mxu0 %v443
        %v3083 = vpop.f32.mrf.mxu0
        %v3084 = vadd.f32 0.0, %v3083
        %3085 = vmatmul.f32.gmra.mxu0 %v444
        %v3086 = vpop.f32.mrf.mxu0
        %v3087 = vadd.f32 0.0, %v3086
        %3088 = vmatmul.f32.gmra.mxu0 %v445
        %v3089 = vpop.f32.mrf.mxu0
        %v3090 = vadd.f32 0.0, %v3089
        %3091 = vmatmul.f32.gmra.mxu0 %v446
        %v3092 = vpop.f32.mrf.mxu0
        %v3093 = vadd.f32 0.0, %v3092
        %3094 = vmatmul.f32.gmra.mxu0 %v447
        %v3095 = vpop.f32.mrf.mxu0
        %v3096 = vadd.f32 0.0, %v3095
        %3097 = vmatmul.f32.gmra.mxu0 %v448
        %v3098 = vpop.f32.mrf.mxu0
        %v3099 = vadd.f32 0.0, %v3098
        %3100 = vmatmul.f32.gmra.mxu0 %v449
        %v3101 = vpop.f32.mrf.mxu0
        %v3102 = vadd.f32 0.0, %v3101
        %3103 = vmatmul.f32.gmra.mxu0 %v450
        %v3104 = vpop.f32.mrf.mxu0
        %v3105 = vadd.f32 0.0, %v3104
        %3106 = vmatmul.f32.gmra.mxu0 %v451
        %v3107 = vpop.f32.mrf.mxu0
        %v3108 = vadd.f32 0.0, %v3107
        %3109 = vmatmul.f32.gmra.mxu0 %v452
        %v3110 = vpop.f32.mrf.mxu0
        %v3111 = vadd.f32 0.0, %v3110
        %3112 = vmatmul.f32.gmra.mxu0 %v453
        %v3113 = vpop.f32.mrf.mxu0
        %v3114 = vadd.f32 0.0, %v3113
        %3115 = vmatmul.f32.gmra.mxu0 %v454
        %v3116 = vpop.f32.mrf.mxu0
        %v3117 = vadd.f32 0.0, %v3116
        %3118 = vmatmul.f32.gmra.mxu0 %v455
        %v3119 = vpop.f32.mrf.mxu0
        %v3120 = vadd.f32 0.0, %v3119
        %3121 = vmatmul.f32.gmra.mxu0 %v456
        %v3122 = vpop.f32.mrf.mxu0
        %v3123 = vadd.f32 0.0, %v3122
        %3124 = vmatmul.f32.gmra.mxu0 %v457
        %v3125 = vpop.f32.mrf.mxu0
        %v3126 = vadd.f32 0.0, %v3125
        %3127 = vmatmul.f32.gmra.mxu0 %v458
        %v3128 = vpop.f32.mrf.mxu0
        %v3129 = vadd.f32 0.0, %v3128
        %3130 = vdwg.mxu0
        %v3131 = vadd.f32 %v3033, %v3084
        %v3132 = vadd.f32 %v3034, %v3087
        %v3133 = vadd.f32 %v3035, %v3090
        %v3134 = vadd.f32 %v3036, %v3093
        %v3135 = vadd.f32 %v3037, %v3096
        %v3136 = vadd.f32 %v3038, %v3099
        %v3137 = vadd.f32 %v3039, %v3102
        %v3138 = vadd.f32 %v3040, %v3105
        %v3139 = vadd.f32 %v3041, %v3108
        %v3140 = vadd.f32 %v3042, %v3111
        %v3141 = vadd.f32 %v3043, %v3114
        %v3142 = vadd.f32 %v3044, %v3117
        %v3143 = vadd.f32 %v3045, %v3120
        %v3144 = vadd.f32 %v3046, %v3123
        %v3145 = vadd.f32 %v3047, %v3126
        %v3146 = vadd.f32 %v3048, %v3129
        %v3147 = vld [vmem:[%s442 + $0x24] sm:$0xff]
        %v3148 = vld [vmem:[%s442 + $0x2c] sm:$0xff]
        %v3149 = vld [vmem:[%s442 + $0x5c] sm:$0xff]
        %v3150 = vld [vmem:[%s442 + $0x64] sm:$0xff]
        %v3151 = vld [vmem:[%s442 + $0x94] sm:$0xff]
        %v3152 = vld [vmem:[%s442 + $0x9c] sm:$0xff]
        %v3153 = vld [vmem:[%s442 + $0xcc] sm:$0xff]
        %v3154 = vld [vmem:[%s442 + $0xd4] sm:$0xff]
        %v3155 = vld [vmem:[%s442 + $0x104] sm:$0xff]
        %v3156 = vld [vmem:[%s442 + $0x10c] sm:$0xff]
        %v3157 = vld [vmem:[%s442 + $0x13c] sm:$0xff]
        %v3158 = vld [vmem:[%s442 + $0x144] sm:$0xff]
        %v3159 = vld [vmem:[%s442 + $0x174] sm:$0xff]
        %v3160 = vld [vmem:[%s442 + $0x17c] sm:$0xff]
        %v3161 = vld [vmem:[%s442 + $0x1ac] sm:$0xff]
        %v3162 = vld [vmem:[%s442 + $0x1b4] sm:$0xff]
        %s3163 = scalar_lea.vmem %s4, 640
        %v3164 = vld [vmem:[%s3163] sm:$0xff]
        %v3165 = vld [vmem:[%s3163 + $0x8] sm:$0xff]
        %v3166 = vld [vmem:[%s3163 + $0x10] sm:$0xff]
        %v3167 = vld [vmem:[%s3163 + $0x18] sm:$0xff]
        %v3168 = vld [vmem:[%s3163 + $0x20] sm:$0xff]
        %v3169 = vld [vmem:[%s3163 + $0x28] sm:$0xff]
        %v3170 = vld [vmem:[%s3163 + $0x30] sm:$0xff]
        %v3171 = vld [vmem:[%s3163 + $0x38] sm:$0xff]
        %v3172 = vld [vmem:[%s3163 + $0x40] sm:$0xff]
        %v3173 = vld [vmem:[%s3163 + $0x48] sm:$0xff]
        %v3174 = vld [vmem:[%s3163 + $0x50] sm:$0xff]
        %v3175 = vld [vmem:[%s3163 + $0x58] sm:$0xff]
        %v3176 = vld [vmem:[%s3163 + $0x60] sm:$0xff]
        %v3177 = vld [vmem:[%s3163 + $0x68] sm:$0xff]
        %v3178 = vld [vmem:[%s3163 + $0x70] sm:$0xff]
        %v3179 = vld [vmem:[%s3163 + $0x78] sm:$0xff]
        %3180 = vmatpush.msra.mxu0 %v3179
        %3181 = vmatpush.msra.mxu0 %v3178
        %3182 = vmatpush.msra.mxu0 %v3177
        %3183 = vmatpush.msra.mxu0 %v3176
        %3184 = vmatpush.msra.mxu0 %v3175
        %3185 = vmatpush.msra.mxu0 %v3174
        %3186 = vmatpush.msra.mxu0 %v3173
        %3187 = vmatpush.msra.mxu0 %v3172
        %3188 = vmatpush.msra.mxu0 %v3171
        %3189 = vmatpush.msra.mxu0 %v3170
        %3190 = vmatpush.msra.mxu0 %v3169
        %3191 = vmatpush.msra.mxu0 %v3168
        %3192 = vmatpush.msra.mxu0 %v3167
        %3193 = vmatpush.msra.mxu0 %v3166
        %3194 = vmatpush.msra.mxu0 %v3165
        %3195 = vmatpush.msra.mxu0 %v3164
        %3196 = vmatmul.f32.gmra.mxu0 %v3147
        %v3197 = vpop.f32.mrf.mxu0
        %v3198 = vadd.f32 0.0, %v3197
        %3199 = vmatmul.f32.gmra.mxu0 %v3148
        %v3200 = vpop.f32.mrf.mxu0
        %v3201 = vadd.f32 0.0, %v3200
        %3202 = vmatmul.f32.gmra.mxu0 %v3149
        %v3203 = vpop.f32.mrf.mxu0
        %v3204 = vadd.f32 0.0, %v3203
        %3205 = vmatmul.f32.gmra.mxu0 %v3150
        %v3206 = vpop.f32.mrf.mxu0
        %v3207 = vadd.f32 0.0, %v3206
        %3208 = vmatmul.f32.gmra.mxu0 %v3151
        %v3209 = vpop.f32.mrf.mxu0
        %v3210 = vadd.f32 0.0, %v3209
        %3211 = vmatmul.f32.gmra.mxu0 %v3152
        %v3212 = vpop.f32.mrf.mxu0
        %v3213 = vadd.f32 0.0, %v3212
        %3214 = vmatmul.f32.gmra.mxu0 %v3153
        %v3215 = vpop.f32.mrf.mxu0
        %v3216 = vadd.f32 0.0, %v3215
        %3217 = vmatmul.f32.gmra.mxu0 %v3154
        %v3218 = vpop.f32.mrf.mxu0
        %v3219 = vadd.f32 0.0, %v3218
        %3220 = vmatmul.f32.gmra.mxu0 %v3155
        %v3221 = vpop.f32.mrf.mxu0
        %v3222 = vadd.f32 0.0, %v3221
        %3223 = vmatmul.f32.gmra.mxu0 %v3156
        %v3224 = vpop.f32.mrf.mxu0
        %v3225 = vadd.f32 0.0, %v3224
        %3226 = vmatmul.f32.gmra.mxu0 %v3157
        %v3227 = vpop.f32.mrf.mxu0
        %v3228 = vadd.f32 0.0, %v3227
        %3229 = vmatmul.f32.gmra.mxu0 %v3158
        %v3230 = vpop.f32.mrf.mxu0
        %v3231 = vadd.f32 0.0, %v3230
        %3232 = vmatmul.f32.gmra.mxu0 %v3159
        %v3233 = vpop.f32.mrf.mxu0
        %v3234 = vadd.f32 0.0, %v3233
        %3235 = vmatmul.f32.gmra.mxu0 %v3160
        %v3236 = vpop.f32.mrf.mxu0
        %v3237 = vadd.f32 0.0, %v3236
        %3238 = vmatmul.f32.gmra.mxu0 %v3161
        %v3239 = vpop.f32.mrf.mxu0
        %v3240 = vadd.f32 0.0, %v3239
        %3241 = vmatmul.f32.gmra.mxu0 %v3162
        %v3242 = vpop.f32.mrf.mxu0
        %v3243 = vadd.f32 0.0, %v3242
        %3244 = vdwg.mxu0
        %v3245 = vadd.f32 %v3131, %v3198
        %v3246 = vadd.f32 %v3132, %v3201
        %v3247 = vadd.f32 %v3133, %v3204
        %v3248 = vadd.f32 %v3134, %v3207
        %v3249 = vadd.f32 %v3135, %v3210
        %v3250 = vadd.f32 %v3136, %v3213
        %v3251 = vadd.f32 %v3137, %v3216
        %v3252 = vadd.f32 %v3138, %v3219
        %v3253 = vadd.f32 %v3139, %v3222
        %v3254 = vadd.f32 %v3140, %v3225
        %v3255 = vadd.f32 %v3141, %v3228
        %v3256 = vadd.f32 %v3142, %v3231
        %v3257 = vadd.f32 %v3143, %v3234
        %v3258 = vadd.f32 %v3144, %v3237
        %v3259 = vadd.f32 %v3145, %v3240
        %v3260 = vadd.f32 %v3146, %v3243
        %s3261 = sadd.s32 %s439, 36
        %s3262 = smul.u32 %s3261, 56
        %s3263 = scalar_lea.vmem %s415, %s3262
        %v3264 = vld [vmem:[%s3263] sm:$0xff]
        %v3265 = vld [vmem:[%s3263 + $0x8] sm:$0xff]
        %v3266 = vld [vmem:[%s3263 + $0x38] sm:$0xff]
        %v3267 = vld [vmem:[%s3263 + $0x40] sm:$0xff]
        %v3268 = vld [vmem:[%s3263 + $0x70] sm:$0xff]
        %v3269 = vld [vmem:[%s3263 + $0x78] sm:$0xff]
        %v3270 = vld [vmem:[%s3263 + $0xa8] sm:$0xff]
        %v3271 = vld [vmem:[%s3263 + $0xb0] sm:$0xff]
        %v3272 = vld [vmem:[%s3263 + $0xe0] sm:$0xff]
        %v3273 = vld [vmem:[%s3263 + $0xe8] sm:$0xff]
        %v3274 = vld [vmem:[%s3263 + $0x118] sm:$0xff]
        %v3275 = vld [vmem:[%s3263 + $0x120] sm:$0xff]
        %v3276 = vld [vmem:[%s3263 + $0x150] sm:$0xff]
        %v3277 = vld [vmem:[%s3263 + $0x158] sm:$0xff]
        %v3278 = vld [vmem:[%s3263 + $0x188] sm:$0xff]
        %v3279 = vld [vmem:[%s3263 + $0x190] sm:$0xff]
        %s3280 = scalar_lea.vmem %s4, 768
        %v3281 = vld [vmem:[%s3280] sm:$0xff]
        %v3282 = vld [vmem:[%s3280 + $0x8] sm:$0xff]
        %v3283 = vld [vmem:[%s3280 + $0x10] sm:$0xff]
        %v3284 = vld [vmem:[%s3280 + $0x18] sm:$0xff]
        %v3285 = vld [vmem:[%s3280 + $0x20] sm:$0xff]
        %v3286 = vld [vmem:[%s3280 + $0x28] sm:$0xff]
        %v3287 = vld [vmem:[%s3280 + $0x30] sm:$0xff]
        %v3288 = vld [vmem:[%s3280 + $0x38] sm:$0xff]
        %v3289 = vld [vmem:[%s3280 + $0x40] sm:$0xff]
        %v3290 = vld [vmem:[%s3280 + $0x48] sm:$0xff]
        %v3291 = vld [vmem:[%s3280 + $0x50] sm:$0xff]
        %v3292 = vld [vmem:[%s3280 + $0x58] sm:$0xff]
        %v3293 = vld [vmem:[%s3280 + $0x60] sm:$0xff]
        %v3294 = vld [vmem:[%s3280 + $0x68] sm:$0xff]
        %v3295 = vld [vmem:[%s3280 + $0x70] sm:$0xff]
        %v3296 = vld [vmem:[%s3280 + $0x78] sm:$0xff]
        %3297 = vmatpush.msra.mxu0 %v3296
        %3298 = vmatpush.msra.mxu0 %v3295
        %3299 = vmatpush.msra.mxu0 %v3294
        %3300 = vmatpush.msra.mxu0 %v3293
        %3301 = vmatpush.msra.mxu0 %v3292
        %3302 = vmatpush.msra.mxu0 %v3291
        %3303 = vmatpush.msra.mxu0 %v3290
        %3304 = vmatpush.msra.mxu0 %v3289
        %3305 = vmatpush.msra.mxu0 %v3288
        %3306 = vmatpush.msra.mxu0 %v3287
        %3307 = vmatpush.msra.mxu0 %v3286
        %3308 = vmatpush.msra.mxu0 %v3285
        %3309 = vmatpush.msra.mxu0 %v3284
        %3310 = vmatpush.msra.mxu0 %v3283
        %3311 = vmatpush.msra.mxu0 %v3282
        %3312 = vmatpush.msra.mxu0 %v3281
        %3313 = vmatmul.f32.gmra.mxu0 %v3264
        %v3314 = vpop.f32.mrf.mxu0
        %v3315 = vadd.f32 0.0, %v3314
        %3316 = vmatmul.f32.gmra.mxu0 %v3265
        %v3317 = vpop.f32.mrf.mxu0
        %v3318 = vadd.f32 0.0, %v3317
        %3319 = vmatmul.f32.gmra.mxu0 %v3266
        %v3320 = vpop.f32.mrf.mxu0
        %v3321 = vadd.f32 0.0, %v3320
        %3322 = vmatmul.f32.gmra.mxu0 %v3267
        %v3323 = vpop.f32.mrf.mxu0
        %v3324 = vadd.f32 0.0, %v3323
        %3325 = vmatmul.f32.gmra.mxu0 %v3268
        %v3326 = vpop.f32.mrf.mxu0
        %v3327 = vadd.f32 0.0, %v3326
        %3328 = vmatmul.f32.gmra.mxu0 %v3269
        %v3329 = vpop.f32.mrf.mxu0
        %v3330 = vadd.f32 0.0, %v3329
        %3331 = vmatmul.f32.gmra.mxu0 %v3270
        %v3332 = vpop.f32.mrf.mxu0
        %v3333 = vadd.f32 0.0, %v3332
        %3334 = vmatmul.f32.gmra.mxu0 %v3271
        %v3335 = vpop.f32.mrf.mxu0
        %v3336 = vadd.f32 0.0, %v3335
        %3337 = vmatmul.f32.gmra.mxu0 %v3272
        %v3338 = vpop.f32.mrf.mxu0
        %v3339 = vadd.f32 0.0, %v3338
        %3340 = vmatmul.f32.gmra.mxu0 %v3273
        %v3341 = vpop.f32.mrf.mxu0
        %v3342 = vadd.f32 0.0, %v3341
        %3343 = vmatmul.f32.gmra.mxu0 %v3274
        %v3344 = vpop.f32.mrf.mxu0
        %v3345 = vadd.f32 0.0, %v3344
        %3346 = vmatmul.f32.gmra.mxu0 %v3275
        %v3347 = vpop.f32.mrf.mxu0
        %v3348 = vadd.f32 0.0, %v3347
        %3349 = vmatmul.f32.gmra.mxu0 %v3276
        %v3350 = vpop.f32.mrf.mxu0
        %v3351 = vadd.f32 0.0, %v3350
        %3352 = vmatmul.f32.gmra.mxu0 %v3277
        %v3353 = vpop.f32.mrf.mxu0
        %v3354 = vadd.f32 0.0, %v3353
        %3355 = vmatmul.f32.gmra.mxu0 %v3278
        %v3356 = vpop.f32.mrf.mxu0
        %v3357 = vadd.f32 0.0, %v3356
        %3358 = vmatmul.f32.gmra.mxu0 %v3279
        %v3359 = vpop.f32.mrf.mxu0
        %v3360 = vadd.f32 0.0, %v3359
        %3361 = vdwg.mxu0
        %v3362 = vadd.f32 %v3245, %v3315
        %v3363 = vadd.f32 %v3246, %v3318
        %v3364 = vadd.f32 %v3247, %v3321
        %v3365 = vadd.f32 %v3248, %v3324
        %v3366 = vadd.f32 %v3249, %v3327
        %v3367 = vadd.f32 %v3250, %v3330
        %v3368 = vadd.f32 %v3251, %v3333
        %v3369 = vadd.f32 %v3252, %v3336
        %v3370 = vadd.f32 %v3253, %v3339
        %v3371 = vadd.f32 %v3254, %v3342
        %v3372 = vadd.f32 %v3255, %v3345
        %v3373 = vadd.f32 %v3256, %v3348
        %v3374 = vadd.f32 %v3257, %v3351
        %v3375 = vadd.f32 %v3258, %v3354
        %v3376 = vadd.f32 %v3259, %v3357
        %v3377 = vadd.f32 %v3260, %v3360
        %v3378 = vld [vmem:[%s3263 + $0x12] sm:$0xff]
        %v3379 = vld [vmem:[%s3263 + $0x1a] sm:$0xff]
        %v3380 = vld [vmem:[%s3263 + $0x4a] sm:$0xff]
        %v3381 = vld [vmem:[%s3263 + $0x52] sm:$0xff]
        %v3382 = vld [vmem:[%s3263 + $0x82] sm:$0xff]
        %v3383 = vld [vmem:[%s3263 + $0x8a] sm:$0xff]
        %v3384 = vld [vmem:[%s3263 + $0xba] sm:$0xff]
        %v3385 = vld [vmem:[%s3263 + $0xc2] sm:$0xff]
        %v3386 = vld [vmem:[%s3263 + $0xf2] sm:$0xff]
        %v3387 = vld [vmem:[%s3263 + $0xfa] sm:$0xff]
        %v3388 = vld [vmem:[%s3263 + $0x12a] sm:$0xff]
        %v3389 = vld [vmem:[%s3263 + $0x132] sm:$0xff]
        %v3390 = vld [vmem:[%s3263 + $0x162] sm:$0xff]
        %v3391 = vld [vmem:[%s3263 + $0x16a] sm:$0xff]
        %v3392 = vld [vmem:[%s3263 + $0x19a] sm:$0xff]
        %v3393 = vld [vmem:[%s3263 + $0x1a2] sm:$0xff]
        %s3394 = scalar_lea.vmem %s4, 896
        %v3395 = vld [vmem:[%s3394] sm:$0xff]
        %v3396 = vld [vmem:[%s3394 + $0x8] sm:$0xff]
        %v3397 = vld [vmem:[%s3394 + $0x10] sm:$0xff]
        %v3398 = vld [vmem:[%s3394 + $0x18] sm:$0xff]
        %v3399 = vld [vmem:[%s3394 + $0x20] sm:$0xff]
        %v3400 = vld [vmem:[%s3394 + $0x28] sm:$0xff]
        %v3401 = vld [vmem:[%s3394 + $0x30] sm:$0xff]
        %v3402 = vld [vmem:[%s3394 + $0x38] sm:$0xff]
        %v3403 = vld [vmem:[%s3394 + $0x40] sm:$0xff]
        %v3404 = vld [vmem:[%s3394 + $0x48] sm:$0xff]
        %v3405 = vld [vmem:[%s3394 + $0x50] sm:$0xff]
        %v3406 = vld [vmem:[%s3394 + $0x58] sm:$0xff]
        %v3407 = vld [vmem:[%s3394 + $0x60] sm:$0xff]
        %v3408 = vld [vmem:[%s3394 + $0x68] sm:$0xff]
        %v3409 = vld [vmem:[%s3394 + $0x70] sm:$0xff]
        %v3410 = vld [vmem:[%s3394 + $0x78] sm:$0xff]
        %3411 = vmatpush.msra.mxu0 %v3410
        %3412 = vmatpush.msra.mxu0 %v3409
        %3413 = vmatpush.msra.mxu0 %v3408
        %3414 = vmatpush.msra.mxu0 %v3407
        %3415 = vmatpush.msra.mxu0 %v3406
        %3416 = vmatpush.msra.mxu0 %v3405
        %3417 = vmatpush.msra.mxu0 %v3404
        %3418 = vmatpush.msra.mxu0 %v3403
        %3419 = vmatpush.msra.mxu0 %v3402
        %3420 = vmatpush.msra.mxu0 %v3401
        %3421 = vmatpush.msra.mxu0 %v3400
        %3422 = vmatpush.msra.mxu0 %v3399
        %3423 = vmatpush.msra.mxu0 %v3398
        %3424 = vmatpush.msra.mxu0 %v3397
        %3425 = vmatpush.msra.mxu0 %v3396
        %3426 = vmatpush.msra.mxu0 %v3395
        %3427 = vmatmul.f32.gmra.mxu0 %v3378
        %v3428 = vpop.f32.mrf.mxu0
        %v3429 = vadd.f32 0.0, %v3428
        %3430 = vmatmul.f32.gmra.mxu0 %v3379
        %v3431 = vpop.f32.mrf.mxu0
        %v3432 = vadd.f32 0.0, %v3431
        %3433 = vmatmul.f32.gmra.mxu0 %v3380
        %v3434 = vpop.f32.mrf.mxu0
        %v3435 = vadd.f32 0.0, %v3434
        %3436 = vmatmul.f32.gmra.mxu0 %v3381
        %v3437 = vpop.f32.mrf.mxu0
        %v3438 = vadd.f32 0.0, %v3437
        %3439 = vmatmul.f32.gmra.mxu0 %v3382
        %v3440 = vpop.f32.mrf.mxu0
        %v3441 = vadd.f32 0.0, %v3440
        %3442 = vmatmul.f32.gmra.mxu0 %v3383
        %v3443 = vpop.f32.mrf.mxu0
        %v3444 = vadd.f32 0.0, %v3443
        %3445 = vmatmul.f32.gmra.mxu0 %v3384
        %v3446 = vpop.f32.mrf.mxu0
        %v3447 = vadd.f32 0.0, %v3446
        %3448 = vmatmul.f32.gmra.mxu0 %v3385
        %v3449 = vpop.f32.mrf.mxu0
        %v3450 = vadd.f32 0.0, %v3449
        %3451 = vmatmul.f32.gmra.mxu0 %v3386
        %v3452 = vpop.f32.mrf.mxu0
        %v3453 = vadd.f32 0.0, %v3452
        %3454 = vmatmul.f32.gmra.mxu0 %v3387
        %v3455 = vpop.f32.mrf.mxu0
        %v3456 = vadd.f32 0.0, %v3455
        %3457 = vmatmul.f32.gmra.mxu0 %v3388
        %v3458 = vpop.f32.mrf.mxu0
        %v3459 = vadd.f32 0.0, %v3458
        %3460 = vmatmul.f32.gmra.mxu0 %v3389
        %v3461 = vpop.f32.mrf.mxu0
        %v3462 = vadd.f32 0.0, %v3461
        %3463 = vmatmul.f32.gmra.mxu0 %v3390
        %v3464 = vpop.f32.mrf.mxu0
        %v3465 = vadd.f32 0.0, %v3464
        %3466 = vmatmul.f32.gmra.mxu0 %v3391
        %v3467 = vpop.f32.mrf.mxu0
        %v3468 = vadd.f32 0.0, %v3467
        %3469 = vmatmul.f32.gmra.mxu0 %v3392
        %v3470 = vpop.f32.mrf.mxu0
        %v3471 = vadd.f32 0.0, %v3470
        %3472 = vmatmul.f32.gmra.mxu0 %v3393
        %v3473 = vpop.f32.mrf.mxu0
        %v3474 = vadd.f32 0.0, %v3473
        %3475 = vdwg.mxu0
        %v3476 = vadd.f32 %v3362, %v3429
        %v3477 = vadd.f32 %v3363, %v3432
        %v3478 = vadd.f32 %v3364, %v3435
        %v3479 = vadd.f32 %v3365, %v3438
        %v3480 = vadd.f32 %v3366, %v3441
        %v3481 = vadd.f32 %v3367, %v3444
        %v3482 = vadd.f32 %v3368, %v3447
        %v3483 = vadd.f32 %v3369, %v3450
        %v3484 = vadd.f32 %v3370, %v3453
        %v3485 = vadd.f32 %v3371, %v3456
        %v3486 = vadd.f32 %v3372, %v3459
        %v3487 = vadd.f32 %v3373, %v3462
        %v3488 = vadd.f32 %v3374, %v3465
        %v3489 = vadd.f32 %v3375, %v3468
        %v3490 = vadd.f32 %v3376, %v3471
        %v3491 = vadd.f32 %v3377, %v3474
        %v3492 = vld [vmem:[%s3263 + $0x24] sm:$0xff]
        %v3493 = vld [vmem:[%s3263 + $0x2c] sm:$0xff]
        %v3494 = vld [vmem:[%s3263 + $0x5c] sm:$0xff]
        %v3495 = vld [vmem:[%s3263 + $0x64] sm:$0xff]
        %v3496 = vld [vmem:[%s3263 + $0x94] sm:$0xff]
        %v3497 = vld [vmem:[%s3263 + $0x9c] sm:$0xff]
        %v3498 = vld [vmem:[%s3263 + $0xcc] sm:$0xff]
        %v3499 = vld [vmem:[%s3263 + $0xd4] sm:$0xff]
        %v3500 = vld [vmem:[%s3263 + $0x104] sm:$0xff]
        %v3501 = vld [vmem:[%s3263 + $0x10c] sm:$0xff]
        %v3502 = vld [vmem:[%s3263 + $0x13c] sm:$0xff]
        %v3503 = vld [vmem:[%s3263 + $0x144] sm:$0xff]
        %v3504 = vld [vmem:[%s3263 + $0x174] sm:$0xff]
        %v3505 = vld [vmem:[%s3263 + $0x17c] sm:$0xff]
        %v3506 = vld [vmem:[%s3263 + $0x1ac] sm:$0xff]
        %v3507 = vld [vmem:[%s3263 + $0x1b4] sm:$0xff]
        %s3508 = scalar_lea.vmem %s4, 1024
        %v3509 = vld [vmem:[%s3508] sm:$0xff]
        %v3510 = vld [vmem:[%s3508 + $0x8] sm:$0xff]
        %v3511 = vld [vmem:[%s3508 + $0x10] sm:$0xff]
        %v3512 = vld [vmem:[%s3508 + $0x18] sm:$0xff]
        %v3513 = vld [vmem:[%s3508 + $0x20] sm:$0xff]
        %v3514 = vld [vmem:[%s3508 + $0x28] sm:$0xff]
        %v3515 = vld [vmem:[%s3508 + $0x30] sm:$0xff]
        %v3516 = vld [vmem:[%s3508 + $0x38] sm:$0xff]
        %v3517 = vld [vmem:[%s3508 + $0x40] sm:$0xff]
        %v3518 = vld [vmem:[%s3508 + $0x48] sm:$0xff]
        %v3519 = vld [vmem:[%s3508 + $0x50] sm:$0xff]
        %v3520 = vld [vmem:[%s3508 + $0x58] sm:$0xff]
        %v3521 = vld [vmem:[%s3508 + $0x60] sm:$0xff]
        %v3522 = vld [vmem:[%s3508 + $0x68] sm:$0xff]
        %v3523 = vld [vmem:[%s3508 + $0x70] sm:$0xff]
        %v3524 = vld [vmem:[%s3508 + $0x78] sm:$0xff]
        %3525 = vmatpush.msra.mxu0 %v3524
        %3526 = vmatpush.msra.mxu0 %v3523
        %3527 = vmatpush.msra.mxu0 %v3522
        %3528 = vmatpush.msra.mxu0 %v3521
        %3529 = vmatpush.msra.mxu0 %v3520
        %3530 = vmatpush.msra.mxu0 %v3519
        %3531 = vmatpush.msra.mxu0 %v3518
        %3532 = vmatpush.msra.mxu0 %v3517
        %3533 = vmatpush.msra.mxu0 %v3516
        %3534 = vmatpush.msra.mxu0 %v3515
        %3535 = vmatpush.msra.mxu0 %v3514
        %3536 = vmatpush.msra.mxu0 %v3513
        %3537 = vmatpush.msra.mxu0 %v3512
        %3538 = vmatpush.msra.mxu0 %v3511
        %3539 = vmatpush.msra.mxu0 %v3510
        %3540 = vmatpush.msra.mxu0 %v3509
        %3541 = vmatmul.f32.gmra.mxu0 %v3492
        %v3542 = vpop.f32.mrf.mxu0
        %v3543 = vadd.f32 0.0, %v3542
        %3544 = vmatmul.f32.gmra.mxu0 %v3493
        %v3545 = vpop.f32.mrf.mxu0
        %v3546 = vadd.f32 0.0, %v3545
        %3547 = vmatmul.f32.gmra.mxu0 %v3494
        %v3548 = vpop.f32.mrf.mxu0
        %v3549 = vadd.f32 0.0, %v3548
        %3550 = vmatmul.f32.gmra.mxu0 %v3495
        %v3551 = vpop.f32.mrf.mxu0
        %v3552 = vadd.f32 0.0, %v3551
        %3553 = vmatmul.f32.gmra.mxu0 %v3496
        %v3554 = vpop.f32.mrf.mxu0
        %v3555 = vadd.f32 0.0, %v3554
        %3556 = vmatmul.f32.gmra.mxu0 %v3497
        %v3557 = vpop.f32.mrf.mxu0
        %v3558 = vadd.f32 0.0, %v3557
        %3559 = vmatmul.f32.gmra.mxu0 %v3498
        %v3560 = vpop.f32.mrf.mxu0
        %v3561 = vadd.f32 0.0, %v3560
        %3562 = vmatmul.f32.gmra.mxu0 %v3499
        %v3563 = vpop.f32.mrf.mxu0
        %v3564 = vadd.f32 0.0, %v3563
        %3565 = vmatmul.f32.gmra.mxu0 %v3500
        %v3566 = vpop.f32.mrf.mxu0
        %v3567 = vadd.f32 0.0, %v3566
        %3568 = vmatmul.f32.gmra.mxu0 %v3501
        %v3569 = vpop.f32.mrf.mxu0
        %v3570 = vadd.f32 0.0, %v3569
        %3571 = vmatmul.f32.gmra.mxu0 %v3502
        %v3572 = vpop.f32.mrf.mxu0
        %v3573 = vadd.f32 0.0, %v3572
        %3574 = vmatmul.f32.gmra.mxu0 %v3503
        %v3575 = vpop.f32.mrf.mxu0
        %v3576 = vadd.f32 0.0, %v3575
        %3577 = vmatmul.f32.gmra.mxu0 %v3504
        %v3578 = vpop.f32.mrf.mxu0
        %v3579 = vadd.f32 0.0, %v3578
        %3580 = vmatmul.f32.gmra.mxu0 %v3505
        %v3581 = vpop.f32.mrf.mxu0
        %v3582 = vadd.f32 0.0, %v3581
        %3583 = vmatmul.f32.gmra.mxu0 %v3506
        %v3584 = vpop.f32.mrf.mxu0
        %v3585 = vadd.f32 0.0, %v3584
        %3586 = vmatmul.f32.gmra.mxu0 %v3507
        %v3587 = vpop.f32.mrf.mxu0
        %v3588 = vadd.f32 0.0, %v3587
        %3589 = vdwg.mxu0
        %v3590 = vadd.f32 %v3476, %v3543
        %v3591 = vadd.f32 %v3477, %v3546
        %v3592 = vadd.f32 %v3478, %v3549
        %v3593 = vadd.f32 %v3479, %v3552
        %v3594 = vadd.f32 %v3480, %v3555
        %v3595 = vadd.f32 %v3481, %v3558
        %v3596 = vadd.f32 %v3482, %v3561
        %v3597 = vadd.f32 %v3483, %v3564
        %v3598 = vadd.f32 %v3484, %v3567
        %v3599 = vadd.f32 %v3485, %v3570
        %v3600 = vadd.f32 %v3486, %v3573
        %v3601 = vadd.f32 %v3487, %v3576
        %v3602 = vadd.f32 %v3488, %v3579
        %v3603 = vadd.f32 %v3489, %v3582
        %v3604 = vadd.f32 %v3490, %v3585
        %v3605 = vadd.f32 %v3491, %v3588
        %p3606 = scmp.eq.s32.totalorder %s33, 0
        // Predicated region
        $region49: #{tpu_custom_call.1} parent=47 // pred_check
          %p3607 = pneg %p3606
        $region50: #{tpu_custom_call.1} parent=47 // pred_check_branch
          %3609 = sbr.rel (%p3607) target = $region52
        $region51: #{tpu_custom_call.1} parent=47 // pred_region
          %vm3610 = vcmask 253952
          %3611 = vst.msk [vmem:[%s404] sm:$0x1] %vm3610, 0.0
          %3612 = vst.msk [vmem:[%s410] sm:$0x1] %vm3610, 0.0
        $region52: #{tpu_custom_call.1} parent=47 // pred_fallthru
          _
        %v3613 = vld [vmem:[%s404] sm:$0x1]
        %vm3614 = vcmask 261120
        %v3615 = vsel %vm3614, %v3590, 0.0
        %v3616 = vsel %vm3614, %v3591, 0.0
        %v3617 = vadd.f32 %v3615, %v3616
        %v3618 = vsel %vm3614, %v3592, 0.0
        %v3619 = vadd.f32 %v3617, %v3618
        %v3620 = vsel %vm3614, %v3593, 0.0
        %v3621 = vadd.f32 %v3619, %v3620
        %v3622 = vsel %vm3614, %v3594, 0.0
        %v3623 = vadd.f32 %v3621, %v3622
        %v3624 = vsel %vm3614, %v3595, 0.0
        %v3625 = vadd.f32 %v3623, %v3624
        %v3626 = vsel %vm3614, %v3596, 0.0
        %v3627 = vadd.f32 %v3625, %v3626
        %v3628 = vsel %vm3614, %v3597, 0.0
        %v3629 = vadd.f32 %v3627, %v3628
        %v3630 = vsel %vm3614, %v3598, 0.0
        %v3631 = vadd.f32 %v3629, %v3630
        %v3632 = vsel %vm3614, %v3599, 0.0
        %v3633 = vadd.f32 %v3631, %v3632
        %v3634 = vsel %vm3614, %v3600, 0.0
        %v3635 = vadd.f32 %v3633, %v3634
        %v3636 = vsel %vm3614, %v3601, 0.0
        %v3637 = vadd.f32 %v3635, %v3636
        %v3638 = vsel %vm3614, %v3602, 0.0
        %v3639 = vadd.f32 %v3637, %v3638
        %v3640 = vsel %vm3614, %v3603, 0.0
        %v3641 = vadd.f32 %v3639, %v3640
        %v3642 = vsel %vm3614, %v3604, 0.0
        %v3643 = vadd.f32 %v3641, %v3642
        %v3644 = vsel %vm3614, %v3605, 0.0
        %v3645 = vadd.f32 %v3643, %v3644
        %v3646 = vrot.slane %v3645, 4
        %v3647 = vadd.f32 %v3645, %v3646
        %v3648 = vrot.slane %v3647, 2
        %v3649 = vadd.f32 %v3647, %v3648
        %v3650 = vrot.slane %v3649, 1
        %v3651 = vadd.f32 %v3649, %v3650
        %v3652 = vadd.f32 %v3613, %v3651
        %vm3653 = vcmask 253952
        %3654 = vst.msk [vmem:[%s404] sm:$0x1] %vm3653, %v3652
        %v3655 = vld [vmem:[%s410] sm:$0x1]
        %v3656 = vmul.f32 %v3590, %v3590
        %v3657 = vmul.f32 %v3591, %v3591
        %v3658 = vmul.f32 %v3592, %v3592
        %v3659 = vmul.f32 %v3593, %v3593
        %v3660 = vmul.f32 %v3594, %v3594
        %v3661 = vmul.f32 %v3595, %v3595
        %v3662 = vmul.f32 %v3596, %v3596
        %v3663 = vmul.f32 %v3597, %v3597
        %v3664 = vmul.f32 %v3598, %v3598
        %v3665 = vmul.f32 %v3599, %v3599
        %v3666 = vmul.f32 %v3600, %v3600
        %v3667 = vmul.f32 %v3601, %v3601
        %v3668 = vmul.f32 %v3602, %v3602
        %v3669 = vmul.f32 %v3603, %v3603
        %v3670 = vmul.f32 %v3604, %v3604
        %v3671 = vmul.f32 %v3605, %v3605
        %v3672 = vsel %vm3614, %v3656, 0.0
        %v3673 = vsel %vm3614, %v3657, 0.0
        %v3674 = vadd.f32 %v3672, %v3673
        %v3675 = vsel %vm3614, %v3658, 0.0
        %v3676 = vadd.f32 %v3674, %v3675
        %v3677 = vsel %vm3614, %v3659, 0.0
        %v3678 = vadd.f32 %v3676, %v3677
        %v3679 = vsel %vm3614, %v3660, 0.0
        %v3680 = vadd.f32 %v3678, %v3679
        %v3681 = vsel %vm3614, %v3661, 0.0
        %v3682 = vadd.f32 %v3680, %v3681
        %v3683 = vsel %vm3614, %v3662, 0.0
        %v3684 = vadd.f32 %v3682, %v3683
        %v3685 = vsel %vm3614, %v3663, 0.0
        %v3686 = vadd.f32 %v3684, %v3685
        %v3687 = vsel %vm3614, %v3664, 0.0
        %v3688 = vadd.f32 %v3686, %v3687
        %v3689 = vsel %vm3614, %v3665, 0.0
        %v3690 = vadd.f32 %v3688, %v3689
        %v3691 = vsel %vm3614, %v3666, 0.0
        %v3692 = vadd.f32 %v3690, %v3691
        %v3693 = vsel %vm3614, %v3667, 0.0
        %v3694 = vadd.f32 %v3692, %v3693
        %v3695 = vsel %vm3614, %v3668, 0.0
        %v3696 = vadd.f32 %v3694, %v3695
        %v3697 = vsel %vm3614, %v3669, 0.0
        %v3698 = vadd.f32 %v3696, %v3697
        %v3699 = vsel %vm3614, %v3670, 0.0
        %v3700 = vadd.f32 %v3698, %v3699
        %v3701 = vsel %vm3614, %v3671, 0.0
        %v3702 = vadd.f32 %v3700, %v3701
        %v3703 = vrot.slane %v3702, 4
        %v3704 = vadd.f32 %v3702, %v3703
        %v3705 = vrot.slane %v3704, 2
        %v3706 = vadd.f32 %v3704, %v3705
        %v3707 = vrot.slane %v3706, 1
        %v3708 = vadd.f32 %v3706, %v3707
        %v3709 = vadd.f32 %v3655, %v3708
        %3710 = vst.msk [vmem:[%s410] sm:$0x1] %vm3653, %v3709
        %v3711 = vld [vmem:[%s418] sm:$0x1]
        %v3713 = vperm.slane %v3711, 0
        %v3715 = vadd.f32 %v3590, %v3713
        %v3716 = vadd.f32 %v3591, %v3713
        %v3717 = vadd.f32 %v3592, %v3713
        %v3718 = vadd.f32 %v3593, %v3713
        %v3719 = vadd.f32 %v3594, %v3713
        %v3720 = vadd.f32 %v3595, %v3713
        %v3721 = vadd.f32 %v3596, %v3713
        %v3722 = vadd.f32 %v3597, %v3713
        %v3723 = vadd.f32 %v3598, %v3713
        %v3724 = vadd.f32 %v3599, %v3713
        %v3725 = vadd.f32 %v3600, %v3713
        %v3726 = vadd.f32 %v3601, %v3713
        %v3727 = vadd.f32 %v3602, %v3713
        %v3728 = vadd.f32 %v3603, %v3713
        %v3729 = vadd.f32 %v3604, %v3713
        %v3730 = vadd.f32 %v3605, %v3713
        %3731 = vst.msk [vmem:[%s427] sm:$0xff] %vm3614, %v3715
        %3732 = vst.msk [vmem:[%s427 + $0x8] sm:$0xff] %vm3614, %v3716
        %3733 = vst.msk [vmem:[%s427 + $0x10] sm:$0xff] %vm3614, %v3717
        %3734 = vst.msk [vmem:[%s427 + $0x18] sm:$0xff] %vm3614, %v3718
        %3735 = vst.msk [vmem:[%s427 + $0x20] sm:$0xff] %vm3614, %v3719
        %3736 = vst.msk [vmem:[%s427 + $0x28] sm:$0xff] %vm3614, %v3720
        %3737 = vst.msk [vmem:[%s427 + $0x30] sm:$0xff] %vm3614, %v3721
        %3738 = vst.msk [vmem:[%s427 + $0x38] sm:$0xff] %vm3614, %v3722
        %3739 = vst.msk [vmem:[%s427 + $0x40] sm:$0xff] %vm3614, %v3723
        %3740 = vst.msk [vmem:[%s427 + $0x48] sm:$0xff] %vm3614, %v3724
        %3741 = vst.msk [vmem:[%s427 + $0x50] sm:$0xff] %vm3614, %v3725
        %3742 = vst.msk [vmem:[%s427 + $0x58] sm:$0xff] %vm3614, %v3726
        %3743 = vst.msk [vmem:[%s427 + $0x60] sm:$0xff] %vm3614, %v3727
        %3744 = vst.msk [vmem:[%s427 + $0x68] sm:$0xff] %vm3614, %v3728
        %3745 = vst.msk [vmem:[%s427 + $0x70] sm:$0xff] %vm3614, %v3729
        %3746 = vst.msk [vmem:[%s427 + $0x78] sm:$0xff] %vm3614, %v3730
        %3763 = vrot.lane.b32.xlu0 %v546, 96
        %v3764 = vpop.permute.xlu0 %3763
        %3765 = vrot.lane.b32.xlu0 %v547, 96
        %v3766 = vpop.permute.xlu0 %3765
        %3767 = vrot.lane.b32.xlu0 %v548, 96
        %v3768 = vpop.permute.xlu0 %3767
        %3769 = vrot.lane.b32.xlu0 %v549, 96
        %v3770 = vpop.permute.xlu0 %3769
        %3771 = vrot.lane.b32.xlu0 %v550, 96
        %v3772 = vpop.permute.xlu0 %3771
        %3773 = vrot.lane.b32.xlu0 %v551, 96
        %v3774 = vpop.permute.xlu0 %3773
        %3775 = vrot.lane.b32.xlu0 %v552, 96
        %v3776 = vpop.permute.xlu0 %3775
        %3777 = vrot.lane.b32.xlu0 %v553, 96
        %v3778 = vpop.permute.xlu0 %3777
        %3779 = vrot.lane.b32.xlu0 %v554, 96
        %v3780 = vpop.permute.xlu0 %3779
        %3781 = vrot.lane.b32.xlu0 %v555, 96
        %v3782 = vpop.permute.xlu0 %3781
        %3783 = vrot.lane.b32.xlu0 %v556, 96
        %v3784 = vpop.permute.xlu0 %3783
        %3785 = vrot.lane.b32.xlu0 %v557, 96
        %v3786 = vpop.permute.xlu0 %3785
        %3787 = vrot.lane.b32.xlu0 %v558, 96
        %v3788 = vpop.permute.xlu0 %3787
        %3789 = vrot.lane.b32.xlu0 %v559, 96
        %v3790 = vpop.permute.xlu0 %3789
        %3791 = vrot.lane.b32.xlu0 %v560, 96
        %v3792 = vpop.permute.xlu0 %3791
        %3793 = vrot.lane.b32.xlu0 %v561, 96
        %v3794 = vpop.permute.xlu0 %3793
        %3811 = vst.msk [vmem:[%s437] sm:$0xff] %vm3614, %v3764
        %3812 = vst.msk [vmem:[%s437 + $0x8] sm:$0xff] %vm3614, %v3766
        %3813 = vst.msk [vmem:[%s437 + $0x10] sm:$0xff] %vm3614, %v3768
        %3814 = vst.msk [vmem:[%s437 + $0x18] sm:$0xff] %vm3614, %v3770
        %3815 = vst.msk [vmem:[%s437 + $0x20] sm:$0xff] %vm3614, %v3772
        %3816 = vst.msk [vmem:[%s437 + $0x28] sm:$0xff] %vm3614, %v3774
        %3817 = vst.msk [vmem:[%s437 + $0x30] sm:$0xff] %vm3614, %v3776
        %3818 = vst.msk [vmem:[%s437 + $0x38] sm:$0xff] %vm3614, %v3778
        %3819 = vst.msk [vmem:[%s437 + $0x40] sm:$0xff] %vm3614, %v3780
        %3820 = vst.msk [vmem:[%s437 + $0x48] sm:$0xff] %vm3614, %v3782
        %3821 = vst.msk [vmem:[%s437 + $0x50] sm:$0xff] %vm3614, %v3784
        %3822 = vst.msk [vmem:[%s437 + $0x58] sm:$0xff] %vm3614, %v3786
        %3823 = vst.msk [vmem:[%s437 + $0x60] sm:$0xff] %vm3614, %v3788
        %3824 = vst.msk [vmem:[%s437 + $0x68] sm:$0xff] %vm3614, %v3790
        %3825 = vst.msk [vmem:[%s437 + $0x70] sm:$0xff] %vm3614, %v3792
        %3826 = vst.msk [vmem:[%s437 + $0x78] sm:$0xff] %vm3614, %v3794
        %s3827 = smul.u32 16, %s33
        %p3828 = scmp.lt.s32.totalorder %s32, 1
        %s3829 = scalar_select %p3828, %s32, 1
        %p3830 = scmp.lt.s32.totalorder %s3827, 31
        %s3831 = scalar_select %p3830, %s3827, 31
        %s3832 = smul.addr %s3829, 32
        %s3833 = sadd.s32 %s3831, %s3832
        %s3834 = smul.addr %s3833, 8
        %s3835 = scalar_lea.vmem %s7, %s3834
        %s3836 = smul.u32 16, %s33
        %p3837 = scmp.lt.s32.totalorder %s32, 1
        %s3838 = scalar_select %p3837, %s32, 1
        %p3839 = scmp.lt.s32.totalorder %s3836, 31
        %s3840 = scalar_select %p3839, %s3836, 31
        %s3841 = smul.addr %s3838, 32
        %s3842 = sadd.s32 %s3840, %s3841
        %s3843 = smul.addr %s3842, 8
        %s3844 = scalar_lea.vmem %s8, %s3843
        %s3845 = sand.u32 %s261, 1
        %s3846 = scalar_lea.sflag [#allocation3], %s3845
        %s3847 = sand.u32 %s261, 1
        %s3848 = scalar_lea.vmem [#allocation2], %s3847
        %s3849 = sand.u32 %s287, 1
        %s3850 = scalar_lea.sflag [#allocation5], %s3849
        %s3851 = sand.u32 %s287, 1
        %s3852 = scalar_lea.vmem [#allocation4], %s3851
        // Predicated region
        $region53: #{tpu_custom_call.1} parent=47 // pred_check
          %p3853 = pneg %p217
        $region54: #{tpu_custom_call.1} parent=47 // pred_check_branch
          %3855 = sbr.rel (%p3853) target = $region56
        $region55: #{tpu_custom_call.1} parent=47 // pred_region
          %s3856 = smul.u32 16, %s33
        $region56: #{tpu_custom_call.1} parent=47 // pred_fallthru
          _
        // Predicated region
        $region57: #{tpu_custom_call.1} parent=47 // pred_check
          %p3857 = pneg %p245
        $region58: #{tpu_custom_call.1} parent=47 // pred_check_branch
          %3859 = sbr.rel (%p3857) target = $region60
        $region59: #{tpu_custom_call.1} parent=47 // pred_region
          %s3860 = smul.u32 16, %s33
        $region60: #{tpu_custom_call.1} parent=47 // pred_fallthru
          _
        // Predicated region
        $region61: #{tpu_custom_call.1} parent=47 // pred_check
          %p3861 = pneg %p271
        $region62: #{tpu_custom_call.1} parent=47 // pred_check_branch
          %3863 = sbr.rel (%p3861) target = $region64
        $region63: #{tpu_custom_call.1} parent=47 // pred_region
          %3865 = vsyncadd %s3846, 0
          %s3866 = scalar_lea.hbm %s9, %s32
          %s3868 = sshll.u32 %s3848, 4
          %s3869 = int_to_ptr.vmem [resolvable:$true] %s3868
          %s3870 = sshll.u32 %s3866, 4
          %s3871 = int_to_ptr.hbm [resolvable:$true] %s3870
          %3873 = dma.vmem_to_hbm [thread:$0]  %s3869, 16, %s3871, %s3846
        $region64: #{tpu_custom_call.1} parent=47 // pred_fallthru
          _
        // Predicated region
        $region65: #{tpu_custom_call.1} parent=47 // pred_check
          %p3874 = pneg %p297
        $region66: #{tpu_custom_call.1} parent=47 // pred_check_branch
          %3876 = sbr.rel (%p3874) target = $region68
        $region67: #{tpu_custom_call.1} parent=47 // pred_region
          %3878 = vsyncadd %s3850, 0
          %s3879 = scalar_lea.hbm %s10, %s32
          %s3881 = sshll.u32 %s3852, 4
          %s3882 = int_to_ptr.vmem [resolvable:$true] %s3881
          %s3883 = sshll.u32 %s3879, 4
          %s3884 = int_to_ptr.hbm [resolvable:$true] %s3883
          %3886 = dma.vmem_to_hbm [thread:$0]  %s3882, 16, %s3884, %s3850
        $region68: #{tpu_custom_call.1} parent=47 // pred_fallthru
          _
      $region48: #{tpu_custom_call.1} parent=5 // pred_fallthru
        _
      %p3887 = scmp.le.s32.totalorder 2, %s23
      // Predicated region
      $region69: #{tpu_custom_call.1} parent=5 // pred_check
        %p3888 = pneg %p3887
      $region70: #{tpu_custom_call.1} parent=5 // pred_check_branch
        %3890 = sbr.rel (%p3888) target = $region72
      $region71: #{tpu_custom_call.1} parent=5 // pred_region
        %s3891 = ssub.s32 %s23, 2
        // Predicated region
        $region73: #{tpu_custom_call.1} parent=71 // pred_check
          %p3892 = pneg %p223
        $region74: #{tpu_custom_call.1} parent=71 // pred_check_branch
          %3894 = sbr.rel (%p3892) target = $region76
        $region75: #{tpu_custom_call.1} parent=71 // pred_region
          %s3895 = smul.u32 16, %s35
          %p3896 = scmp.lt.s32.totalorder %s34, 1
          %s3897 = scalar_select %p3896, %s34, 1
          %p3898 = scmp.lt.s32.totalorder %s3895, 31
          %s3899 = scalar_select %p3898, %s3895, 31
          %s3900 = smul.addr %s3897, 32
          %s3901 = sadd.s32 %s3899, %s3900
          %s3902 = smul.addr %s3901, 8
          %s3903 = scalar_lea.vmem %s7, %s3902
        $region76: #{tpu_custom_call.1} parent=71 // pred_fallthru
          _
        // Predicated region
        $region77: #{tpu_custom_call.1} parent=71 // pred_check
          %p3904 = pneg %p251
        $region78: #{tpu_custom_call.1} parent=71 // pred_check_branch
          %3906 = sbr.rel (%p3904) target = $region80
        $region79: #{tpu_custom_call.1} parent=71 // pred_region
          %s3907 = smul.u32 16, %s35
          %p3908 = scmp.lt.s32.totalorder %s34, 1
          %s3909 = scalar_select %p3908, %s34, 1
          %p3910 = scmp.lt.s32.totalorder %s3907, 31
          %s3911 = scalar_select %p3910, %s3907, 31
          %s3912 = smul.addr %s3909, 32
          %s3913 = sadd.s32 %s3911, %s3912
          %s3914 = smul.addr %s3913, 8
          %s3915 = scalar_lea.vmem %s8, %s3914
        $region80: #{tpu_custom_call.1} parent=71 // pred_fallthru
          _
        // Predicated region
        $region81: #{tpu_custom_call.1} parent=71 // pred_check
          %p3916 = pneg %p277
        $region82: #{tpu_custom_call.1} parent=71 // pred_check_branch
          %3918 = sbr.rel (%p3916) target = $region84
        $region83: #{tpu_custom_call.1} parent=71 // pred_region
          %s3919 = sand.u32 %s262, 1
          %s3920 = scalar_lea.sflag [#allocation3], %s3919
          %s3921 = sand.u32 %s262, 1
          %s3922 = scalar_lea.vmem [#allocation2], %s3921
          %3924 = dma.done %s3920, 16
        $region84: #{tpu_custom_call.1} parent=71 // pred_fallthru
          _
        // Predicated region
        $region85: #{tpu_custom_call.1} parent=71 // pred_check
          %p3925 = pneg %p303
        $region86: #{tpu_custom_call.1} parent=71 // pred_check_branch
          %3927 = sbr.rel (%p3925) target = $region88
        $region87: #{tpu_custom_call.1} parent=71 // pred_region
          %s3928 = sand.u32 %s288, 1
          %s3929 = scalar_lea.sflag [#allocation5], %s3928
          %s3930 = sand.u32 %s288, 1
          %s3931 = scalar_lea.vmem [#allocation4], %s3930
          %3933 = dma.done %s3929, 16
        $region88: #{tpu_custom_call.1} parent=71 // pred_fallthru
          _
      $region72: #{tpu_custom_call.1} parent=5 // pred_fallthru
        _
    $region6: #{tpu_custom_call.1} parent=1 // loop_footer
      %s27 = sadd.s32 1, %s23
    $region7: #{tpu_custom_call.1} parent=1 // loop_footer_branch
      %22 = sbr.rel target = $region3
    $region8: #{tpu_custom_call.1} parent=1 // loop_exit
      _
    %3934 = vsyncpa [#allocation3], 1
    %s3935 = scalar_lea.sflag [#allocation3], 1
    %3936 = vsyncpa %s3935, 1
    %3937 = vsyncpa [#allocation5], 1
    %s3938 = scalar_lea.sflag [#allocation5], 1
    %3939 = vsyncpa %s3938, 1

</llo_original>
